<compile_context>
chip_gen: v5e
topology: v5e:2x2
jax: 0.10.0
libtpu: 0.0.40
codegen_flags: <defaults>
</compile_context>

<pallas_src>
import jax
import jax.numpy as jnp
from jax.experimental import pallas as pl
from jax.experimental.pallas import tpu as pltpu


def _largest_divisor_leq(n, cap):
    for d in range(min(n, cap), 0, -1):
        if n % d == 0:
            return d
    return 1


def _pick_channel_chunk(C):
    """Chunk size for streaming channel reductions (bounds the f32 temp)."""
    if C <= 32:
        return C
    cch = _largest_divisor_leq(C, max(32, min(128, C // 8)))
    if C // cch > 32:          # pathological channel counts: just do one pass
        return C
    return cch


def _pick_bt(B, bytes_per_image, target_bytes=2 << 20, cap_bytes=4 << 20):
    """Largest divisor of B whose block stays under cap, aiming for >= target."""
    best = 1
    for bt in range(1, B + 1):
        if B % bt:
            continue
        if bt * bytes_per_image > cap_bytes:
            break
        best = bt
        if bt * bytes_per_image >= target_bytes:
            break
    return best


def _make_cbam_kernel(Bt, C, H, W, K):
    P = K // 2
    Hp, Wp = H + 2 * P, W + 2 * P
    S = H * W
    inv_hw = 1.0 / float(S)
    inv_c = 1.0 / float(C)
    CCH = _pick_channel_chunk(C)
    f32 = jnp.float32

    def kernel(wsp_ref, x_ref, w1t_ref, w2t_ref, o_ref, pad_ref, att_ref):
        # x_ref block: (Bt, C, S); S = H*W sits on the 128-lane axis.
        x = x_ref[...].astype(f32)                               # (Bt, C, S)
        w1t = w1t_ref[...].astype(f32)                           # (C, Cr)
        w2t = w2t_ref[...].astype(f32)                           # (Cr, C)

        # ---------------- Channel attention ----------------
        avg_c = jnp.sum(x, axis=2) * inv_hw                      # (Bt, C) global avg-pool
        max_c = jnp.max(x, axis=2)                               # (Bt, C) global max-pool

        def shared_mlp(v):                                       # (Bt, C) -> (Bt, C)
            # 1x1 conv (C -> Cr), ReLU, 1x1 conv (Cr -> C): two tiny MXU matmuls.
            h = jnp.maximum(
                jnp.dot(v, w1t, precision=jax.lax.Precision.HIGHEST,
                        preferred_element_type=f32), 0.0)        # (Bt, Cr)
            return jnp.dot(h, w2t, precision=jax.lax.Precision.HIGHEST,
                           preferred_element_type=f32)           # (Bt, C)

        att_c = jax.nn.sigmoid(shared_mlp(avg_c) + shared_mlp(max_c))   # (Bt, C)

        # ---------------- Spatial attention ----------------
        # Channel mean / max of (x * att_c), streamed over channel chunks so the
        # full scaled tensor (the old x_ca temporary) never materializes.
        sum_s = jnp.zeros((Bt, S), f32)
        max_s = jnp.full((Bt, S), -jnp.inf, f32)
        for c0 in range(0, C, CCH):
            xc = x[:, c0:c0 + CCH, :] * att_c[:, c0:c0 + CCH, None]
            sum_s = sum_s + jnp.sum(xc, axis=1)
            max_s = jnp.maximum(max_s, jnp.max(xc, axis=1))
        avg_s = sum_s * inv_c                                    # (Bt, S)
        # TODO(synk): for very large C, avg_s could instead be a batched MXU
        # matvec (att_c @ x) to take this reduction off the XLU entirely.

        # Zero-padded (Hp, Wp) planes for the KxK conv.  flat -> plane is done
        # with per-row stores (tiny planes; avoids relying on in-kernel reshapes).
        pad_ref[...] = jnp.zeros((2, Bt, Hp, Wp), f32)
        for y in range(H):
            pad_ref[0, :, P + y, P:P + W] = avg_s[:, y * W:(y + 1) * W]
            pad_ref[1, :, P + y, P:P + W] = max_s[:, y * W:(y + 1) * W]

        # Unrolled 2*K*K-tap conv: one slab load per (plane, ky), static
        # lane-offset slices of the slab value, 4 independent accumulators.
        acc = [jnp.zeros((Bt, H, W), f32) for _ in range(4)]
        for ci in range(2):
            for dy in range(K):
                slab = pad_ref[ci, :, dy:dy + H, :]              # (Bt, H, Wp)
                a = 2 * ci + (dy & 1)
                for dx in range(K):
                    wv = wsp_ref[ci * K * K + dy * K + dx]       # SMEM scalar
                    acc[a] = acc[a] + wv * slab[:, :, dx:dx + W]
        conv = (acc[0] + acc[1]) + (acc[2] + acc[3])             # (Bt, H, W)

        # plane -> flat (lane-dense) through the pad scratch, then EUP sigmoid.
        pad_ref[0, :, P:P + H, P:P + W] = conv
        for y in range(H):
            att_ref[:, 0, y * W:(y + 1) * W] = pad_ref[0, :, P + y, P:P + W]
        att_s = jax.nn.sigmoid(att_ref[...])                     # (Bt, 1, S)

        # Single fused, lane-dense output pass: out = x * att_c * att_s.
        o_ref[...] = (x * att_c[:, :, None] * att_s).astype(o_ref.dtype)

    return kernel


def cbam_forward(x, w_fc1, w_fc2, w_spatial):
    """CBAM forward.

    x         : (B, C, H, W)    input feature map (any float dtype)
    w_fc1     : (C//r, C, 1, 1) ChannelAttention.fc[0].weight
    w_fc2     : (C, C//r, 1, 1) ChannelAttention.fc[2].weight
    w_spatial : (1, 2, K, K)    SpatialAttention.conv.weight
    returns   : (B, C, H, W)
    """
    B, C, H, W = x.shape
    Cr = w_fc1.shape[0]
    K = w_spatial.shape[-1]
    P = K // 2
    S = H * W

    # Native layout: only free reshapes on the big tensor (no HBM transposes).
    x3 = x.reshape(B, C, S)
    w1t = jnp.transpose(w_fc1.reshape(Cr, C))                    # (C, Cr)
    w2t = jnp.transpose(w_fc2.reshape(C, Cr))                    # (Cr, C)
    wsp = w_spatial.reshape(2 * K * K).astype(jnp.float32)       # flat [ci, ky, kx]

    itemsize = x.dtype.itemsize
    Bt = _pick_bt(B, C * S * itemsize)
    grid = (B // Bt,)

    # Per-step VMEM estimate: double-buffered in/out blocks + ~3 f32 temporaries.
    blk = Bt * C * S
    est = 4 * blk * itemsize + 3 * blk * 4 + (2 << 20)
    vmem_limit = int(min(64 * 1024 * 1024, max(32 * 1024 * 1024, 2 * est)))

    kernel = _make_cbam_kernel(Bt, C, H, W, K)

    out3 = pl.pallas_call(
        kernel,
        out_shape=jax.ShapeDtypeStruct((B, C, S), x.dtype),
        grid_spec=pltpu.PrefetchScalarGridSpec(
            num_scalar_prefetch=1,                               # conv weights -> SMEM
            grid=grid,
            in_specs=[
                pl.BlockSpec((Bt, C, S), lambda i, _: (i, 0, 0)),
                pl.BlockSpec((C, Cr), lambda i, _: (0, 0)),
                pl.BlockSpec((Cr, C), lambda i, _: (0, 0)),
            ],
            out_specs=pl.BlockSpec((Bt, C, S), lambda i, _: (i, 0, 0)),
            scratch_shapes=[
                pltpu.VMEM((2, Bt, H + 2 * P, W + 2 * P), jnp.float32),
                pltpu.VMEM((Bt, 1, S), jnp.float32),
            ],
        ),
        compiler_params=pltpu.CompilerParams(
            # TODO(synk): on v7x, use CORE_PARALLEL / core_map once B//Bt gives
            # each TensorCore >= 2-3 grid steps; "parallel" is the portable choice.
            dimension_semantics=("parallel",),
            vmem_limit_bytes=vmem_limit,
        ),
    )(wsp, x3, w1t, w2t)

    return out3.reshape(B, C, H, W)


def _reference(x, w_fc1, w_fc2, w_spatial):
    """Pure-JAX reference of the PyTorch CBAM forward (NCHW)."""
    B, C, H, W = x.shape
    Cr = w_fc1.shape[0]
    K = w_spatial.shape[-1]
    P = K // 2
    w1 = w_fc1.reshape(Cr, C)
    w2 = w_fc2.reshape(C, Cr)

    # channel attention
    avg = jnp.mean(x, axis=(2, 3))                               # (B, C)
    mx = jnp.max(x, axis=(2, 3))                                 # (B, C)

    def fc(v):                                                   # (B, C) -> (B, C)
        h = jax.nn.relu(jnp.sum(v[:, None, :] * w1[None, :, :], axis=-1))   # (B, Cr)
        return jnp.sum(h[:, :, None] * w2.T[None, :, :], axis=1)            # (B, C)

    att_c = jax.nn.sigmoid(fc(avg) + fc(mx))[:, :, None, None]
    x1 = x * att_c

    # spatial attention (explicit pad + shift so it is exact f32, like the kernel)
    avg_s = jnp.mean(x1, axis=1, keepdims=True)                  # (B, 1, H, W)
    max_s = jnp.max(x1, axis=1, keepdims=True)                   # (B, 1, H, W)
    xcat = jnp.concatenate([avg_s, max_s], axis=1)               # (B, 2, H, W)
    xpad = jnp.pad(xcat, ((0, 0), (0, 0), (P, P), (P, P)))
    conv = jnp.zeros((B, 1, H, W), jnp.float32)
    for ci in range(2):
        for dy in range(K):
            for dx in range(K):
                conv = conv + w_spatial[0, ci, dy, dx] * xpad[:, ci:ci + 1, dy:dy + H, dx:dx + W]
    att_s = jax.nn.sigmoid(conv)
    return x1 * att_s


if __name__ == "__main__":
    key = jax.random.PRNGKey(0)
    k1, k2, k3, k4 = jax.random.split(key, 4)

    # in_planes must be >= ratio for the PyTorch module to be valid.
    B, C, H, W = 2, 32, 16, 16
    ratio, ksize = 16, 7
    Cr = C // ratio

    x = jax.random.normal(k1, (B, C, H, W), dtype=jnp.float32)
    w_fc1 = jax.random.normal(k2, (Cr, C, 1, 1), dtype=jnp.float32) * 0.2
    w_fc2 = jax.random.normal(k3, (C, Cr, 1, 1), dtype=jnp.float32) * 0.2
    w_sp = jax.random.normal(k4, (1, 2, ksize, ksize), dtype=jnp.float32) * 0.2

    out = cbam_forward(x, w_fc1, w_fc2, w_sp)
    jax.block_until_ready(out)

    ref = _reference(x, w_fc1, w_fc2, w_sp)
    assert out.shape == ref.shape
    max_err = float(jnp.max(jnp.abs(out - ref)))
    assert jnp.allclose(out, ref, rtol=1e-3, atol=1e-3), max_err

    print("KERNEL_OK")
</pallas_src>

<mosaic_0001>
module attributes {stable_mosaic.version = 11 : i64} {
  func.func @kernel(%arg0: i32, %arg1: memref<98xf32, #tpu.memory_space<smem>>, %arg2: memref<2x32x256xf32, #tpu.memory_space<vmem>>, %arg3: memref<32x2xf32, #tpu.memory_space<vmem>>, %arg4: memref<2x32xf32, #tpu.memory_space<vmem>>, %arg5: memref<2x32x256xf32, #tpu.memory_space<vmem>>, %arg6: memref<2x2x22x22xf32, #tpu.memory_space<vmem>>, %arg7: memref<2x1x256xf32, #tpu.memory_space<vmem>>) attributes {dimension_semantics = [#tpu.dimension_semantics<parallel>], iteration_bounds = array<i64: 1>, scalar_prefetch = 1 : i64, scratch_operands = 2 : i64, tpu.core_type = #tpu.core_type<tc>, window_params = [{transform_indices = @transform_0, window_bounds = array<i64: 2, 32, 256>}, {pipeline_mode = #tpu.pipeline_mode<synchronous>, transform_indices = @transform_1, window_bounds = array<i64: 32, 2>}, {pipeline_mode = #tpu.pipeline_mode<synchronous>, transform_indices = @transform_2, window_bounds = array<i64: 2, 32>}, {transform_indices = @transform_3, window_bounds = array<i64: 2, 32, 256>}]} {
    %c0 = arith.constant 0 : index
    %c0_0 = arith.constant 0 : index
    %c0_1 = arith.constant 0 : index
    %0 = vector.load %arg2[%c0, %c0_0, %c0_1] : memref<2x32x256xf32, #tpu.memory_space<vmem>>, vector<2x32x256xf32>
    %c0_2 = arith.constant 0 : index
    %c0_3 = arith.constant 0 : index
    %1 = vector.load %arg3[%c0_2, %c0_3] : memref<32x2xf32, #tpu.memory_space<vmem>>, vector<32x2xf32>
    %c0_4 = arith.constant 0 : index
    %c0_5 = arith.constant 0 : index
    %2 = vector.load %arg4[%c0_4, %c0_5] : memref<2x32xf32, #tpu.memory_space<vmem>>, vector<2x32xf32>
    %cst = arith.constant dense<0.000000e+00> : vector<2x32xf32>
    %3 = vector.multi_reduction <add>, %0, %cst [2] : vector<2x32x256xf32> to vector<2x32xf32>
    %cst_6 = arith.constant 3.906250e-03 : f32
    %4 = vector.broadcast %cst_6 : f32 to vector<2x32xf32>
    %5 = arith.mulf %3, %4 : vector<2x32xf32>
    %cst_7 = arith.constant dense<0xFF800000> : vector<2x32xf32>
    %6 = vector.multi_reduction <maximumf>, %0, %cst_7 [2] : vector<2x32x256xf32> to vector<2x32xf32>
    %cst_8 = arith.constant dense<0.000000e+00> : vector<2x2xf32>
    %7 = tpu.matmul %5, %1, %cst_8 {dimension_numbers = #tpu.dot_dimension_numbers<[1], [0], [0], [1], [0, 0, 1, 1], [], []>, precision = #tpu.contract_precision<fp32>} : vector<2x32xf32>, vector<32x2xf32>, vector<2x2xf32> -> vector<2x2xf32>
    %cst_9 = arith.constant 0.000000e+00 : f32
    %8 = vector.broadcast %cst_9 : f32 to vector<2x2xf32>
    %9 = arith.maximumf %7, %8 : vector<2x2xf32>
    %cst_10 = arith.constant dense<0.000000e+00> : vector<2x32xf32>
    %10 = tpu.matmul %9, %2, %cst_10 {dimension_numbers = #tpu.dot_dimension_numbers<[1], [0], [0], [1], [0, 0, 1, 1], [], []>, precision = #tpu.contract_precision<fp32>} : vector<2x2xf32>, vector<2x32xf32>, vector<2x32xf32> -> vector<2x32xf32>
    %cst_11 = arith.constant dense<0.000000e+00> : vector<2x2xf32>
    %11 = tpu.matmul %6, %1, %cst_11 {dimension_numbers = #tpu.dot_dimension_numbers<[1], [0], [0], [1], [0, 0, 1, 1], [], []>, precision = #tpu.contract_precision<fp32>} : vector<2x32xf32>, vector<32x2xf32>, vector<2x2xf32> -> vector<2x2xf32>
    %cst_12 = arith.constant 0.000000e+00 : f32
    %12 = vector.broadcast %cst_12 : f32 to vector<2x2xf32>
    %13 = arith.maximumf %11, %12 : vector<2x2xf32>
    %cst_13 = arith.constant dense<0.000000e+00> : vector<2x32xf32>
    %14 = tpu.matmul %13, %2, %cst_13 {dimension_numbers = #tpu.dot_dimension_numbers<[1], [0], [0], [1], [0, 0, 1, 1], [], []>, precision = #tpu.contract_precision<fp32>} : vector<2x2xf32>, vector<2x32xf32>, vector<2x32xf32> -> vector<2x32xf32>
    %15 = arith.addf %10, %14 : vector<2x32xf32>
    %16 = arith.negf %15 : vector<2x32xf32>
    %17 = math.exp %16 : vector<2x32xf32>
    %cst_14 = arith.constant 1.000000e+00 : f32
    %18 = vector.broadcast %cst_14 : f32 to vector<2x32xf32>
    %19 = arith.addf %18, %17 : vector<2x32xf32>
    %20 = arith.divf %18, %19 : vector<2x32xf32>
    %cst_15 = arith.constant 0.000000e+00 : f32
    %21 = vector.broadcast %cst_15 : f32 to vector<2x256xf32>
    %cst_16 = arith.constant 0xFF800000 : f32
    %22 = vector.broadcast %cst_16 : f32 to vector<2x256xf32>
    %23 = vector.shape_cast %20 : vector<2x32xf32> to vector<2x32x1xf32>
    %24 = vector.broadcast %23 : vector<2x32x1xf32> to vector<2x32x256xf32>
    %25 = arith.mulf %0, %24 : vector<2x32x256xf32>
    %cst_17 = arith.constant dense<0.000000e+00> : vector<2x256xf32>
    %26 = vector.multi_reduction <add>, %25, %cst_17 [1] : vector<2x32x256xf32> to vector<2x256xf32>
    %27 = arith.addf %21, %26 : vector<2x256xf32>
    %cst_18 = arith.constant dense<0xFF800000> : vector<2x256xf32>
    %28 = vector.multi_reduction <maximumf>, %25, %cst_18 [1] : vector<2x32x256xf32> to vector<2x256xf32>
    %29 = arith.maximumf %22, %28 : vector<2x256xf32>
    %cst_19 = arith.constant 3.125000e-02 : f32
    %30 = vector.broadcast %cst_19 : f32 to vector<2x256xf32>
    %31 = arith.mulf %27, %30 : vector<2x256xf32>
    %cst_20 = arith.constant 0.000000e+00 : f32
    %32 = vector.broadcast %cst_20 : f32 to vector<2x2x22x22xf32>
    %c0_21 = arith.constant 0 : index
    %c0_22 = arith.constant 0 : index
    %c0_23 = arith.constant 0 : index
    %c0_24 = arith.constant 0 : index
    %33 = vector.load %arg6[%c0_21, %c0_22, %c0_23, %c0_24] : memref<2x2x22x22xf32, #tpu.memory_space<vmem>>, vector<2x2x22x22xf32>
    tpu.vector_store %arg6[%c0_21, %c0_22, %c0_23, %c0_24], %32 {strides = array<i32>} : memref<2x2x22x22xf32, #tpu.memory_space<vmem>>, vector<2x2x22x22xf32>,
    %34 = vector.extract_strided_slice %31 {offsets = [0, 0], sizes = [2, 16], strides = [1, 1]} : vector<2x256xf32> to vector<2x16xf32>
    %c0_25 = arith.constant 0 : index
    %c0_26 = arith.constant 0 : index
    %c3 = arith.constant 3 : index
    %c3_27 = arith.constant 3 : index
    %35 = vector.load %arg6[%c0_25, %c0_26, %c3, %c3_27] : memref<2x2x22x22xf32, #tpu.memory_space<vmem>>, vector<1x2x1x16xf32>
    %36 = vector.shape_cast %35 : vector<1x2x1x16xf32> to vector<2x16xf32>
    %37 = vector.shape_cast %34 : vector<2x16xf32> to vector<1x2x1x16xf32>
    tpu.vector_store %arg6[%c0_25, %c0_26, %c3, %c3_27], %37 {strides = array<i32>} : memref<2x2x22x22xf32, #tpu.memory_space<vmem>>, vector<1x2x1x16xf32>,
    %38 = vector.extract_strided_slice %29 {offsets = [0, 0], sizes = [2, 16], strides = [1, 1]} : vector<2x256xf32> to vector<2x16xf32>
    %c1 = arith.constant 1 : index
    %c0_28 = arith.constant 0 : index
    %c3_29 = arith.constant 3 : index
    %c3_30 = arith.constant 3 : index
    %39 = vector.load %arg6[%c1, %c0_28, %c3_29, %c3_30] : memref<2x2x22x22xf32, #tpu.memory_space<vmem>>, vector<1x2x1x16xf32>
    %40 = vector.shape_cast %39 : vector<1x2x1x16xf32> to vector<2x16xf32>
    %41 = vector.shape_cast %38 : vector<2x16xf32> to vector<1x2x1x16xf32>
    tpu.vector_store %arg6[%c1, %c0_28, %c3_29, %c3_30], %41 {strides = array<i32>} : memref<2x2x22x22xf32, #tpu.memory_space<vmem>>, vector<1x2x1x16xf32>,
    %42 = vector.extract_strided_slice %31 {offsets = [0, 16], sizes = [2, 16], strides = [1, 1]} : vector<2x256xf32> to vector<2x16xf32>
    %c0_31 = arith.constant 0 : index
    %c0_32 = arith.constant 0 : index
    %c4 = arith.constant 4 : index
    %c3_33 = arith.constant 3 : index
    %43 = vector.load %arg6[%c0_31, %c0_32, %c4, %c3_33] : memref<2x2x22x22xf32, #tpu.memory_space<vmem>>, vector<1x2x1x16xf32>
    %44 = vector.shape_cast %43 : vector<1x2x1x16xf32> to vector<2x16xf32>
    %45 = vector.shape_cast %42 : vector<2x16xf32> to vector<1x2x1x16xf32>
    tpu.vector_store %arg6[%c0_31, %c0_32, %c4, %c3_33], %45 {strides = array<i32>} : memref<2x2x22x22xf32, #tpu.memory_space<vmem>>, vector<1x2x1x16xf32>,
    %46 = vector.extract_strided_slice %29 {offsets = [0, 16], sizes = [2, 16], strides = [1, 1]} : vector<2x256xf32> to vector<2x16xf32>
    %c1_34 = arith.constant 1 : index
    %c0_35 = arith.constant 0 : index
    %c4_36 = arith.constant 4 : index
    %c3_37 = arith.constant 3 : index
    %47 = vector.load %arg6[%c1_34, %c0_35, %c4_36, %c3_37] : memref<2x2x22x22xf32, #tpu.memory_space<vmem>>, vector<1x2x1x16xf32>
    %48 = vector.shape_cast %47 : vector<1x2x1x16xf32> to vector<2x16xf32>
    %49 = vector.shape_cast %46 : vector<2x16xf32> to vector<1x2x1x16xf32>
    tpu.vector_store %arg6[%c1_34, %c0_35, %c4_36, %c3_37], %49 {strides = array<i32>} : memref<2x2x22x22xf32, #tpu.memory_space<vmem>>, vector<1x2x1x16xf32>,
    %50 = vector.extract_strided_slice %31 {offsets = [0, 32], sizes = [2, 16], strides = [1, 1]} : vector<2x256xf32> to vector<2x16xf32>
    %c0_38 = arith.constant 0 : index
    %c0_39 = arith.constant 0 : index
    %c5 = arith.constant 5 : index
    %c3_40 = arith.constant 3 : index
    %51 = vector.load %arg6[%c0_38, %c0_39, %c5, %c3_40] : memref<2x2x22x22xf32, #tpu.memory_space<vmem>>, vector<1x2x1x16xf32>
    %52 = vector.shape_cast %51 : vector<1x2x1x16xf32> to vector<2x16xf32>
    %53 = vector.shape_cast %50 : vector<2x16xf32> to vector<1x2x1x16xf32>
    tpu.vector_store %arg6[%c0_38, %c0_39, %c5, %c3_40], %53 {strides = array<i32>} : memref<2x2x22x22xf32, #tpu.memory_space<vmem>>, vector<1x2x1x16xf32>,
    %54 = vector.extract_strided_slice %29 {offsets = [0, 32], sizes = [2, 16], strides = [1, 1]} : vector<2x256xf32> to vector<2x16xf32>
    %c1_41 = arith.constant 1 : index
    %c0_42 = arith.constant 0 : index
    %c5_43 = arith.constant 5 : index
    %c3_44 = arith.constant 3 : index
    %55 = vector.load %arg6[%c1_41, %c0_42, %c5_43, %c3_44] : memref<2x2x22x22xf32, #tpu.memory_space<vmem>>, vector<1x2x1x16xf32>
    %56 = vector.shape_cast %55 : vector<1x2x1x16xf32> to vector<2x16xf32>
    %57 = vector.shape_cast %54 : vector<2x16xf32> to vector<1x2x1x16xf32>
    tpu.vector_store %arg6[%c1_41, %c0_42, %c5_43, %c3_44], %57 {strides = array<i32>} : memref<2x2x22x22xf32, #tpu.memory_space<vmem>>, vector<1x2x1x16xf32>,
    %58 = vector.extract_strided_slice %31 {offsets = [0, 48], sizes = [2, 16], strides = [1, 1]} : vector<2x256xf32> to vector<2x16xf32>
    %c0_45 = arith.constant 0 : index
    %c0_46 = arith.constant 0 : index
    %c6 = arith.constant 6 : index
    %c3_47 = arith.constant 3 : index
    %59 = vector.load %arg6[%c0_45, %c0_46, %c6, %c3_47] : memref<2x2x22x22xf32, #tpu.memory_space<vmem>>, vector<1x2x1x16xf32>
    %60 = vector.shape_cast %59 : vector<1x2x1x16xf32> to vector<2x16xf32>
    %61 = vector.shape_cast %58 : vector<2x16xf32> to vector<1x2x1x16xf32>
    tpu.vector_store %arg6[%c0_45, %c0_46, %c6, %c3_47], %61 {strides = array<i32>} : memref<2x2x22x22xf32, #tpu.memory_space<vmem>>, vector<1x2x1x16xf32>,
    %62 = vector.extract_strided_slice %29 {offsets = [0, 48], sizes = [2, 16], strides = [1, 1]} : vector<2x256xf32> to vector<2x16xf32>
    %c1_48 = arith.constant 1 : index
    %c0_49 = arith.constant 0 : index
    %c6_50 = arith.constant 6 : index
    %c3_51 = arith.constant 3 : index
    %63 = vector.load %arg6[%c1_48, %c0_49, %c6_50, %c3_51] : memref<2x2x22x22xf32, #tpu.memory_space<vmem>>, vector<1x2x1x16xf32>
    %64 = vector.shape_cast %63 : vector<1x2x1x16xf32> to vector<2x16xf32>
    %65 = vector.shape_cast %62 : vector<2x16xf32> to vector<1x2x1x16xf32>
    tpu.vector_store %arg6[%c1_48, %c0_49, %c6_50, %c3_51], %65 {strides = array<i32>} : memref<2x2x22x22xf32, #tpu.memory_space<vmem>>, vector<1x2x1x16xf32>,
    %66 = vector.extract_strided_slice %31 {offsets = [0, 64], sizes = [2, 16], strides = [1, 1]} : vector<2x256xf32> to vector<2x16xf32>
    %c0_52 = arith.constant 0 : index
    %c0_53 = arith.constant 0 : index
    %c7 = arith.constant 7 : index
    %c3_54 = arith.constant 3 : index
    %67 = vector.load %arg6[%c0_52, %c0_53, %c7, %c3_54] : memref<2x2x22x22xf32, #tpu.memory_space<vmem>>, vector<1x2x1x16xf32>
    %68 = vector.shape_cast %67 : vector<1x2x1x16xf32> to vector<2x16xf32>
    %69 = vector.shape_cast %66 : vector<2x16xf32> to vector<1x2x1x16xf32>
    tpu.vector_store %arg6[%c0_52, %c0_53, %c7, %c3_54], %69 {strides = array<i32>} : memref<2x2x22x22xf32, #tpu.memory_space<vmem>>, vector<1x2x1x16xf32>,
    %70 = vector.extract_strided_slice %29 {offsets = [0, 64], sizes = [2, 16], strides = [1, 1]} : vector<2x256xf32> to vector<2x16xf32>
    %c1_55 = arith.constant 1 : index
    %c0_56 = arith.constant 0 : index
    %c7_57 = arith.constant 7 : index
    %c3_58 = arith.constant 3 : index
    %71 = vector.load %arg6[%c1_55, %c0_56, %c7_57, %c3_58] : memref<2x2x22x22xf32, #tpu.memory_space<vmem>>, vector<1x2x1x16xf32>
    %72 = vector.shape_cast %71 : vector<1x2x1x16xf32> to vector<2x16xf32>
    %73 = vector.shape_cast %70 : vector<2x16xf32> to vector<1x2x1x16xf32>
    tpu.vector_store %arg6[%c1_55, %c0_56, %c7_57, %c3_58], %73 {strides = array<i32>} : memref<2x2x22x22xf32, #tpu.memory_space<vmem>>, vector<1x2x1x16xf32>,
    %74 = vector.extract_strided_slice %31 {offsets = [0, 80], sizes = [2, 16], strides = [1, 1]} : vector<2x256xf32> to vector<2x16xf32>
    %c0_59 = arith.constant 0 : index
    %c0_60 = arith.constant 0 : index
    %c8 = arith.constant 8 : index
    %c3_61 = arith.constant 3 : index
    %75 = vector.load %arg6[%c0_59, %c0_60, %c8, %c3_61] : memref<2x2x22x22xf32, #tpu.memory_space<vmem>>, vector<1x2x1x16xf32>
    %76 = vector.shape_cast %75 : vector<1x2x1x16xf32> to vector<2x16xf32>
    %77 = vector.shape_cast %74 : vector<2x16xf32> to vector<1x2x1x16xf32>
    tpu.vector_store %arg6[%c0_59, %c0_60, %c8, %c3_61], %77 {strides = array<i32>} : memref<2x2x22x22xf32, #tpu.memory_space<vmem>>, vector<1x2x1x16xf32>,
    %78 = vector.extract_strided_slice %29 {offsets = [0, 80], sizes = [2, 16], strides = [1, 1]} : vector<2x256xf32> to vector<2x16xf32>
    %c1_62 = arith.constant 1 : index
    %c0_63 = arith.constant 0 : index
    %c8_64 = arith.constant 8 : index
    %c3_65 = arith.constant 3 : index
    %79 = vector.load %arg6[%c1_62, %c0_63, %c8_64, %c3_65] : memref<2x2x22x22xf32, #tpu.memory_space<vmem>>, vector<1x2x1x16xf32>
    %80 = vector.shape_cast %79 : vector<1x2x1x16xf32> to vector<2x16xf32>
    %81 = vector.shape_cast %78 : vector<2x16xf32> to vector<1x2x1x16xf32>
    tpu.vector_store %arg6[%c1_62, %c0_63, %c8_64, %c3_65], %81 {strides = array<i32>} : memref<2x2x22x22xf32, #tpu.memory_space<vmem>>, vector<1x2x1x16xf32>,
    %82 = vector.extract_strided_slice %31 {offsets = [0, 96], sizes = [2, 16], strides = [1, 1]} : vector<2x256xf32> to vector<2x16xf32>
    %c0_66 = arith.constant 0 : index
    %c0_67 = arith.constant 0 : index
    %c9 = arith.constant 9 : index
    %c3_68 = arith.constant 3 : index
    %83 = vector.load %arg6[%c0_66, %c0_67, %c9, %c3_68] : memref<2x2x22x22xf32, #tpu.memory_space<vmem>>, vector<1x2x1x16xf32>
    %84 = vector.shape_cast %83 : vector<1x2x1x16xf32> to vector<2x16xf32>
    %85 = vector.shape_cast %82 : vector<2x16xf32> to vector<1x2x1x16xf32>
    tpu.vector_store %arg6[%c0_66, %c0_67, %c9, %c3_68], %85 {strides = array<i32>} : memref<2x2x22x22xf32, #tpu.memory_space<vmem>>, vector<1x2x1x16xf32>,
    %86 = vector.extract_strided_slice %29 {offsets = [0, 96], sizes = [2, 16], strides = [1, 1]} : vector<2x256xf32> to vector<2x16xf32>
    %c1_69 = arith.constant 1 : index
    %c0_70 = arith.constant 0 : index
    %c9_71 = arith.constant 9 : index
    %c3_72 = arith.constant 3 : index
    %87 = vector.load %arg6[%c1_69, %c0_70, %c9_71, %c3_72] : memref<2x2x22x22xf32, #tpu.memory_space<vmem>>, vector<1x2x1x16xf32>
    %88 = vector.shape_cast %87 : vector<1x2x1x16xf32> to vector<2x16xf32>
    %89 = vector.shape_cast %86 : vector<2x16xf32> to vector<1x2x1x16xf32>
    tpu.vector_store %arg6[%c1_69, %c0_70, %c9_71, %c3_72], %89 {strides = array<i32>} : memref<2x2x22x22xf32, #tpu.memory_space<vmem>>, vector<1x2x1x16xf32>,
    %90 = vector.extract_strided_slice %31 {offsets = [0, 112], sizes = [2, 16], strides = [1, 1]} : vector<2x256xf32> to vector<2x16xf32>
    %c0_73 = arith.constant 0 : index
    %c0_74 = arith.constant 0 : index
    %c10 = arith.constant 10 : index
    %c3_75 = arith.constant 3 : index
    %91 = vector.load %arg6[%c0_73, %c0_74, %c10, %c3_75] : memref<2x2x22x22xf32, #tpu.memory_space<vmem>>, vector<1x2x1x16xf32>
    %92 = vector.shape_cast %91 : vector<1x2x1x16xf32> to vector<2x16xf32>
    %93 = vector.shape_cast %90 : vector<2x16xf32> to vector<1x2x1x16xf32>
    tpu.vector_store %arg6[%c0_73, %c0_74, %c10, %c3_75], %93 {strides = array<i32>} : memref<2x2x22x22xf32, #tpu.memory_space<vmem>>, vector<1x2x1x16xf32>,
    %94 = vector.extract_strided_slice %29 {offsets = [0, 112], sizes = [2, 16], strides = [1, 1]} : vector<2x256xf32> to vector<2x16xf32>
    %c1_76 = arith.constant 1 : index
    %c0_77 = arith.constant 0 : index
    %c10_78 = arith.constant 10 : index
    %c3_79 = arith.constant 3 : index
    %95 = vector.load %arg6[%c1_76, %c0_77, %c10_78, %c3_79] : memref<2x2x22x22xf32, #tpu.memory_space<vmem>>, vector<1x2x1x16xf32>
    %96 = vector.shape_cast %95 : vector<1x2x1x16xf32> to vector<2x16xf32>
    %97 = vector.shape_cast %94 : vector<2x16xf32> to vector<1x2x1x16xf32>
    tpu.vector_store %arg6[%c1_76, %c0_77, %c10_78, %c3_79], %97 {strides = array<i32>} : memref<2x2x22x22xf32, #tpu.memory_space<vmem>>, vector<1x2x1x16xf32>,
    %98 = vector.extract_strided_slice %31 {offsets = [0, 128], sizes = [2, 16], strides = [1, 1]} : vector<2x256xf32> to vector<2x16xf32>
    %c0_80 = arith.constant 0 : index
    %c0_81 = arith.constant 0 : index
    %c11 = arith.constant 11 : index
    %c3_82 = arith.constant 3 : index
    %99 = vector.load %arg6[%c0_80, %c0_81, %c11, %c3_82] : memref<2x2x22x22xf32, #tpu.memory_space<vmem>>, vector<1x2x1x16xf32>
    %100 = vector.shape_cast %99 : vector<1x2x1x16xf32> to vector<2x16xf32>
    %101 = vector.shape_cast %98 : vector<2x16xf32> to vector<1x2x1x16xf32>
    tpu.vector_store %arg6[%c0_80, %c0_81, %c11, %c3_82], %101 {strides = array<i32>} : memref<2x2x22x22xf32, #tpu.memory_space<vmem>>, vector<1x2x1x16xf32>,
    %102 = vector.extract_strided_slice %29 {offsets = [0, 128], sizes = [2, 16], strides = [1, 1]} : vector<2x256xf32> to vector<2x16xf32>
    %c1_83 = arith.constant 1 : index
    %c0_84 = arith.constant 0 : index
    %c11_85 = arith.constant 11 : index
    %c3_86 = arith.constant 3 : index
    %103 = vector.load %arg6[%c1_83, %c0_84, %c11_85, %c3_86] : memref<2x2x22x22xf32, #tpu.memory_space<vmem>>, vector<1x2x1x16xf32>
    %104 = vector.shape_cast %103 : vector<1x2x1x16xf32> to vector<2x16xf32>
    %105 = vector.shape_cast %102 : vector<2x16xf32> to vector<1x2x1x16xf32>
    tpu.vector_store %arg6[%c1_83, %c0_84, %c11_85, %c3_86], %105 {strides = array<i32>} : memref<2x2x22x22xf32, #tpu.memory_space<vmem>>, vector<1x2x1x16xf32>,
    %106 = vector.extract_strided_slice %31 {offsets = [0, 144], sizes = [2, 16], strides = [1, 1]} : vector<2x256xf32> to vector<2x16xf32>
    %c0_87 = arith.constant 0 : index
    %c0_88 = arith.constant 0 : index
    %c12 = arith.constant 12 : index
    %c3_89 = arith.constant 3 : index
    %107 = vector.load %arg6[%c0_87, %c0_88, %c12, %c3_89] : memref<2x2x22x22xf32, #tpu.memory_space<vmem>>, vector<1x2x1x16xf32>
    %108 = vector.shape_cast %107 : vector<1x2x1x16xf32> to vector<2x16xf32>
    %109 = vector.shape_cast %106 : vector<2x16xf32> to vector<1x2x1x16xf32>
    tpu.vector_store %arg6[%c0_87, %c0_88, %c12, %c3_89], %109 {strides = array<i32>} : memref<2x2x22x22xf32, #tpu.memory_space<vmem>>, vector<1x2x1x16xf32>,
    %110 = vector.extract_strided_slice %29 {offsets = [0, 144], sizes = [2, 16], strides = [1, 1]} : vector<2x256xf32> to vector<2x16xf32>
    %c1_90 = arith.constant 1 : index
    %c0_91 = arith.constant 0 : index
    %c12_92 = arith.constant 12 : index
    %c3_93 = arith.constant 3 : index
    %111 = vector.load %arg6[%c1_90, %c0_91, %c12_92, %c3_93] : memref<2x2x22x22xf32, #tpu.memory_space<vmem>>, vector<1x2x1x16xf32>
    %112 = vector.shape_cast %111 : vector<1x2x1x16xf32> to vector<2x16xf32>
    %113 = vector.shape_cast %110 : vector<2x16xf32> to vector<1x2x1x16xf32>
    tpu.vector_store %arg6[%c1_90, %c0_91, %c12_92, %c3_93], %113 {strides = array<i32>} : memref<2x2x22x22xf32, #tpu.memory_space<vmem>>, vector<1x2x1x16xf32>,
    %114 = vector.extract_strided_slice %31 {offsets = [0, 160], sizes = [2, 16], strides = [1, 1]} : vector<2x256xf32> to vector<2x16xf32>
    %c0_94 = arith.constant 0 : index
    %c0_95 = arith.constant 0 : index
    %c13 = arith.constant 13 : index
    %c3_96 = arith.constant 3 : index
    %115 = vector.load %arg6[%c0_94, %c0_95, %c13, %c3_96] : memref<2x2x22x22xf32, #tpu.memory_space<vmem>>, vector<1x2x1x16xf32>
    %116 = vector.shape_cast %115 : vector<1x2x1x16xf32> to vector<2x16xf32>
    %117 = vector.shape_cast %114 : vector<2x16xf32> to vector<1x2x1x16xf32>
    tpu.vector_store %arg6[%c0_94, %c0_95, %c13, %c3_96], %117 {strides = array<i32>} : memref<2x2x22x22xf32, #tpu.memory_space<vmem>>, vector<1x2x1x16xf32>,
    %118 = vector.extract_strided_slice %29 {offsets = [0, 160], sizes = [2, 16], strides = [1, 1]} : vector<2x256xf32> to vector<2x16xf32>
    %c1_97 = arith.constant 1 : index
    %c0_98 = arith.constant 0 : index
    %c13_99 = arith.constant 13 : index
    %c3_100 = arith.constant 3 : index
    %119 = vector.load %arg6[%c1_97, %c0_98, %c13_99, %c3_100] : memref<2x2x22x22xf32, #tpu.memory_space<vmem>>, vector<1x2x1x16xf32>
    %120 = vector.shape_cast %119 : vector<1x2x1x16xf32> to vector<2x16xf32>
    %121 = vector.shape_cast %118 : vector<2x16xf32> to vector<1x2x1x16xf32>
    tpu.vector_store %arg6[%c1_97, %c0_98, %c13_99, %c3_100], %121 {strides = array<i32>} : memref<2x2x22x22xf32, #tpu.memory_space<vmem>>, vector<1x2x1x16xf32>,
    %122 = vector.extract_strided_slice %31 {offsets = [0, 176], sizes = [2, 16], strides = [1, 1]} : vector<2x256xf32> to vector<2x16xf32>
    %c0_101 = arith.constant 0 : index
    %c0_102 = arith.constant 0 : index
    %c14 = arith.constant 14 : index
    %c3_103 = arith.constant 3 : index
    %123 = vector.load %arg6[%c0_101, %c0_102, %c14, %c3_103] : memref<2x2x22x22xf32, #tpu.memory_space<vmem>>, vector<1x2x1x16xf32>
    %124 = vector.shape_cast %123 : vector<1x2x1x16xf32> to vector<2x16xf32>
    %125 = vector.shape_cast %122 : vector<2x16xf32> to vector<1x2x1x16xf32>
    tpu.vector_store %arg6[%c0_101, %c0_102, %c14, %c3_103], %125 {strides = array<i32>} : memref<2x2x22x22xf32, #tpu.memory_space<vmem>>, vector<1x2x1x16xf32>,
    %126 = vector.extract_strided_slice %29 {offsets = [0, 176], sizes = [2, 16], strides = [1, 1]} : vector<2x256xf32> to vector<2x16xf32>
    %c1_104 = arith.constant 1 : index
    %c0_105 = arith.constant 0 : index
    %c14_106 = arith.constant 14 : index
    %c3_107 = arith.constant 3 : index
    %127 = vector.load %arg6[%c1_104, %c0_105, %c14_106, %c3_107] : memref<2x2x22x22xf32, #tpu.memory_space<vmem>>, vector<1x2x1x16xf32>
    %128 = vector.shape_cast %127 : vector<1x2x1x16xf32> to vector<2x16xf32>
    %129 = vector.shape_cast %126 : vector<2x16xf32> to vector<1x2x1x16xf32>
    tpu.vector_store %arg6[%c1_104, %c0_105, %c14_106, %c3_107], %129 {strides = array<i32>} : memref<2x2x22x22xf32, #tpu.memory_space<vmem>>, vector<1x2x1x16xf32>,
    %130 = vector.extract_strided_slice %31 {offsets = [0, 192], sizes = [2, 16], strides = [1, 1]} : vector<2x256xf32> to vector<2x16xf32>
    %c0_108 = arith.constant 0 : index
    %c0_109 = arith.constant 0 : index
    %c15 = arith.constant 15 : index
    %c3_110 = arith.constant 3 : index
    %131 = vector.load %arg6[%c0_108, %c0_109, %c15, %c3_110] : memref<2x2x22x22xf32, #tpu.memory_space<vmem>>, vector<1x2x1x16xf32>
    %132 = vector.shape_cast %131 : vector<1x2x1x16xf32> to vector<2x16xf32>
    %133 = vector.shape_cast %130 : vector<2x16xf32> to vector<1x2x1x16xf32>
    tpu.vector_store %arg6[%c0_108, %c0_109, %c15, %c3_110], %133 {strides = array<i32>} : memref<2x2x22x22xf32, #tpu.memory_space<vmem>>, vector<1x2x1x16xf32>,
    %134 = vector.extract_strided_slice %29 {offsets = [0, 192], sizes = [2, 16], strides = [1, 1]} : vector<2x256xf32> to vector<2x16xf32>
    %c1_111 = arith.constant 1 : index
    %c0_112 = arith.constant 0 : index
    %c15_113 = arith.constant 15 : index
    %c3_114 = arith.constant 3 : index
    %135 = vector.load %arg6[%c1_111, %c0_112, %c15_113, %c3_114] : memref<2x2x22x22xf32, #tpu.memory_space<vmem>>, vector<1x2x1x16xf32>
    %136 = vector.shape_cast %135 : vector<1x2x1x16xf32> to vector<2x16xf32>
    %137 = vector.shape_cast %134 : vector<2x16xf32> to vector<1x2x1x16xf32>
    tpu.vector_store %arg6[%c1_111, %c0_112, %c15_113, %c3_114], %137 {strides = array<i32>} : memref<2x2x22x22xf32, #tpu.memory_space<vmem>>, vector<1x2x1x16xf32>,
    %138 = vector.extract_strided_slice %31 {offsets = [0, 208], sizes = [2, 16], strides = [1, 1]} : vector<2x256xf32> to vector<2x16xf32>
    %c0_115 = arith.constant 0 : index
    %c0_116 = arith.constant 0 : index
    %c16 = arith.constant 16 : index
    %c3_117 = arith.constant 3 : index
    %139 = vector.load %arg6[%c0_115, %c0_116, %c16, %c3_117] : memref<2x2x22x22xf32, #tpu.memory_space<vmem>>, vector<1x2x1x16xf32>
    %140 = vector.shape_cast %139 : vector<1x2x1x16xf32> to vector<2x16xf32>
    %141 = vector.shape_cast %138 : vector<2x16xf32> to vector<1x2x1x16xf32>
    tpu.vector_store %arg6[%c0_115, %c0_116, %c16, %c3_117], %141 {strides = array<i32>} : memref<2x2x22x22xf32, #tpu.memory_space<vmem>>, vector<1x2x1x16xf32>,
    %142 = vector.extract_strided_slice %29 {offsets = [0, 208], sizes = [2, 16], strides = [1, 1]} : vector<2x256xf32> to vector<2x16xf32>
    %c1_118 = arith.constant 1 : index
    %c0_119 = arith.constant 0 : index
    %c16_120 = arith.constant 16 : index
    %c3_121 = arith.constant 3 : index
    %143 = vector.load %arg6[%c1_118, %c0_119, %c16_120, %c3_121] : memref<2x2x22x22xf32, #tpu.memory_space<vmem>>, vector<1x2x1x16xf32>
    %144 = vector.shape_cast %143 : vector<1x2x1x16xf32> to vector<2x16xf32>
    %145 = vector.shape_cast %142 : vector<2x16xf32> to vector<1x2x1x16xf32>
    tpu.vector_store %arg6[%c1_118, %c0_119, %c16_120, %c3_121], %145 {strides = array<i32>} : memref<2x2x22x22xf32, #tpu.memory_space<vmem>>, vector<1x2x1x16xf32>,
    %146 = vector.extract_strided_slice %31 {offsets = [0, 224], sizes = [2, 16], strides = [1, 1]} : vector<2x256xf32> to vector<2x16xf32>
    %c0_122 = arith.constant 0 : index
    %c0_123 = arith.constant 0 : index
    %c17 = arith.constant 17 : index
    %c3_124 = arith.constant 3 : index
    %147 = vector.load %arg6[%c0_122, %c0_123, %c17, %c3_124] : memref<2x2x22x22xf32, #tpu.memory_space<vmem>>, vector<1x2x1x16xf32>
    %148 = vector.shape_cast %147 : vector<1x2x1x16xf32> to vector<2x16xf32>
    %149 = vector.shape_cast %146 : vector<2x16xf32> to vector<1x2x1x16xf32>
    tpu.vector_store %arg6[%c0_122, %c0_123, %c17, %c3_124], %149 {strides = array<i32>} : memref<2x2x22x22xf32, #tpu.memory_space<vmem>>, vector<1x2x1x16xf32>,
    %150 = vector.extract_strided_slice %29 {offsets = [0, 224], sizes = [2, 16], strides = [1, 1]} : vector<2x256xf32> to vector<2x16xf32>
    %c1_125 = arith.constant 1 : index
    %c0_126 = arith.constant 0 : index
    %c17_127 = arith.constant 17 : index
    %c3_128 = arith.constant 3 : index
    %151 = vector.load %arg6[%c1_125, %c0_126, %c17_127, %c3_128] : memref<2x2x22x22xf32, #tpu.memory_space<vmem>>, vector<1x2x1x16xf32>
    %152 = vector.shape_cast %151 : vector<1x2x1x16xf32> to vector<2x16xf32>
    %153 = vector.shape_cast %150 : vector<2x16xf32> to vector<1x2x1x16xf32>
    tpu.vector_store %arg6[%c1_125, %c0_126, %c17_127, %c3_128], %153 {strides = array<i32>} : memref<2x2x22x22xf32, #tpu.memory_space<vmem>>, vector<1x2x1x16xf32>,
    %154 = vector.extract_strided_slice %31 {offsets = [0, 240], sizes = [2, 16], strides = [1, 1]} : vector<2x256xf32> to vector<2x16xf32>
    %c0_129 = arith.constant 0 : index
    %c0_130 = arith.constant 0 : index
    %c18 = arith.constant 18 : index
    %c3_131 = arith.constant 3 : index
    %155 = vector.load %arg6[%c0_129, %c0_130, %c18, %c3_131] : memref<2x2x22x22xf32, #tpu.memory_space<vmem>>, vector<1x2x1x16xf32>
    %156 = vector.shape_cast %155 : vector<1x2x1x16xf32> to vector<2x16xf32>
    %157 = vector.shape_cast %154 : vector<2x16xf32> to vector<1x2x1x16xf32>
    tpu.vector_store %arg6[%c0_129, %c0_130, %c18, %c3_131], %157 {strides = array<i32>} : memref<2x2x22x22xf32, #tpu.memory_space<vmem>>, vector<1x2x1x16xf32>,
    %158 = vector.extract_strided_slice %29 {offsets = [0, 240], sizes = [2, 16], strides = [1, 1]} : vector<2x256xf32> to vector<2x16xf32>
    %c1_132 = arith.constant 1 : index
    %c0_133 = arith.constant 0 : index
    %c18_134 = arith.constant 18 : index
    %c3_135 = arith.constant 3 : index
    %159 = vector.load %arg6[%c1_132, %c0_133, %c18_134, %c3_135] : memref<2x2x22x22xf32, #tpu.memory_space<vmem>>, vector<1x2x1x16xf32>
    %160 = vector.shape_cast %159 : vector<1x2x1x16xf32> to vector<2x16xf32>
    %161 = vector.shape_cast %158 : vector<2x16xf32> to vector<1x2x1x16xf32>
    tpu.vector_store %arg6[%c1_132, %c0_133, %c18_134, %c3_135], %161 {strides = array<i32>} : memref<2x2x22x22xf32, #tpu.memory_space<vmem>>, vector<1x2x1x16xf32>,
    %cst_136 = arith.constant 0.000000e+00 : f32
    %162 = vector.broadcast %cst_136 : f32 to vector<2x16x16xf32>
    %cst_137 = arith.constant 0.000000e+00 : f32
    %163 = vector.broadcast %cst_137 : f32 to vector<2x16x16xf32>
    %cst_138 = arith.constant 0.000000e+00 : f32
    %164 = vector.broadcast %cst_138 : f32 to vector<2x16x16xf32>
    %cst_139 = arith.constant 0.000000e+00 : f32
    %165 = vector.broadcast %cst_139 : f32 to vector<2x16x16xf32>
    %c0_140 = arith.constant 0 : index
    %c0_141 = arith.constant 0 : index
    %c0_142 = arith.constant 0 : index
    %c0_143 = arith.constant 0 : index
    %166 = vector.load %arg6[%c0_140, %c0_141, %c0_142, %c0_143] : memref<2x2x22x22xf32, #tpu.memory_space<vmem>>, vector<1x2x16x22xf32>
    %167 = vector.shape_cast %166 : vector<1x2x16x22xf32> to vector<2x16x22xf32>
    %c0_144 = arith.constant 0 : index
    %168 = memref.load %arg1[%c0_144] : memref<98xf32, #tpu.memory_space<smem>>
    %169 = vector.extract_strided_slice %167 {offsets = [0, 0, 0], sizes = [2, 16, 16], strides = [1, 1, 1]} : vector<2x16x22xf32> to vector<2x16x16xf32>
    %170 = vector.broadcast %168 : f32 to vector<2x16x16xf32>
    %171 = arith.mulf %170, %169 : vector<2x16x16xf32>
    %172 = arith.addf %162, %171 : vector<2x16x16xf32>
    %c1_145 = arith.constant 1 : index
    %173 = memref.load %arg1[%c1_145] : memref<98xf32, #tpu.memory_space<smem>>
    %174 = vector.extract_strided_slice %167 {offsets = [0, 0, 1], sizes = [2, 16, 16], strides = [1, 1, 1]} : vector<2x16x22xf32> to vector<2x16x16xf32>
    %175 = vector.broadcast %173 : f32 to vector<2x16x16xf32>
    %176 = arith.mulf %175, %174 : vector<2x16x16xf32>
    %177 = arith.addf %172, %176 : vector<2x16x16xf32>
    %c2 = arith.constant 2 : index
    %178 = memref.load %arg1[%c2] : memref<98xf32, #tpu.memory_space<smem>>
    %179 = vector.extract_strided_slice %167 {offsets = [0, 0, 2], sizes = [2, 16, 16], strides = [1, 1, 1]} : vector<2x16x22xf32> to vector<2x16x16xf32>
    %180 = vector.broadcast %178 : f32 to vector<2x16x16xf32>
    %181 = arith.mulf %180, %179 : vector<2x16x16xf32>
    %182 = arith.addf %177, %181 : vector<2x16x16xf32>
    %c3_146 = arith.constant 3 : index
    %183 = memref.load %arg1[%c3_146] : memref<98xf32, #tpu.memory_space<smem>>
    %184 = vector.extract_strided_slice %167 {offsets = [0, 0, 3], sizes = [2, 16, 16], strides = [1, 1, 1]} : vector<2x16x22xf32> to vector<2x16x16xf32>
    %185 = vector.broadcast %183 : f32 to vector<2x16x16xf32>
    %186 = arith.mulf %185, %184 : vector<2x16x16xf32>
    %187 = arith.addf %182, %186 : vector<2x16x16xf32>
    %c4_147 = arith.constant 4 : index
    %188 = memref.load %arg1[%c4_147] : memref<98xf32, #tpu.memory_space<smem>>
    %189 = vector.extract_strided_slice %167 {offsets = [0, 0, 4], sizes = [2, 16, 16], strides = [1, 1, 1]} : vector<2x16x22xf32> to vector<2x16x16xf32>
    %190 = vector.broadcast %188 : f32 to vector<2x16x16xf32>
    %191 = arith.mulf %190, %189 : vector<2x16x16xf32>
    %192 = arith.addf %187, %191 : vector<2x16x16xf32>
    %c5_148 = arith.constant 5 : index
    %193 = memref.load %arg1[%c5_148] : memref<98xf32, #tpu.memory_space<smem>>
    %194 = vector.extract_strided_slice %167 {offsets = [0, 0, 5], sizes = [2, 16, 16], strides = [1, 1, 1]} : vector<2x16x22xf32> to vector<2x16x16xf32>
    %195 = vector.broadcast %193 : f32 to vector<2x16x16xf32>
    %196 = arith.mulf %195, %194 : vector<2x16x16xf32>
    %197 = arith.addf %192, %196 : vector<2x16x16xf32>
    %c6_149 = arith.constant 6 : index
    %198 = memref.load %arg1[%c6_149] : memref<98xf32, #tpu.memory_space<smem>>
    %199 = vector.extract_strided_slice %167 {offsets = [0, 0, 6], sizes = [2, 16, 16], strides = [1, 1, 1]} : vector<2x16x22xf32> to vector<2x16x16xf32>
    %200 = vector.broadcast %198 : f32 to vector<2x16x16xf32>
    %201 = arith.mulf %200, %199 : vector<2x16x16xf32>
    %202 = arith.addf %197, %201 : vector<2x16x16xf32>
    %c0_150 = arith.constant 0 : index
    %c0_151 = arith.constant 0 : index
    %c1_152 = arith.constant 1 : index
    %c0_153 = arith.constant 0 : index
    %203 = vector.load %arg6[%c0_150, %c0_151, %c1_152, %c0_153] : memref<2x2x22x22xf32, #tpu.memory_space<vmem>>, vector<1x2x16x22xf32>
    %204 = vector.shape_cast %203 : vector<1x2x16x22xf32> to vector<2x16x22xf32>
    %c7_154 = arith.constant 7 : index
    %205 = memref.load %arg1[%c7_154] : memref<98xf32, #tpu.memory_space<smem>>
    %206 = vector.extract_strided_slice %204 {offsets = [0, 0, 0], sizes = [2, 16, 16], strides = [1, 1, 1]} : vector<2x16x22xf32> to vector<2x16x16xf32>
    %207 = vector.broadcast %205 : f32 to vector<2x16x16xf32>
    %208 = arith.mulf %207, %206 : vector<2x16x16xf32>
    %209 = arith.addf %163, %208 : vector<2x16x16xf32>
    %c8_155 = arith.constant 8 : index
    %210 = memref.load %arg1[%c8_155] : memref<98xf32, #tpu.memory_space<smem>>
    %211 = vector.extract_strided_slice %204 {offsets = [0, 0, 1], sizes = [2, 16, 16], strides = [1, 1, 1]} : vector<2x16x22xf32> to vector<2x16x16xf32>
    %212 = vector.broadcast %210 : f32 to vector<2x16x16xf32>
    %213 = arith.mulf %212, %211 : vector<2x16x16xf32>
    %214 = arith.addf %209, %213 : vector<2x16x16xf32>
    %c9_156 = arith.constant 9 : index
    %215 = memref.load %arg1[%c9_156] : memref<98xf32, #tpu.memory_space<smem>>
    %216 = vector.extract_strided_slice %204 {offsets = [0, 0, 2], sizes = [2, 16, 16], strides = [1, 1, 1]} : vector<2x16x22xf32> to vector<2x16x16xf32>
    %217 = vector.broadcast %215 : f32 to vector<2x16x16xf32>
    %218 = arith.mulf %217, %216 : vector<2x16x16xf32>
    %219 = arith.addf %214, %218 : vector<2x16x16xf32>
    %c10_157 = arith.constant 10 : index
    %220 = memref.load %arg1[%c10_157] : memref<98xf32, #tpu.memory_space<smem>>
    %221 = vector.extract_strided_slice %204 {offsets = [0, 0, 3], sizes = [2, 16, 16], strides = [1, 1, 1]} : vector<2x16x22xf32> to vector<2x16x16xf32>
    %222 = vector.broadcast %220 : f32 to vector<2x16x16xf32>
    %223 = arith.mulf %222, %221 : vector<2x16x16xf32>
    %224 = arith.addf %219, %223 : vector<2x16x16xf32>
    %c11_158 = arith.constant 11 : index
    %225 = memref.load %arg1[%c11_158] : memref<98xf32, #tpu.memory_space<smem>>
    %226 = vector.extract_strided_slice %204 {offsets = [0, 0, 4], sizes = [2, 16, 16], strides = [1, 1, 1]} : vector<2x16x22xf32> to vector<2x16x16xf32>
    %227 = vector.broadcast %225 : f32 to vector<2x16x16xf32>
    %228 = arith.mulf %227, %226 : vector<2x16x16xf32>
    %229 = arith.addf %224, %228 : vector<2x16x16xf32>
    %c12_159 = arith.constant 12 : index
    %230 = memref.load %arg1[%c12_159] : memref<98xf32, #tpu.memory_space<smem>>
    %231 = vector.extract_strided_slice %204 {offsets = [0, 0, 5], sizes = [2, 16, 16], strides = [1, 1, 1]} : vector<2x16x22xf32> to vector<2x16x16xf32>
    %232 = vector.broadcast %230 : f32 to vector<2x16x16xf32>
    %233 = arith.mulf %232, %231 : vector<2x16x16xf32>
    %234 = arith.addf %229, %233 : vector<2x16x16xf32>
    %c13_160 = arith.constant 13 : index
    %235 = memref.load %arg1[%c13_160] : memref<98xf32, #tpu.memory_space<smem>>
    %236 = vector.extract_strided_slice %204 {offsets = [0, 0, 6], sizes = [2, 16, 16], strides = [1, 1, 1]} : vector<2x16x22xf32> to vector<2x16x16xf32>
    %237 = vector.broadcast %235 : f32 to vector<2x16x16xf32>
    %238 = arith.mulf %237, %236 : vector<2x16x16xf32>
    %239 = arith.addf %234, %238 : vector<2x16x16xf32>
    %c0_161 = arith.constant 0 : index
    %c0_162 = arith.constant 0 : index
    %c2_163 = arith.constant 2 : index
    %c0_164 = arith.constant 0 : index
    %240 = vector.load %arg6[%c0_161, %c0_162, %c2_163, %c0_164] : memref<2x2x22x22xf32, #tpu.memory_space<vmem>>, vector<1x2x16x22xf32>
    %241 = vector.shape_cast %240 : vector<1x2x16x22xf32> to vector<2x16x22xf32>
    %c14_165 = arith.constant 14 : index
    %242 = memref.load %arg1[%c14_165] : memref<98xf32, #tpu.memory_space<smem>>
    %243 = vector.extract_strided_slice %241 {offsets = [0, 0, 0], sizes = [2, 16, 16], strides = [1, 1, 1]} : vector<2x16x22xf32> to vector<2x16x16xf32>
    %244 = vector.broadcast %242 : f32 to vector<2x16x16xf32>
    %245 = arith.mulf %244, %243 : vector<2x16x16xf32>
    %246 = arith.addf %202, %245 : vector<2x16x16xf32>
    %c15_166 = arith.constant 15 : index
    %247 = memref.load %arg1[%c15_166] : memref<98xf32, #tpu.memory_space<smem>>
    %248 = vector.extract_strided_slice %241 {offsets = [0, 0, 1], sizes = [2, 16, 16], strides = [1, 1, 1]} : vector<2x16x22xf32> to vector<2x16x16xf32>
    %249 = vector.broadcast %247 : f32 to vector<2x16x16xf32>
    %250 = arith.mulf %249, %248 : vector<2x16x16xf32>
    %251 = arith.addf %246, %250 : vector<2x16x16xf32>
    %c16_167 = arith.constant 16 : index
    %252 = memref.load %arg1[%c16_167] : memref<98xf32, #tpu.memory_space<smem>>
    %253 = vector.extract_strided_slice %241 {offsets = [0, 0, 2], sizes = [2, 16, 16], strides = [1, 1, 1]} : vector<2x16x22xf32> to vector<2x16x16xf32>
    %254 = vector.broadcast %252 : f32 to vector<2x16x16xf32>
    %255 = arith.mulf %254, %253 : vector<2x16x16xf32>
    %256 = arith.addf %251, %255 : vector<2x16x16xf32>
    %c17_168 = arith.constant 17 : index
    %257 = memref.load %arg1[%c17_168] : memref<98xf32, #tpu.memory_space<smem>>
    %258 = vector.extract_strided_slice %241 {offsets = [0, 0, 3], sizes = [2, 16, 16], strides = [1, 1, 1]} : vector<2x16x22xf32> to vector<2x16x16xf32>
    %259 = vector.broadcast %257 : f32 to vector<2x16x16xf32>
    %260 = arith.mulf %259, %258 : vector<2x16x16xf32>
    %261 = arith.addf %256, %260 : vector<2x16x16xf32>
    %c18_169 = arith.constant 18 : index
    %262 = memref.load %arg1[%c18_169] : memref<98xf32, #tpu.memory_space<smem>>
    %263 = vector.extract_strided_slice %241 {offsets = [0, 0, 4], sizes = [2, 16, 16], strides = [1, 1, 1]} : vector<2x16x22xf32> to vector<2x16x16xf32>
    %264 = vector.broadcast %262 : f32 to vector<2x16x16xf32>
    %265 = arith.mulf %264, %263 : vector<2x16x16xf32>
    %266 = arith.addf %261, %265 : vector<2x16x16xf32>
    %c19 = arith.constant 19 : index
    %267 = memref.load %arg1[%c19] : memref<98xf32, #tpu.memory_space<smem>>
    %268 = vector.extract_strided_slice %241 {offsets = [0, 0, 5], sizes = [2, 16, 16], strides = [1, 1, 1]} : vector<2x16x22xf32> to vector<2x16x16xf32>
    %269 = vector.broadcast %267 : f32 to vector<2x16x16xf32>
    %270 = arith.mulf %269, %268 : vector<2x16x16xf32>
    %271 = arith.addf %266, %270 : vector<2x16x16xf32>
    %c20 = arith.constant 20 : index
    %272 = memref.load %arg1[%c20] : memref<98xf32, #tpu.memory_space<smem>>
    %273 = vector.extract_strided_slice %241 {offsets = [0, 0, 6], sizes = [2, 16, 16], strides = [1, 1, 1]} : vector<2x16x22xf32> to vector<2x16x16xf32>
    %274 = vector.broadcast %272 : f32 to vector<2x16x16xf32>
    %275 = arith.mulf %274, %273 : vector<2x16x16xf32>
    %276 = arith.addf %271, %275 : vector<2x16x16xf32>
    %c0_170 = arith.constant 0 : index
    %c0_171 = arith.constant 0 : index
    %c3_172 = arith.constant 3 : index
    %c0_173 = arith.constant 0 : index
    %277 = vector.load %arg6[%c0_170, %c0_171, %c3_172, %c0_173] : memref<2x2x22x22xf32, #tpu.memory_space<vmem>>, vector<1x2x16x22xf32>
    %278 = vector.shape_cast %277 : vector<1x2x16x22xf32> to vector<2x16x22xf32>
    %c21 = arith.constant 21 : index
    %279 = memref.load %arg1[%c21] : memref<98xf32, #tpu.memory_space<smem>>
    %280 = vector.extract_strided_slice %278 {offsets = [0, 0, 0], sizes = [2, 16, 16], strides = [1, 1, 1]} : vector<2x16x22xf32> to vector<2x16x16xf32>
    %281 = vector.broadcast %279 : f32 to vector<2x16x16xf32>
    %282 = arith.mulf %281, %280 : vector<2x16x16xf32>
    %283 = arith.addf %239, %282 : vector<2x16x16xf32>
    %c22 = arith.constant 22 : index
    %284 = memref.load %arg1[%c22] : memref<98xf32, #tpu.memory_space<smem>>
    %285 = vector.extract_strided_slice %278 {offsets = [0, 0, 1], sizes = [2, 16, 16], strides = [1, 1, 1]} : vector<2x16x22xf32> to vector<2x16x16xf32>
    %286 = vector.broadcast %284 : f32 to vector<2x16x16xf32>
    %287 = arith.mulf %286, %285 : vector<2x16x16xf32>
    %288 = arith.addf %283, %287 : vector<2x16x16xf32>
    %c23 = arith.constant 23 : index
    %289 = memref.load %arg1[%c23] : memref<98xf32, #tpu.memory_space<smem>>
    %290 = vector.extract_strided_slice %278 {offsets = [0, 0, 2], sizes = [2, 16, 16], strides = [1, 1, 1]} : vector<2x16x22xf32> to vector<2x16x16xf32>
    %291 = vector.broadcast %289 : f32 to vector<2x16x16xf32>
    %292 = arith.mulf %291, %290 : vector<2x16x16xf32>
    %293 = arith.addf %288, %292 : vector<2x16x16xf32>
    %c24 = arith.constant 24 : index
    %294 = memref.load %arg1[%c24] : memref<98xf32, #tpu.memory_space<smem>>
    %295 = vector.extract_strided_slice %278 {offsets = [0, 0, 3], sizes = [2, 16, 16], strides = [1, 1, 1]} : vector<2x16x22xf32> to vector<2x16x16xf32>
    %296 = vector.broadcast %294 : f32 to vector<2x16x16xf32>
    %297 = arith.mulf %296, %295 : vector<2x16x16xf32>
    %298 = arith.addf %293, %297 : vector<2x16x16xf32>
    %c25 = arith.constant 25 : index
    %299 = memref.load %arg1[%c25] : memref<98xf32, #tpu.memory_space<smem>>
    %300 = vector.extract_strided_slice %278 {offsets = [0, 0, 4], sizes = [2, 16, 16], strides = [1, 1, 1]} : vector<2x16x22xf32> to vector<2x16x16xf32>
    %301 = vector.broadcast %299 : f32 to vector<2x16x16xf32>
    %302 = arith.mulf %301, %300 : vector<2x16x16xf32>
    %303 = arith.addf %298, %302 : vector<2x16x16xf32>
    %c26 = arith.constant 26 : index
    %304 = memref.load %arg1[%c26] : memref<98xf32, #tpu.memory_space<smem>>
    %305 = vector.extract_strided_slice %278 {offsets = [0, 0, 5], sizes = [2, 16, 16], strides = [1, 1, 1]} : vector<2x16x22xf32> to vector<2x16x16xf32>
    %306 = vector.broadcast %304 : f32 to vector<2x16x16xf32>
    %307 = arith.mulf %306, %305 : vector<2x16x16xf32>
    %308 = arith.addf %303, %307 : vector<2x16x16xf32>
    %c27 = arith.constant 27 : index
    %309 = memref.load %arg1[%c27] : memref<98xf32, #tpu.memory_space<smem>>
    %310 = vector.extract_strided_slice %278 {offsets = [0, 0, 6], sizes = [2, 16, 16], strides = [1, 1, 1]} : vector<2x16x22xf32> to vector<2x16x16xf32>
    %311 = vector.broadcast %309 : f32 to vector<2x16x16xf32>
    %312 = arith.mulf %311, %310 : vector<2x16x16xf32>
    %313 = arith.addf %308, %312 : vector<2x16x16xf32>
    %c0_174 = arith.constant 0 : index
    %c0_175 = arith.constant 0 : index
    %c4_176 = arith.constant 4 : index
    %c0_177 = arith.constant 0 : index
    %314 = vector.load %arg6[%c0_174, %c0_175, %c4_176, %c0_177] : memref<2x2x22x22xf32, #tpu.memory_space<vmem>>, vector<1x2x16x22xf32>
    %315 = vector.shape_cast %314 : vector<1x2x16x22xf32> to vector<2x16x22xf32>
    %c28 = arith.constant 28 : index
    %316 = memref.load %arg1[%c28] : memref<98xf32, #tpu.memory_space<smem>>
    %317 = vector.extract_strided_slice %315 {offsets = [0, 0, 0], sizes = [2, 16, 16], strides = [1, 1, 1]} : vector<2x16x22xf32> to vector<2x16x16xf32>
    %318 = vector.broadcast %316 : f32 to vector<2x16x16xf32>
    %319 = arith.mulf %318, %317 : vector<2x16x16xf32>
    %320 = arith.addf %276, %319 : vector<2x16x16xf32>
    %c29 = arith.constant 29 : index
    %321 = memref.load %arg1[%c29] : memref<98xf32, #tpu.memory_space<smem>>
    %322 = vector.extract_strided_slice %315 {offsets = [0, 0, 1], sizes = [2, 16, 16], strides = [1, 1, 1]} : vector<2x16x22xf32> to vector<2x16x16xf32>
    %323 = vector.broadcast %321 : f32 to vector<2x16x16xf32>
    %324 = arith.mulf %323, %322 : vector<2x16x16xf32>
    %325 = arith.addf %320, %324 : vector<2x16x16xf32>
    %c30 = arith.constant 30 : index
    %326 = memref.load %arg1[%c30] : memref<98xf32, #tpu.memory_space<smem>>
    %327 = vector.extract_strided_slice %315 {offsets = [0, 0, 2], sizes = [2, 16, 16], strides = [1, 1, 1]} : vector<2x16x22xf32> to vector<2x16x16xf32>
    %328 = vector.broadcast %326 : f32 to vector<2x16x16xf32>
    %329 = arith.mulf %328, %327 : vector<2x16x16xf32>
    %330 = arith.addf %325, %329 : vector<2x16x16xf32>
    %c31 = arith.constant 31 : index
    %331 = memref.load %arg1[%c31] : memref<98xf32, #tpu.memory_space<smem>>
    %332 = vector.extract_strided_slice %315 {offsets = [0, 0, 3], sizes = [2, 16, 16], strides = [1, 1, 1]} : vector<2x16x22xf32> to vector<2x16x16xf32>
    %333 = vector.broadcast %331 : f32 to vector<2x16x16xf32>
    %334 = arith.mulf %333, %332 : vector<2x16x16xf32>
    %335 = arith.addf %330, %334 : vector<2x16x16xf32>
    %c32 = arith.constant 32 : index
    %336 = memref.load %arg1[%c32] : memref<98xf32, #tpu.memory_space<smem>>
    %337 = vector.extract_strided_slice %315 {offsets = [0, 0, 4], sizes = [2, 16, 16], strides = [1, 1, 1]} : vector<2x16x22xf32> to vector<2x16x16xf32>
    %338 = vector.broadcast %336 : f32 to vector<2x16x16xf32>
    %339 = arith.mulf %338, %337 : vector<2x16x16xf32>
    %340 = arith.addf %335, %339 : vector<2x16x16xf32>
    %c33 = arith.constant 33 : index
    %341 = memref.load %arg1[%c33] : memref<98xf32, #tpu.memory_space<smem>>
    %342 = vector.extract_strided_slice %315 {offsets = [0, 0, 5], sizes = [2, 16, 16], strides = [1, 1, 1]} : vector<2x16x22xf32> to vector<2x16x16xf32>
    %343 = vector.broadcast %341 : f32 to vector<2x16x16xf32>
    %344 = arith.mulf %343, %342 : vector<2x16x16xf32>
    %345 = arith.addf %340, %344 : vector<2x16x16xf32>
    %c34 = arith.constant 34 : index
    %346 = memref.load %arg1[%c34] : memref<98xf32, #tpu.memory_space<smem>>
    %347 = vector.extract_strided_slice %315 {offsets = [0, 0, 6], sizes = [2, 16, 16], strides = [1, 1, 1]} : vector<2x16x22xf32> to vector<2x16x16xf32>
    %348 = vector.broadcast %346 : f32 to vector<2x16x16xf32>
    %349 = arith.mulf %348, %347 : vector<2x16x16xf32>
    %350 = arith.addf %345, %349 : vector<2x16x16xf32>
    %c0_178 = arith.constant 0 : index
    %c0_179 = arith.constant 0 : index
    %c5_180 = arith.constant 5 : index
    %c0_181 = arith.constant 0 : index
    %351 = vector.load %arg6[%c0_178, %c0_179, %c5_180, %c0_181] : memref<2x2x22x22xf32, #tpu.memory_space<vmem>>, vector<1x2x16x22xf32>
    %352 = vector.shape_cast %351 : vector<1x2x16x22xf32> to vector<2x16x22xf32>
    %c35 = arith.constant 35 : index
    %353 = memref.load %arg1[%c35] : memref<98xf32, #tpu.memory_space<smem>>
    %354 = vector.extract_strided_slice %352 {offsets = [0, 0, 0], sizes = [2, 16, 16], strides = [1, 1, 1]} : vector<2x16x22xf32> to vector<2x16x16xf32>
    %355 = vector.broadcast %353 : f32 to vector<2x16x16xf32>
    %356 = arith.mulf %355, %354 : vector<2x16x16xf32>
    %357 = arith.addf %313, %356 : vector<2x16x16xf32>
    %c36 = arith.constant 36 : index
    %358 = memref.load %arg1[%c36] : memref<98xf32, #tpu.memory_space<smem>>
    %359 = vector.extract_strided_slice %352 {offsets = [0, 0, 1], sizes = [2, 16, 16], strides = [1, 1, 1]} : vector<2x16x22xf32> to vector<2x16x16xf32>
    %360 = vector.broadcast %358 : f32 to vector<2x16x16xf32>
    %361 = arith.mulf %360, %359 : vector<2x16x16xf32>
    %362 = arith.addf %357, %361 : vector<2x16x16xf32>
    %c37 = arith.constant 37 : index
    %363 = memref.load %arg1[%c37] : memref<98xf32, #tpu.memory_space<smem>>
    %364 = vector.extract_strided_slice %352 {offsets = [0, 0, 2], sizes = [2, 16, 16], strides = [1, 1, 1]} : vector<2x16x22xf32> to vector<2x16x16xf32>
    %365 = vector.broadcast %363 : f32 to vector<2x16x16xf32>
    %366 = arith.mulf %365, %364 : vector<2x16x16xf32>
    %367 = arith.addf %362, %366 : vector<2x16x16xf32>
    %c38 = arith.constant 38 : index
    %368 = memref.load %arg1[%c38] : memref<98xf32, #tpu.memory_space<smem>>
    %369 = vector.extract_strided_slice %352 {offsets = [0, 0, 3], sizes = [2, 16, 16], strides = [1, 1, 1]} : vector<2x16x22xf32> to vector<2x16x16xf32>
    %370 = vector.broadcast %368 : f32 to vector<2x16x16xf32>
    %371 = arith.mulf %370, %369 : vector<2x16x16xf32>
    %372 = arith.addf %367, %371 : vector<2x16x16xf32>
    %c39 = arith.constant 39 : index
    %373 = memref.load %arg1[%c39] : memref<98xf32, #tpu.memory_space<smem>>
    %374 = vector.extract_strided_slice %352 {offsets = [0, 0, 4], sizes = [2, 16, 16], strides = [1, 1, 1]} : vector<2x16x22xf32> to vector<2x16x16xf32>
    %375 = vector.broadcast %373 : f32 to vector<2x16x16xf32>
    %376 = arith.mulf %375, %374 : vector<2x16x16xf32>
    %377 = arith.addf %372, %376 : vector<2x16x16xf32>
    %c40 = arith.constant 40 : index
    %378 = memref.load %arg1[%c40] : memref<98xf32, #tpu.memory_space<smem>>
    %379 = vector.extract_strided_slice %352 {offsets = [0, 0, 5], sizes = [2, 16, 16], strides = [1, 1, 1]} : vector<2x16x22xf32> to vector<2x16x16xf32>
    %380 = vector.broadcast %378 : f32 to vector<2x16x16xf32>
    %381 = arith.mulf %380, %379 : vector<2x16x16xf32>
    %382 = arith.addf %377, %381 : vector<2x16x16xf32>
    %c41 = arith.constant 41 : index
    %383 = memref.load %arg1[%c41] : memref<98xf32, #tpu.memory_space<smem>>
    %384 = vector.extract_strided_slice %352 {offsets = [0, 0, 6], sizes = [2, 16, 16], strides = [1, 1, 1]} : vector<2x16x22xf32> to vector<2x16x16xf32>
    %385 = vector.broadcast %383 : f32 to vector<2x16x16xf32>
    %386 = arith.mulf %385, %384 : vector<2x16x16xf32>
    %387 = arith.addf %382, %386 : vector<2x16x16xf32>
    %c0_182 = arith.constant 0 : index
    %c0_183 = arith.constant 0 : index
    %c6_184 = arith.constant 6 : index
    %c0_185 = arith.constant 0 : index
    %388 = vector.load %arg6[%c0_182, %c0_183, %c6_184, %c0_185] : memref<2x2x22x22xf32, #tpu.memory_space<vmem>>, vector<1x2x16x22xf32>
    %389 = vector.shape_cast %388 : vector<1x2x16x22xf32> to vector<2x16x22xf32>
    %c42 = arith.constant 42 : index
    %390 = memref.load %arg1[%c42] : memref<98xf32, #tpu.memory_space<smem>>
    %391 = vector.extract_strided_slice %389 {offsets = [0, 0, 0], sizes = [2, 16, 16], strides = [1, 1, 1]} : vector<2x16x22xf32> to vector<2x16x16xf32>
    %392 = vector.broadcast %390 : f32 to vector<2x16x16xf32>
    %393 = arith.mulf %392, %391 : vector<2x16x16xf32>
    %394 = arith.addf %350, %393 : vector<2x16x16xf32>
    %c43 = arith.constant 43 : index
    %395 = memref.load %arg1[%c43] : memref<98xf32, #tpu.memory_space<smem>>
    %396 = vector.extract_strided_slice %389 {offsets = [0, 0, 1], sizes = [2, 16, 16], strides = [1, 1, 1]} : vector<2x16x22xf32> to vector<2x16x16xf32>
    %397 = vector.broadcast %395 : f32 to vector<2x16x16xf32>
    %398 = arith.mulf %397, %396 : vector<2x16x16xf32>
    %399 = arith.addf %394, %398 : vector<2x16x16xf32>
    %c44 = arith.constant 44 : index
    %400 = memref.load %arg1[%c44] : memref<98xf32, #tpu.memory_space<smem>>
    %401 = vector.extract_strided_slice %389 {offsets = [0, 0, 2], sizes = [2, 16, 16], strides = [1, 1, 1]} : vector<2x16x22xf32> to vector<2x16x16xf32>
    %402 = vector.broadcast %400 : f32 to vector<2x16x16xf32>
    %403 = arith.mulf %402, %401 : vector<2x16x16xf32>
    %404 = arith.addf %399, %403 : vector<2x16x16xf32>
    %c45 = arith.constant 45 : index
    %405 = memref.load %arg1[%c45] : memref<98xf32, #tpu.memory_space<smem>>
    %406 = vector.extract_strided_slice %389 {offsets = [0, 0, 3], sizes = [2, 16, 16], strides = [1, 1, 1]} : vector<2x16x22xf32> to vector<2x16x16xf32>
    %407 = vector.broadcast %405 : f32 to vector<2x16x16xf32>
    %408 = arith.mulf %407, %406 : vector<2x16x16xf32>
    %409 = arith.addf %404, %408 : vector<2x16x16xf32>
    %c46 = arith.constant 46 : index
    %410 = memref.load %arg1[%c46] : memref<98xf32, #tpu.memory_space<smem>>
    %411 = vector.extract_strided_slice %389 {offsets = [0, 0, 4], sizes = [2, 16, 16], strides = [1, 1, 1]} : vector<2x16x22xf32> to vector<2x16x16xf32>
    %412 = vector.broadcast %410 : f32 to vector<2x16x16xf32>
    %413 = arith.mulf %412, %411 : vector<2x16x16xf32>
    %414 = arith.addf %409, %413 : vector<2x16x16xf32>
    %c47 = arith.constant 47 : index
    %415 = memref.load %arg1[%c47] : memref<98xf32, #tpu.memory_space<smem>>
    %416 = vector.extract_strided_slice %389 {offsets = [0, 0, 5], sizes = [2, 16, 16], strides = [1, 1, 1]} : vector<2x16x22xf32> to vector<2x16x16xf32>
    %417 = vector.broadcast %415 : f32 to vector<2x16x16xf32>
    %418 = arith.mulf %417, %416 : vector<2x16x16xf32>
    %419 = arith.addf %414, %418 : vector<2x16x16xf32>
    %c48 = arith.constant 48 : index
    %420 = memref.load %arg1[%c48] : memref<98xf32, #tpu.memory_space<smem>>
    %421 = vector.extract_strided_slice %389 {offsets = [0, 0, 6], sizes = [2, 16, 16], strides = [1, 1, 1]} : vector<2x16x22xf32> to vector<2x16x16xf32>
    %422 = vector.broadcast %420 : f32 to vector<2x16x16xf32>
    %423 = arith.mulf %422, %421 : vector<2x16x16xf32>
    %424 = arith.addf %419, %423 : vector<2x16x16xf32>
    %c1_186 = arith.constant 1 : index
    %c0_187 = arith.constant 0 : index
    %c0_188 = arith.constant 0 : index
    %c0_189 = arith.constant 0 : index
    %425 = vector.load %arg6[%c1_186, %c0_187, %c0_188, %c0_189] : memref<2x2x22x22xf32, #tpu.memory_space<vmem>>, vector<1x2x16x22xf32>
    %426 = vector.shape_cast %425 : vector<1x2x16x22xf32> to vector<2x16x22xf32>
    %c49 = arith.constant 49 : index
    %427 = memref.load %arg1[%c49] : memref<98xf32, #tpu.memory_space<smem>>
    %428 = vector.extract_strided_slice %426 {offsets = [0, 0, 0], sizes = [2, 16, 16], strides = [1, 1, 1]} : vector<2x16x22xf32> to vector<2x16x16xf32>
    %429 = vector.broadcast %427 : f32 to vector<2x16x16xf32>
    %430 = arith.mulf %429, %428 : vector<2x16x16xf32>
    %431 = arith.addf %164, %430 : vector<2x16x16xf32>
    %c50 = arith.constant 50 : index
    %432 = memref.load %arg1[%c50] : memref<98xf32, #tpu.memory_space<smem>>
    %433 = vector.extract_strided_slice %426 {offsets = [0, 0, 1], sizes = [2, 16, 16], strides = [1, 1, 1]} : vector<2x16x22xf32> to vector<2x16x16xf32>
    %434 = vector.broadcast %432 : f32 to vector<2x16x16xf32>
    %435 = arith.mulf %434, %433 : vector<2x16x16xf32>
    %436 = arith.addf %431, %435 : vector<2x16x16xf32>
    %c51 = arith.constant 51 : index
    %437 = memref.load %arg1[%c51] : memref<98xf32, #tpu.memory_space<smem>>
    %438 = vector.extract_strided_slice %426 {offsets = [0, 0, 2], sizes = [2, 16, 16], strides = [1, 1, 1]} : vector<2x16x22xf32> to vector<2x16x16xf32>
    %439 = vector.broadcast %437 : f32 to vector<2x16x16xf32>
    %440 = arith.mulf %439, %438 : vector<2x16x16xf32>
    %441 = arith.addf %436, %440 : vector<2x16x16xf32>
    %c52 = arith.constant 52 : index
    %442 = memref.load %arg1[%c52] : memref<98xf32, #tpu.memory_space<smem>>
    %443 = vector.extract_strided_slice %426 {offsets = [0, 0, 3], sizes = [2, 16, 16], strides = [1, 1, 1]} : vector<2x16x22xf32> to vector<2x16x16xf32>
    %444 = vector.broadcast %442 : f32 to vector<2x16x16xf32>
    %445 = arith.mulf %444, %443 : vector<2x16x16xf32>
    %446 = arith.addf %441, %445 : vector<2x16x16xf32>
    %c53 = arith.constant 53 : index
    %447 = memref.load %arg1[%c53] : memref<98xf32, #tpu.memory_space<smem>>
    %448 = vector.extract_strided_slice %426 {offsets = [0, 0, 4], sizes = [2, 16, 16], strides = [1, 1, 1]} : vector<2x16x22xf32> to vector<2x16x16xf32>
    %449 = vector.broadcast %447 : f32 to vector<2x16x16xf32>
    %450 = arith.mulf %449, %448 : vector<2x16x16xf32>
    %451 = arith.addf %446, %450 : vector<2x16x16xf32>
    %c54 = arith.constant 54 : index
    %452 = memref.load %arg1[%c54] : memref<98xf32, #tpu.memory_space<smem>>
    %453 = vector.extract_strided_slice %426 {offsets = [0, 0, 5], sizes = [2, 16, 16], strides = [1, 1, 1]} : vector<2x16x22xf32> to vector<2x16x16xf32>
    %454 = vector.broadcast %452 : f32 to vector<2x16x16xf32>
    %455 = arith.mulf %454, %453 : vector<2x16x16xf32>
    %456 = arith.addf %451, %455 : vector<2x16x16xf32>
    %c55 = arith.constant 55 : index
    %457 = memref.load %arg1[%c55] : memref<98xf32, #tpu.memory_space<smem>>
    %458 = vector.extract_strided_slice %426 {offsets = [0, 0, 6], sizes = [2, 16, 16], strides = [1, 1, 1]} : vector<2x16x22xf32> to vector<2x16x16xf32>
    %459 = vector.broadcast %457 : f32 to vector<2x16x16xf32>
    %460 = arith.mulf %459, %458 : vector<2x16x16xf32>
    %461 = arith.addf %456, %460 : vector<2x16x16xf32>
    %c1_190 = arith.constant 1 : index
    %c0_191 = arith.constant 0 : index
    %c1_192 = arith.constant 1 : index
    %c0_193 = arith.constant 0 : index
    %462 = vector.load %arg6[%c1_190, %c0_191, %c1_192, %c0_193] : memref<2x2x22x22xf32, #tpu.memory_space<vmem>>, vector<1x2x16x22xf32>
    %463 = vector.shape_cast %462 : vector<1x2x16x22xf32> to vector<2x16x22xf32>
    %c56 = arith.constant 56 : index
    %464 = memref.load %arg1[%c56] : memref<98xf32, #tpu.memory_space<smem>>
    %465 = vector.extract_strided_slice %463 {offsets = [0, 0, 0], sizes = [2, 16, 16], strides = [1, 1, 1]} : vector<2x16x22xf32> to vector<2x16x16xf32>
    %466 = vector.broadcast %464 : f32 to vector<2x16x16xf32>
    %467 = arith.mulf %466, %465 : vector<2x16x16xf32>
    %468 = arith.addf %165, %467 : vector<2x16x16xf32>
    %c57 = arith.constant 57 : index
    %469 = memref.load %arg1[%c57] : memref<98xf32, #tpu.memory_space<smem>>
    %470 = vector.extract_strided_slice %463 {offsets = [0, 0, 1], sizes = [2, 16, 16], strides = [1, 1, 1]} : vector<2x16x22xf32> to vector<2x16x16xf32>
    %471 = vector.broadcast %469 : f32 to vector<2x16x16xf32>
    %472 = arith.mulf %471, %470 : vector<2x16x16xf32>
    %473 = arith.addf %468, %472 : vector<2x16x16xf32>
    %c58 = arith.constant 58 : index
    %474 = memref.load %arg1[%c58] : memref<98xf32, #tpu.memory_space<smem>>
    %475 = vector.extract_strided_slice %463 {offsets = [0, 0, 2], sizes = [2, 16, 16], strides = [1, 1, 1]} : vector<2x16x22xf32> to vector<2x16x16xf32>
    %476 = vector.broadcast %474 : f32 to vector<2x16x16xf32>
    %477 = arith.mulf %476, %475 : vector<2x16x16xf32>
    %478 = arith.addf %473, %477 : vector<2x16x16xf32>
    %c59 = arith.constant 59 : index
    %479 = memref.load %arg1[%c59] : memref<98xf32, #tpu.memory_space<smem>>
    %480 = vector.extract_strided_slice %463 {offsets = [0, 0, 3], sizes = [2, 16, 16], strides = [1, 1, 1]} : vector<2x16x22xf32> to vector<2x16x16xf32>
    %481 = vector.broadcast %479 : f32 to vector<2x16x16xf32>
    %482 = arith.mulf %481, %480 : vector<2x16x16xf32>
    %483 = arith.addf %478, %482 : vector<2x16x16xf32>
    %c60 = arith.constant 60 : index
    %484 = memref.load %arg1[%c60] : memref<98xf32, #tpu.memory_space<smem>>
    %485 = vector.extract_strided_slice %463 {offsets = [0, 0, 4], sizes = [2, 16, 16], strides = [1, 1, 1]} : vector<2x16x22xf32> to vector<2x16x16xf32>
    %486 = vector.broadcast %484 : f32 to vector<2x16x16xf32>
    %487 = arith.mulf %486, %485 : vector<2x16x16xf32>
    %488 = arith.addf %483, %487 : vector<2x16x16xf32>
    %c61 = arith.constant 61 : index
    %489 = memref.load %arg1[%c61] : memref<98xf32, #tpu.memory_space<smem>>
    %490 = vector.extract_strided_slice %463 {offsets = [0, 0, 5], sizes = [2, 16, 16], strides = [1, 1, 1]} : vector<2x16x22xf32> to vector<2x16x16xf32>
    %491 = vector.broadcast %489 : f32 to vector<2x16x16xf32>
    %492 = arith.mulf %491, %490 : vector<2x16x16xf32>
    %493 = arith.addf %488, %492 : vector<2x16x16xf32>
    %c62 = arith.constant 62 : index
    %494 = memref.load %arg1[%c62] : memref<98xf32, #tpu.memory_space<smem>>
    %495 = vector.extract_strided_slice %463 {offsets = [0, 0, 6], sizes = [2, 16, 16], strides = [1, 1, 1]} : vector<2x16x22xf32> to vector<2x16x16xf32>
    %496 = vector.broadcast %494 : f32 to vector<2x16x16xf32>
    %497 = arith.mulf %496, %495 : vector<2x16x16xf32>
    %498 = arith.addf %493, %497 : vector<2x16x16xf32>
    %c1_194 = arith.constant 1 : index
    %c0_195 = arith.constant 0 : index
    %c2_196 = arith.constant 2 : index
    %c0_197 = arith.constant 0 : index
    %499 = vector.load %arg6[%c1_194, %c0_195, %c2_196, %c0_197] : memref<2x2x22x22xf32, #tpu.memory_space<vmem>>, vector<1x2x16x22xf32>
    %500 = vector.shape_cast %499 : vector<1x2x16x22xf32> to vector<2x16x22xf32>
    %c63 = arith.constant 63 : index
    %501 = memref.load %arg1[%c63] : memref<98xf32, #tpu.memory_space<smem>>
    %502 = vector.extract_strided_slice %500 {offsets = [0, 0, 0], sizes = [2, 16, 16], strides = [1, 1, 1]} : vector<2x16x22xf32> to vector<2x16x16xf32>
    %503 = vector.broadcast %501 : f32 to vector<2x16x16xf32>
    %504 = arith.mulf %503, %502 : vector<2x16x16xf32>
    %505 = arith.addf %461, %504 : vector<2x16x16xf32>
    %c64 = arith.constant 64 : index
    %506 = memref.load %arg1[%c64] : memref<98xf32, #tpu.memory_space<smem>>
    %507 = vector.extract_strided_slice %500 {offsets = [0, 0, 1], sizes = [2, 16, 16], strides = [1, 1, 1]} : vector<2x16x22xf32> to vector<2x16x16xf32>
    %508 = vector.broadcast %506 : f32 to vector<2x16x16xf32>
    %509 = arith.mulf %508, %507 : vector<2x16x16xf32>
    %510 = arith.addf %505, %509 : vector<2x16x16xf32>
    %c65 = arith.constant 65 : index
    %511 = memref.load %arg1[%c65] : memref<98xf32, #tpu.memory_space<smem>>
    %512 = vector.extract_strided_slice %500 {offsets = [0, 0, 2], sizes = [2, 16, 16], strides = [1, 1, 1]} : vector<2x16x22xf32> to vector<2x16x16xf32>
    %513 = vector.broadcast %511 : f32 to vector<2x16x16xf32>
    %514 = arith.mulf %513, %512 : vector<2x16x16xf32>
    %515 = arith.addf %510, %514 : vector<2x16x16xf32>
    %c66 = arith.constant 66 : index
    %516 = memref.load %arg1[%c66] : memref<98xf32, #tpu.memory_space<smem>>
    %517 = vector.extract_strided_slice %500 {offsets = [0, 0, 3], sizes = [2, 16, 16], strides = [1, 1, 1]} : vector<2x16x22xf32> to vector<2x16x16xf32>
    %518 = vector.broadcast %516 : f32 to vector<2x16x16xf32>
    %519 = arith.mulf %518, %517 : vector<2x16x16xf32>
    %520 = arith.addf %515, %519 : vector<2x16x16xf32>
    %c67 = arith.constant 67 : index
    %521 = memref.load %arg1[%c67] : memref<98xf32, #tpu.memory_space<smem>>
    %522 = vector.extract_strided_slice %500 {offsets = [0, 0, 4], sizes = [2, 16, 16], strides = [1, 1, 1]} : vector<2x16x22xf32> to vector<2x16x16xf32>
    %523 = vector.broadcast %521 : f32 to vector<2x16x16xf32>
    %524 = arith.mulf %523, %522 : vector<2x16x16xf32>
    %525 = arith.addf %520, %524 : vector<2x16x16xf32>
    %c68 = arith.constant 68 : index
    %526 = memref.load %arg1[%c68] : memref<98xf32, #tpu.memory_space<smem>>
    %527 = vector.extract_strided_slice %500 {offsets = [0, 0, 5], sizes = [2, 16, 16], strides = [1, 1, 1]} : vector<2x16x22xf32> to vector<2x16x16xf32>
    %528 = vector.broadcast %526 : f32 to vector<2x16x16xf32>
    %529 = arith.mulf %528, %527 : vector<2x16x16xf32>
    %530 = arith.addf %525, %529 : vector<2x16x16xf32>
    %c69 = arith.constant 69 : index
    %531 = memref.load %arg1[%c69] : memref<98xf32, #tpu.memory_space<smem>>
    %532 = vector.extract_strided_slice %500 {offsets = [0, 0, 6], sizes = [2, 16, 16], strides = [1, 1, 1]} : vector<2x16x22xf32> to vector<2x16x16xf32>
    %533 = vector.broadcast %531 : f32 to vector<2x16x16xf32>
    %534 = arith.mulf %533, %532 : vector<2x16x16xf32>
    %535 = arith.addf %530, %534 : vector<2x16x16xf32>
    %c1_198 = arith.constant 1 : index
    %c0_199 = arith.constant 0 : index
    %c3_200 = arith.constant 3 : index
    %c0_201 = arith.constant 0 : index
    %536 = vector.load %arg6[%c1_198, %c0_199, %c3_200, %c0_201] : memref<2x2x22x22xf32, #tpu.memory_space<vmem>>, vector<1x2x16x22xf32>
    %537 = vector.shape_cast %536 : vector<1x2x16x22xf32> to vector<2x16x22xf32>
    %c70 = arith.constant 70 : index
    %538 = memref.load %arg1[%c70] : memref<98xf32, #tpu.memory_space<smem>>
    %539 = vector.extract_strided_slice %537 {offsets = [0, 0, 0], sizes = [2, 16, 16], strides = [1, 1, 1]} : vector<2x16x22xf32> to vector<2x16x16xf32>
    %540 = vector.broadcast %538 : f32 to vector<2x16x16xf32>
    %541 = arith.mulf %540, %539 : vector<2x16x16xf32>
    %542 = arith.addf %498, %541 : vector<2x16x16xf32>
    %c71 = arith.constant 71 : index
    %543 = memref.load %arg1[%c71] : memref<98xf32, #tpu.memory_space<smem>>
    %544 = vector.extract_strided_slice %537 {offsets = [0, 0, 1], sizes = [2, 16, 16], strides = [1, 1, 1]} : vector<2x16x22xf32> to vector<2x16x16xf32>
    %545 = vector.broadcast %543 : f32 to vector<2x16x16xf32>
    %546 = arith.mulf %545, %544 : vector<2x16x16xf32>
    %547 = arith.addf %542, %546 : vector<2x16x16xf32>
    %c72 = arith.constant 72 : index
    %548 = memref.load %arg1[%c72] : memref<98xf32, #tpu.memory_space<smem>>
    %549 = vector.extract_strided_slice %537 {offsets = [0, 0, 2], sizes = [2, 16, 16], strides = [1, 1, 1]} : vector<2x16x22xf32> to vector<2x16x16xf32>
    %550 = vector.broadcast %548 : f32 to vector<2x16x16xf32>
    %551 = arith.mulf %550, %549 : vector<2x16x16xf32>
    %552 = arith.addf %547, %551 : vector<2x16x16xf32>
    %c73 = arith.constant 73 : index
    %553 = memref.load %arg1[%c73] : memref<98xf32, #tpu.memory_space<smem>>
    %554 = vector.extract_strided_slice %537 {offsets = [0, 0, 3], sizes = [2, 16, 16], strides = [1, 1, 1]} : vector<2x16x22xf32> to vector<2x16x16xf32>
    %555 = vector.broadcast %553 : f32 to vector<2x16x16xf32>
    %556 = arith.mulf %555, %554 : vector<2x16x16xf32>
    %557 = arith.addf %552, %556 : vector<2x16x16xf32>
    %c74 = arith.constant 74 : index
    %558 = memref.load %arg1[%c74] : memref<98xf32, #tpu.memory_space<smem>>
    %559 = vector.extract_strided_slice %537 {offsets = [0, 0, 4], sizes = [2, 16, 16], strides = [1, 1, 1]} : vector<2x16x22xf32> to vector<2x16x16xf32>
    %560 = vector.broadcast %558 : f32 to vector<2x16x16xf32>
    %561 = arith.mulf %560, %559 : vector<2x16x16xf32>
    %562 = arith.addf %557, %561 : vector<2x16x16xf32>
    %c75 = arith.constant 75 : index
    %563 = memref.load %arg1[%c75] : memref<98xf32, #tpu.memory_space<smem>>
    %564 = vector.extract_strided_slice %537 {offsets = [0, 0, 5], sizes = [2, 16, 16], strides = [1, 1, 1]} : vector<2x16x22xf32> to vector<2x16x16xf32>
    %565 = vector.broadcast %563 : f32 to vector<2x16x16xf32>
    %566 = arith.mulf %565, %564 : vector<2x16x16xf32>
    %567 = arith.addf %562, %566 : vector<2x16x16xf32>
    %c76 = arith.constant 76 : index
    %568 = memref.load %arg1[%c76] : memref<98xf32, #tpu.memory_space<smem>>
    %569 = vector.extract_strided_slice %537 {offsets = [0, 0, 6], sizes = [2, 16, 16], strides = [1, 1, 1]} : vector<2x16x22xf32> to vector<2x16x16xf32>
    %570 = vector.broadcast %568 : f32 to vector<2x16x16xf32>
    %571 = arith.mulf %570, %569 : vector<2x16x16xf32>
    %572 = arith.addf %567, %571 : vector<2x16x16xf32>
    %c1_202 = arith.constant 1 : index
    %c0_203 = arith.constant 0 : index
    %c4_204 = arith.constant 4 : index
    %c0_205 = arith.constant 0 : index
    %573 = vector.load %arg6[%c1_202, %c0_203, %c4_204, %c0_205] : memref<2x2x22x22xf32, #tpu.memory_space<vmem>>, vector<1x2x16x22xf32>
    %574 = vector.shape_cast %573 : vector<1x2x16x22xf32> to vector<2x16x22xf32>
    %c77 = arith.constant 77 : index
    %575 = memref.load %arg1[%c77] : memref<98xf32, #tpu.memory_space<smem>>
    %576 = vector.extract_strided_slice %574 {offsets = [0, 0, 0], sizes = [2, 16, 16], strides = [1, 1, 1]} : vector<2x16x22xf32> to vector<2x16x16xf32>
    %577 = vector.broadcast %575 : f32 to vector<2x16x16xf32>
    %578 = arith.mulf %577, %576 : vector<2x16x16xf32>
    %579 = arith.addf %535, %578 : vector<2x16x16xf32>
    %c78 = arith.constant 78 : index
    %580 = memref.load %arg1[%c78] : memref<98xf32, #tpu.memory_space<smem>>
    %581 = vector.extract_strided_slice %574 {offsets = [0, 0, 1], sizes = [2, 16, 16], strides = [1, 1, 1]} : vector<2x16x22xf32> to vector<2x16x16xf32>
    %582 = vector.broadcast %580 : f32 to vector<2x16x16xf32>
    %583 = arith.mulf %582, %581 : vector<2x16x16xf32>
    %584 = arith.addf %579, %583 : vector<2x16x16xf32>
    %c79 = arith.constant 79 : index
    %585 = memref.load %arg1[%c79] : memref<98xf32, #tpu.memory_space<smem>>
    %586 = vector.extract_strided_slice %574 {offsets = [0, 0, 2], sizes = [2, 16, 16], strides = [1, 1, 1]} : vector<2x16x22xf32> to vector<2x16x16xf32>
    %587 = vector.broadcast %585 : f32 to vector<2x16x16xf32>
    %588 = arith.mulf %587, %586 : vector<2x16x16xf32>
    %589 = arith.addf %584, %588 : vector<2x16x16xf32>
    %c80 = arith.constant 80 : index
    %590 = memref.load %arg1[%c80] : memref<98xf32, #tpu.memory_space<smem>>
    %591 = vector.extract_strided_slice %574 {offsets = [0, 0, 3], sizes = [2, 16, 16], strides = [1, 1, 1]} : vector<2x16x22xf32> to vector<2x16x16xf32>
    %592 = vector.broadcast %590 : f32 to vector<2x16x16xf32>
    %593 = arith.mulf %592, %591 : vector<2x16x16xf32>
    %594 = arith.addf %589, %593 : vector<2x16x16xf32>
    %c81 = arith.constant 81 : index
    %595 = memref.load %arg1[%c81] : memref<98xf32, #tpu.memory_space<smem>>
    %596 = vector.extract_strided_slice %574 {offsets = [0, 0, 4], sizes = [2, 16, 16], strides = [1, 1, 1]} : vector<2x16x22xf32> to vector<2x16x16xf32>
    %597 = vector.broadcast %595 : f32 to vector<2x16x16xf32>
    %598 = arith.mulf %597, %596 : vector<2x16x16xf32>
    %599 = arith.addf %594, %598 : vector<2x16x16xf32>
    %c82 = arith.constant 82 : index
    %600 = memref.load %arg1[%c82] : memref<98xf32, #tpu.memory_space<smem>>
    %601 = vector.extract_strided_slice %574 {offsets = [0, 0, 5], sizes = [2, 16, 16], strides = [1, 1, 1]} : vector<2x16x22xf32> to vector<2x16x16xf32>
    %602 = vector.broadcast %600 : f32 to vector<2x16x16xf32>
    %603 = arith.mulf %602, %601 : vector<2x16x16xf32>
    %604 = arith.addf %599, %603 : vector<2x16x16xf32>
    %c83 = arith.constant 83 : index
    %605 = memref.load %arg1[%c83] : memref<98xf32, #tpu.memory_space<smem>>
    %606 = vector.extract_strided_slice %574 {offsets = [0, 0, 6], sizes = [2, 16, 16], strides = [1, 1, 1]} : vector<2x16x22xf32> to vector<2x16x16xf32>
    %607 = vector.broadcast %605 : f32 to vector<2x16x16xf32>
    %608 = arith.mulf %607, %606 : vector<2x16x16xf32>
    %609 = arith.addf %604, %608 : vector<2x16x16xf32>
    %c1_206 = arith.constant 1 : index
    %c0_207 = arith.constant 0 : index
    %c5_208 = arith.constant 5 : index
    %c0_209 = arith.constant 0 : index
    %610 = vector.load %arg6[%c1_206, %c0_207, %c5_208, %c0_209] : memref<2x2x22x22xf32, #tpu.memory_space<vmem>>, vector<1x2x16x22xf32>
    %611 = vector.shape_cast %610 : vector<1x2x16x22xf32> to vector<2x16x22xf32>
    %c84 = arith.constant 84 : index
    %612 = memref.load %arg1[%c84] : memref<98xf32, #tpu.memory_space<smem>>
    %613 = vector.extract_strided_slice %611 {offsets = [0, 0, 0], sizes = [2, 16, 16], strides = [1, 1, 1]} : vector<2x16x22xf32> to vector<2x16x16xf32>
    %614 = vector.broadcast %612 : f32 to vector<2x16x16xf32>
    %615 = arith.mulf %614, %613 : vector<2x16x16xf32>
    %616 = arith.addf %572, %615 : vector<2x16x16xf32>
    %c85 = arith.constant 85 : index
    %617 = memref.load %arg1[%c85] : memref<98xf32, #tpu.memory_space<smem>>
    %618 = vector.extract_strided_slice %611 {offsets = [0, 0, 1], sizes = [2, 16, 16], strides = [1, 1, 1]} : vector<2x16x22xf32> to vector<2x16x16xf32>
    %619 = vector.broadcast %617 : f32 to vector<2x16x16xf32>
    %620 = arith.mulf %619, %618 : vector<2x16x16xf32>
    %621 = arith.addf %616, %620 : vector<2x16x16xf32>
    %c86 = arith.constant 86 : index
    %622 = memref.load %arg1[%c86] : memref<98xf32, #tpu.memory_space<smem>>
    %623 = vector.extract_strided_slice %611 {offsets = [0, 0, 2], sizes = [2, 16, 16], strides = [1, 1, 1]} : vector<2x16x22xf32> to vector<2x16x16xf32>
    %624 = vector.broadcast %622 : f32 to vector<2x16x16xf32>
    %625 = arith.mulf %624, %623 : vector<2x16x16xf32>
    %626 = arith.addf %621, %625 : vector<2x16x16xf32>
    %c87 = arith.constant 87 : index
    %627 = memref.load %arg1[%c87] : memref<98xf32, #tpu.memory_space<smem>>
    %628 = vector.extract_strided_slice %611 {offsets = [0, 0, 3], sizes = [2, 16, 16], strides = [1, 1, 1]} : vector<2x16x22xf32> to vector<2x16x16xf32>
    %629 = vector.broadcast %627 : f32 to vector<2x16x16xf32>
    %630 = arith.mulf %629, %628 : vector<2x16x16xf32>
    %631 = arith.addf %626, %630 : vector<2x16x16xf32>
    %c88 = arith.constant 88 : index
    %632 = memref.load %arg1[%c88] : memref<98xf32, #tpu.memory_space<smem>>
    %633 = vector.extract_strided_slice %611 {offsets = [0, 0, 4], sizes = [2, 16, 16], strides = [1, 1, 1]} : vector<2x16x22xf32> to vector<2x16x16xf32>
    %634 = vector.broadcast %632 : f32 to vector<2x16x16xf32>
    %635 = arith.mulf %634, %633 : vector<2x16x16xf32>
    %636 = arith.addf %631, %635 : vector<2x16x16xf32>
    %c89 = arith.constant 89 : index
    %637 = memref.load %arg1[%c89] : memref<98xf32, #tpu.memory_space<smem>>
    %638 = vector.extract_strided_slice %611 {offsets = [0, 0, 5], sizes = [2, 16, 16], strides = [1, 1, 1]} : vector<2x16x22xf32> to vector<2x16x16xf32>
    %639 = vector.broadcast %637 : f32 to vector<2x16x16xf32>
    %640 = arith.mulf %639, %638 : vector<2x16x16xf32>
    %641 = arith.addf %636, %640 : vector<2x16x16xf32>
    %c90 = arith.constant 90 : index
    %642 = memref.load %arg1[%c90] : memref<98xf32, #tpu.memory_space<smem>>
    %643 = vector.extract_strided_slice %611 {offsets = [0, 0, 6], sizes = [2, 16, 16], strides = [1, 1, 1]} : vector<2x16x22xf32> to vector<2x16x16xf32>
    %644 = vector.broadcast %642 : f32 to vector<2x16x16xf32>
    %645 = arith.mulf %644, %643 : vector<2x16x16xf32>
    %646 = arith.addf %641, %645 : vector<2x16x16xf32>
    %c1_210 = arith.constant 1 : index
    %c0_211 = arith.constant 0 : index
    %c6_212 = arith.constant 6 : index
    %c0_213 = arith.constant 0 : index
    %647 = vector.load %arg6[%c1_210, %c0_211, %c6_212, %c0_213] : memref<2x2x22x22xf32, #tpu.memory_space<vmem>>, vector<1x2x16x22xf32>
    %648 = vector.shape_cast %647 : vector<1x2x16x22xf32> to vector<2x16x22xf32>
    %c91 = arith.constant 91 : index
    %649 = memref.load %arg1[%c91] : memref<98xf32, #tpu.memory_space<smem>>
    %650 = vector.extract_strided_slice %648 {offsets = [0, 0, 0], sizes = [2, 16, 16], strides = [1, 1, 1]} : vector<2x16x22xf32> to vector<2x16x16xf32>
    %651 = vector.broadcast %649 : f32 to vector<2x16x16xf32>
    %652 = arith.mulf %651, %650 : vector<2x16x16xf32>
    %653 = arith.addf %609, %652 : vector<2x16x16xf32>
    %c92 = arith.constant 92 : index
    %654 = memref.load %arg1[%c92] : memref<98xf32, #tpu.memory_space<smem>>
    %655 = vector.extract_strided_slice %648 {offsets = [0, 0, 1], sizes = [2, 16, 16], strides = [1, 1, 1]} : vector<2x16x22xf32> to vector<2x16x16xf32>
    %656 = vector.broadcast %654 : f32 to vector<2x16x16xf32>
    %657 = arith.mulf %656, %655 : vector<2x16x16xf32>
    %658 = arith.addf %653, %657 : vector<2x16x16xf32>
    %c93 = arith.constant 93 : index
    %659 = memref.load %arg1[%c93] : memref<98xf32, #tpu.memory_space<smem>>
    %660 = vector.extract_strided_slice %648 {offsets = [0, 0, 2], sizes = [2, 16, 16], strides = [1, 1, 1]} : vector<2x16x22xf32> to vector<2x16x16xf32>
    %661 = vector.broadcast %659 : f32 to vector<2x16x16xf32>
    %662 = arith.mulf %661, %660 : vector<2x16x16xf32>
    %663 = arith.addf %658, %662 : vector<2x16x16xf32>
    %c94 = arith.constant 94 : index
    %664 = memref.load %arg1[%c94] : memref<98xf32, #tpu.memory_space<smem>>
    %665 = vector.extract_strided_slice %648 {offsets = [0, 0, 3], sizes = [2, 16, 16], strides = [1, 1, 1]} : vector<2x16x22xf32> to vector<2x16x16xf32>
    %666 = vector.broadcast %664 : f32 to vector<2x16x16xf32>
    %667 = arith.mulf %666, %665 : vector<2x16x16xf32>
    %668 = arith.addf %663, %667 : vector<2x16x16xf32>
    %c95 = arith.constant 95 : index
    %669 = memref.load %arg1[%c95] : memref<98xf32, #tpu.memory_space<smem>>
    %670 = vector.extract_strided_slice %648 {offsets = [0, 0, 4], sizes = [2, 16, 16], strides = [1, 1, 1]} : vector<2x16x22xf32> to vector<2x16x16xf32>
    %671 = vector.broadcast %669 : f32 to vector<2x16x16xf32>
    %672 = arith.mulf %671, %670 : vector<2x16x16xf32>
    %673 = arith.addf %668, %672 : vector<2x16x16xf32>
    %c96 = arith.constant 96 : index
    %674 = memref.load %arg1[%c96] : memref<98xf32, #tpu.memory_space<smem>>
    %675 = vector.extract_strided_slice %648 {offsets = [0, 0, 5], sizes = [2, 16, 16], strides = [1, 1, 1]} : vector<2x16x22xf32> to vector<2x16x16xf32>
    %676 = vector.broadcast %674 : f32 to vector<2x16x16xf32>
    %677 = arith.mulf %676, %675 : vector<2x16x16xf32>
    %678 = arith.addf %673, %677 : vector<2x16x16xf32>
    %c97 = arith.constant 97 : index
    %679 = memref.load %arg1[%c97] : memref<98xf32, #tpu.memory_space<smem>>
    %680 = vector.extract_strided_slice %648 {offsets = [0, 0, 6], sizes = [2, 16, 16], strides = [1, 1, 1]} : vector<2x16x22xf32> to vector<2x16x16xf32>
    %681 = vector.broadcast %679 : f32 to vector<2x16x16xf32>
    %682 = arith.mulf %681, %680 : vector<2x16x16xf32>
    %683 = arith.addf %678, %682 : vector<2x16x16xf32>
    %684 = arith.addf %424, %387 : vector<2x16x16xf32>
    %685 = arith.addf %683, %646 : vector<2x16x16xf32>
    %686 = arith.addf %684, %685 : vector<2x16x16xf32>
    %c0_214 = arith.constant 0 : index
    %c0_215 = arith.constant 0 : index
    %c3_216 = arith.constant 3 : index
    %c3_217 = arith.constant 3 : index
    %687 = vector.load %arg6[%c0_214, %c0_215, %c3_216, %c3_217] : memref<2x2x22x22xf32, #tpu.memory_space<vmem>>, vector<1x2x16x16xf32>
    %688 = vector.shape_cast %687 : vector<1x2x16x16xf32> to vector<2x16x16xf32>
    %689 = vector.shape_cast %686 : vector<2x16x16xf32> to vector<1x2x16x16xf32>
    tpu.vector_store %arg6[%c0_214, %c0_215, %c3_216, %c3_217], %689 {strides = array<i32>} : memref<2x2x22x22xf32, #tpu.memory_space<vmem>>, vector<1x2x16x16xf32>,
    %c0_218 = arith.constant 0 : index
    %c0_219 = arith.constant 0 : index
    %c3_220 = arith.constant 3 : index
    %c3_221 = arith.constant 3 : index
    %690 = vector.load %arg6[%c0_218, %c0_219, %c3_220, %c3_221] : memref<2x2x22x22xf32, #tpu.memory_space<vmem>>, vector<1x2x1x16xf32>
    %691 = vector.shape_cast %690 : vector<1x2x1x16xf32> to vector<2x16xf32>
    %c0_222 = arith.constant 0 : index
    %c0_223 = arith.constant 0 : index
    %c0_224 = arith.constant 0 : index
    %692 = vector.load %arg7[%c0_222, %c0_223, %c0_224] : memref<2x1x256xf32, #tpu.memory_space<vmem>>, vector<2x1x16xf32>
    %693 = vector.shape_cast %692 : vector<2x1x16xf32> to vector<2x16xf32>
    %694 = vector.shape_cast %691 : vector<2x16xf32> to vector<2x1x16xf32>
    tpu.vector_store %arg7[%c0_222, %c0_223, %c0_224], %694 {strides = array<i32>} : memref<2x1x256xf32, #tpu.memory_space<vmem>>, vector<2x1x16xf32>,
    %c0_225 = arith.constant 0 : index
    %c0_226 = arith.constant 0 : index
    %c4_227 = arith.constant 4 : index
    %c3_228 = arith.constant 3 : index
    %695 = vector.load %arg6[%c0_225, %c0_226, %c4_227, %c3_228] : memref<2x2x22x22xf32, #tpu.memory_space<vmem>>, vector<1x2x1x16xf32>
    %696 = vector.shape_cast %695 : vector<1x2x1x16xf32> to vector<2x16xf32>
    %c0_229 = arith.constant 0 : index
    %c0_230 = arith.constant 0 : index
    %c16_231 = arith.constant 16 : index
    %697 = vector.load %arg7[%c0_229, %c0_230, %c16_231] : memref<2x1x256xf32, #tpu.memory_space<vmem>>, vector<2x1x16xf32>
    %698 = vector.shape_cast %697 : vector<2x1x16xf32> to vector<2x16xf32>
    %699 = vector.shape_cast %696 : vector<2x16xf32> to vector<2x1x16xf32>
    tpu.vector_store %arg7[%c0_229, %c0_230, %c16_231], %699 {strides = array<i32>} : memref<2x1x256xf32, #tpu.memory_space<vmem>>, vector<2x1x16xf32>,
    %c0_232 = arith.constant 0 : index
    %c0_233 = arith.constant 0 : index
    %c5_234 = arith.constant 5 : index
    %c3_235 = arith.constant 3 : index
    %700 = vector.load %arg6[%c0_232, %c0_233, %c5_234, %c3_235] : memref<2x2x22x22xf32, #tpu.memory_space<vmem>>, vector<1x2x1x16xf32>
    %701 = vector.shape_cast %700 : vector<1x2x1x16xf32> to vector<2x16xf32>
    %c0_236 = arith.constant 0 : index
    %c0_237 = arith.constant 0 : index
    %c32_238 = arith.constant 32 : index
    %702 = vector.load %arg7[%c0_236, %c0_237, %c32_238] : memref<2x1x256xf32, #tpu.memory_space<vmem>>, vector<2x1x16xf32>
    %703 = vector.shape_cast %702 : vector<2x1x16xf32> to vector<2x16xf32>
    %704 = vector.shape_cast %701 : vector<2x16xf32> to vector<2x1x16xf32>
    tpu.vector_store %arg7[%c0_236, %c0_237, %c32_238], %704 {strides = array<i32>} : memref<2x1x256xf32, #tpu.memory_space<vmem>>, vector<2x1x16xf32>,
    %c0_239 = arith.constant 0 : index
    %c0_240 = arith.constant 0 : index
    %c6_241 = arith.constant 6 : index
    %c3_242 = arith.constant 3 : index
    %705 = vector.load %arg6[%c0_239, %c0_240, %c6_241, %c3_242] : memref<2x2x22x22xf32, #tpu.memory_space<vmem>>, vector<1x2x1x16xf32>
    %706 = vector.shape_cast %705 : vector<1x2x1x16xf32> to vector<2x16xf32>
    %c0_243 = arith.constant 0 : index
    %c0_244 = arith.constant 0 : index
    %c48_245 = arith.constant 48 : index
    %707 = vector.load %arg7[%c0_243, %c0_244, %c48_245] : memref<2x1x256xf32, #tpu.memory_space<vmem>>, vector<2x1x16xf32>
    %708 = vector.shape_cast %707 : vector<2x1x16xf32> to vector<2x16xf32>
    %709 = vector.shape_cast %706 : vector<2x16xf32> to vector<2x1x16xf32>
    tpu.vector_store %arg7[%c0_243, %c0_244, %c48_245], %709 {strides = array<i32>} : memref<2x1x256xf32, #tpu.memory_space<vmem>>, vector<2x1x16xf32>,
    %c0_246 = arith.constant 0 : index
    %c0_247 = arith.constant 0 : index
    %c7_248 = arith.constant 7 : index
    %c3_249 = arith.constant 3 : index
    %710 = vector.load %arg6[%c0_246, %c0_247, %c7_248, %c3_249] : memref<2x2x22x22xf32, #tpu.memory_space<vmem>>, vector<1x2x1x16xf32>
    %711 = vector.shape_cast %710 : vector<1x2x1x16xf32> to vector<2x16xf32>
    %c0_250 = arith.constant 0 : index
    %c0_251 = arith.constant 0 : index
    %c64_252 = arith.constant 64 : index
    %712 = vector.load %arg7[%c0_250, %c0_251, %c64_252] : memref<2x1x256xf32, #tpu.memory_space<vmem>>, vector<2x1x16xf32>
    %713 = vector.shape_cast %712 : vector<2x1x16xf32> to vector<2x16xf32>
    %714 = vector.shape_cast %711 : vector<2x16xf32> to vector<2x1x16xf32>
    tpu.vector_store %arg7[%c0_250, %c0_251, %c64_252], %714 {strides = array<i32>} : memref<2x1x256xf32, #tpu.memory_space<vmem>>, vector<2x1x16xf32>,
    %c0_253 = arith.constant 0 : index
    %c0_254 = arith.constant 0 : index
    %c8_255 = arith.constant 8 : index
    %c3_256 = arith.constant 3 : index
    %715 = vector.load %arg6[%c0_253, %c0_254, %c8_255, %c3_256] : memref<2x2x22x22xf32, #tpu.memory_space<vmem>>, vector<1x2x1x16xf32>
    %716 = vector.shape_cast %715 : vector<1x2x1x16xf32> to vector<2x16xf32>
    %c0_257 = arith.constant 0 : index
    %c0_258 = arith.constant 0 : index
    %c80_259 = arith.constant 80 : index
    %717 = vector.load %arg7[%c0_257, %c0_258, %c80_259] : memref<2x1x256xf32, #tpu.memory_space<vmem>>, vector<2x1x16xf32>
    %718 = vector.shape_cast %717 : vector<2x1x16xf32> to vector<2x16xf32>
    %719 = vector.shape_cast %716 : vector<2x16xf32> to vector<2x1x16xf32>
    tpu.vector_store %arg7[%c0_257, %c0_258, %c80_259], %719 {strides = array<i32>} : memref<2x1x256xf32, #tpu.memory_space<vmem>>, vector<2x1x16xf32>,
    %c0_260 = arith.constant 0 : index
    %c0_261 = arith.constant 0 : index
    %c9_262 = arith.constant 9 : index
    %c3_263 = arith.constant 3 : index
    %720 = vector.load %arg6[%c0_260, %c0_261, %c9_262, %c3_263] : memref<2x2x22x22xf32, #tpu.memory_space<vmem>>, vector<1x2x1x16xf32>
    %721 = vector.shape_cast %720 : vector<1x2x1x16xf32> to vector<2x16xf32>
    %c0_264 = arith.constant 0 : index
    %c0_265 = arith.constant 0 : index
    %c96_266 = arith.constant 96 : index
    %722 = vector.load %arg7[%c0_264, %c0_265, %c96_266] : memref<2x1x256xf32, #tpu.memory_space<vmem>>, vector<2x1x16xf32>
    %723 = vector.shape_cast %722 : vector<2x1x16xf32> to vector<2x16xf32>
    %724 = vector.shape_cast %721 : vector<2x16xf32> to vector<2x1x16xf32>
    tpu.vector_store %arg7[%c0_264, %c0_265, %c96_266], %724 {strides = array<i32>} : memref<2x1x256xf32, #tpu.memory_space<vmem>>, vector<2x1x16xf32>,
    %c0_267 = arith.constant 0 : index
    %c0_268 = arith.constant 0 : index
    %c10_269 = arith.constant 10 : index
    %c3_270 = arith.constant 3 : index
    %725 = vector.load %arg6[%c0_267, %c0_268, %c10_269, %c3_270] : memref<2x2x22x22xf32, #tpu.memory_space<vmem>>, vector<1x2x1x16xf32>
    %726 = vector.shape_cast %725 : vector<1x2x1x16xf32> to vector<2x16xf32>
    %c0_271 = arith.constant 0 : index
    %c0_272 = arith.constant 0 : index
    %c112 = arith.constant 112 : index
    %727 = vector.load %arg7[%c0_271, %c0_272, %c112] : memref<2x1x256xf32, #tpu.memory_space<vmem>>, vector<2x1x16xf32>
    %728 = vector.shape_cast %727 : vector<2x1x16xf32> to vector<2x16xf32>
    %729 = vector.shape_cast %726 : vector<2x16xf32> to vector<2x1x16xf32>
    tpu.vector_store %arg7[%c0_271, %c0_272, %c112], %729 {strides = array<i32>} : memref<2x1x256xf32, #tpu.memory_space<vmem>>, vector<2x1x16xf32>,
    %c0_273 = arith.constant 0 : index
    %c0_274 = arith.constant 0 : index
    %c11_275 = arith.constant 11 : index
    %c3_276 = arith.constant 3 : index
    %730 = vector.load %arg6[%c0_273, %c0_274, %c11_275, %c3_276] : memref<2x2x22x22xf32, #tpu.memory_space<vmem>>, vector<1x2x1x16xf32>
    %731 = vector.shape_cast %730 : vector<1x2x1x16xf32> to vector<2x16xf32>
    %c0_277 = arith.constant 0 : index
    %c0_278 = arith.constant 0 : index
    %c128 = arith.constant 128 : index
    %732 = vector.load %arg7[%c0_277, %c0_278, %c128] : memref<2x1x256xf32, #tpu.memory_space<vmem>>, vector<2x1x16xf32>
    %733 = vector.shape_cast %732 : vector<2x1x16xf32> to vector<2x16xf32>
    %734 = vector.shape_cast %731 : vector<2x16xf32> to vector<2x1x16xf32>
    tpu.vector_store %arg7[%c0_277, %c0_278, %c128], %734 {strides = array<i32>} : memref<2x1x256xf32, #tpu.memory_space<vmem>>, vector<2x1x16xf32>,
    %c0_279 = arith.constant 0 : index
    %c0_280 = arith.constant 0 : index
    %c12_281 = arith.constant 12 : index
    %c3_282 = arith.constant 3 : index
    %735 = vector.load %arg6[%c0_279, %c0_280, %c12_281, %c3_282] : memref<2x2x22x22xf32, #tpu.memory_space<vmem>>, vector<1x2x1x16xf32>
    %736 = vector.shape_cast %735 : vector<1x2x1x16xf32> to vector<2x16xf32>
    %c0_283 = arith.constant 0 : index
    %c0_284 = arith.constant 0 : index
    %c144 = arith.constant 144 : index
    %737 = vector.load %arg7[%c0_283, %c0_284, %c144] : memref<2x1x256xf32, #tpu.memory_space<vmem>>, vector<2x1x16xf32>
    %738 = vector.shape_cast %737 : vector<2x1x16xf32> to vector<2x16xf32>
    %739 = vector.shape_cast %736 : vector<2x16xf32> to vector<2x1x16xf32>
    tpu.vector_store %arg7[%c0_283, %c0_284, %c144], %739 {strides = array<i32>} : memref<2x1x256xf32, #tpu.memory_space<vmem>>, vector<2x1x16xf32>,
    %c0_285 = arith.constant 0 : index
    %c0_286 = arith.constant 0 : index
    %c13_287 = arith.constant 13 : index
    %c3_288 = arith.constant 3 : index
    %740 = vector.load %arg6[%c0_285, %c0_286, %c13_287, %c3_288] : memref<2x2x22x22xf32, #tpu.memory_space<vmem>>, vector<1x2x1x16xf32>
    %741 = vector.shape_cast %740 : vector<1x2x1x16xf32> to vector<2x16xf32>
    %c0_289 = arith.constant 0 : index
    %c0_290 = arith.constant 0 : index
    %c160 = arith.constant 160 : index
    %742 = vector.load %arg7[%c0_289, %c0_290, %c160] : memref<2x1x256xf32, #tpu.memory_space<vmem>>, vector<2x1x16xf32>
    %743 = vector.shape_cast %742 : vector<2x1x16xf32> to vector<2x16xf32>
    %744 = vector.shape_cast %741 : vector<2x16xf32> to vector<2x1x16xf32>
    tpu.vector_store %arg7[%c0_289, %c0_290, %c160], %744 {strides = array<i32>} : memref<2x1x256xf32, #tpu.memory_space<vmem>>, vector<2x1x16xf32>,
    %c0_291 = arith.constant 0 : index
    %c0_292 = arith.constant 0 : index
    %c14_293 = arith.constant 14 : index
    %c3_294 = arith.constant 3 : index
    %745 = vector.load %arg6[%c0_291, %c0_292, %c14_293, %c3_294] : memref<2x2x22x22xf32, #tpu.memory_space<vmem>>, vector<1x2x1x16xf32>
    %746 = vector.shape_cast %745 : vector<1x2x1x16xf32> to vector<2x16xf32>
    %c0_295 = arith.constant 0 : index
    %c0_296 = arith.constant 0 : index
    %c176 = arith.constant 176 : index
    %747 = vector.load %arg7[%c0_295, %c0_296, %c176] : memref<2x1x256xf32, #tpu.memory_space<vmem>>, vector<2x1x16xf32>
    %748 = vector.shape_cast %747 : vector<2x1x16xf32> to vector<2x16xf32>
    %749 = vector.shape_cast %746 : vector<2x16xf32> to vector<2x1x16xf32>
    tpu.vector_store %arg7[%c0_295, %c0_296, %c176], %749 {strides = array<i32>} : memref<2x1x256xf32, #tpu.memory_space<vmem>>, vector<2x1x16xf32>,
    %c0_297 = arith.constant 0 : index
    %c0_298 = arith.constant 0 : index
    %c15_299 = arith.constant 15 : index
    %c3_300 = arith.constant 3 : index
    %750 = vector.load %arg6[%c0_297, %c0_298, %c15_299, %c3_300] : memref<2x2x22x22xf32, #tpu.memory_space<vmem>>, vector<1x2x1x16xf32>
    %751 = vector.shape_cast %750 : vector<1x2x1x16xf32> to vector<2x16xf32>
    %c0_301 = arith.constant 0 : index
    %c0_302 = arith.constant 0 : index
    %c192 = arith.constant 192 : index
    %752 = vector.load %arg7[%c0_301, %c0_302, %c192] : memref<2x1x256xf32, #tpu.memory_space<vmem>>, vector<2x1x16xf32>
    %753 = vector.shape_cast %752 : vector<2x1x16xf32> to vector<2x16xf32>
    %754 = vector.shape_cast %751 : vector<2x16xf32> to vector<2x1x16xf32>
    tpu.vector_store %arg7[%c0_301, %c0_302, %c192], %754 {strides = array<i32>} : memref<2x1x256xf32, #tpu.memory_space<vmem>>, vector<2x1x16xf32>,
    %c0_303 = arith.constant 0 : index
    %c0_304 = arith.constant 0 : index
    %c16_305 = arith.constant 16 : index
    %c3_306 = arith.constant 3 : index
    %755 = vector.load %arg6[%c0_303, %c0_304, %c16_305, %c3_306] : memref<2x2x22x22xf32, #tpu.memory_space<vmem>>, vector<1x2x1x16xf32>
    %756 = vector.shape_cast %755 : vector<1x2x1x16xf32> to vector<2x16xf32>
    %c0_307 = arith.constant 0 : index
    %c0_308 = arith.constant 0 : index
    %c208 = arith.constant 208 : index
    %757 = vector.load %arg7[%c0_307, %c0_308, %c208] : memref<2x1x256xf32, #tpu.memory_space<vmem>>, vector<2x1x16xf32>
    %758 = vector.shape_cast %757 : vector<2x1x16xf32> to vector<2x16xf32>
    %759 = vector.shape_cast %756 : vector<2x16xf32> to vector<2x1x16xf32>
    tpu.vector_store %arg7[%c0_307, %c0_308, %c208], %759 {strides = array<i32>} : memref<2x1x256xf32, #tpu.memory_space<vmem>>, vector<2x1x16xf32>,
    %c0_309 = arith.constant 0 : index
    %c0_310 = arith.constant 0 : index
    %c17_311 = arith.constant 17 : index
    %c3_312 = arith.constant 3 : index
    %760 = vector.load %arg6[%c0_309, %c0_310, %c17_311, %c3_312] : memref<2x2x22x22xf32, #tpu.memory_space<vmem>>, vector<1x2x1x16xf32>
    %761 = vector.shape_cast %760 : vector<1x2x1x16xf32> to vector<2x16xf32>
    %c0_313 = arith.constant 0 : index
    %c0_314 = arith.constant 0 : index
    %c224 = arith.constant 224 : index
    %762 = vector.load %arg7[%c0_313, %c0_314, %c224] : memref<2x1x256xf32, #tpu.memory_space<vmem>>, vector<2x1x16xf32>
    %763 = vector.shape_cast %762 : vector<2x1x16xf32> to vector<2x16xf32>
    %764 = vector.shape_cast %761 : vector<2x16xf32> to vector<2x1x16xf32>
    tpu.vector_store %arg7[%c0_313, %c0_314, %c224], %764 {strides = array<i32>} : memref<2x1x256xf32, #tpu.memory_space<vmem>>, vector<2x1x16xf32>,
    %c0_315 = arith.constant 0 : index
    %c0_316 = arith.constant 0 : index
    %c18_317 = arith.constant 18 : index
    %c3_318 = arith.constant 3 : index
    %765 = vector.load %arg6[%c0_315, %c0_316, %c18_317, %c3_318] : memref<2x2x22x22xf32, #tpu.memory_space<vmem>>, vector<1x2x1x16xf32>
    %766 = vector.shape_cast %765 : vector<1x2x1x16xf32> to vector<2x16xf32>
    %c0_319 = arith.constant 0 : index
    %c0_320 = arith.constant 0 : index
    %c240 = arith.constant 240 : index
    %767 = vector.load %arg7[%c0_319, %c0_320, %c240] : memref<2x1x256xf32, #tpu.memory_space<vmem>>, vector<2x1x16xf32>
    %768 = vector.shape_cast %767 : vector<2x1x16xf32> to vector<2x16xf32>
    %769 = vector.shape_cast %766 : vector<2x16xf32> to vector<2x1x16xf32>
    tpu.vector_store %arg7[%c0_319, %c0_320, %c240], %769 {strides = array<i32>} : memref<2x1x256xf32, #tpu.memory_space<vmem>>, vector<2x1x16xf32>,
    %c0_321 = arith.constant 0 : index
    %c0_322 = arith.constant 0 : index
    %c0_323 = arith.constant 0 : index
    %770 = vector.load %arg7[%c0_321, %c0_322, %c0_323] : memref<2x1x256xf32, #tpu.memory_space<vmem>>, vector<2x1x256xf32>
    %771 = arith.negf %770 : vector<2x1x256xf32>
    %772 = math.exp %771 : vector<2x1x256xf32>
    %cst_324 = arith.constant 1.000000e+00 : f32
    %773 = vector.broadcast %cst_324 : f32 to vector<2x1x256xf32>
    %774 = arith.addf %773, %772 : vector<2x1x256xf32>
    %775 = arith.divf %773, %774 : vector<2x1x256xf32>
    %776 = vector.shape_cast %20 : vector<2x32xf32> to vector<2x32x1xf32>
    %777 = vector.broadcast %776 : vector<2x32x1xf32> to vector<2x32x256xf32>
    %778 = arith.mulf %0, %777 : vector<2x32x256xf32>
    %779 = vector.broadcast %775 : vector<2x1x256xf32> to vector<2x32x256xf32>
    %780 = arith.mulf %778, %779 : vector<2x32x256xf32>
    %c0_325 = arith.constant 0 : index
    %c0_326 = arith.constant 0 : index
    %c0_327 = arith.constant 0 : index
    %781 = vector.load %arg5[%c0_325, %c0_326, %c0_327] : memref<2x32x256xf32, #tpu.memory_space<vmem>>, vector<2x32x256xf32>
    tpu.vector_store %arg5[%c0_325, %c0_326, %c0_327], %780 {strides = array<i32>} : memref<2x32x256xf32, #tpu.memory_space<vmem>>, vector<2x32x256xf32>,
    return
  }
  func.func @transform_0(%arg0: i32, %arg1: memref<98xf32, #tpu.memory_space<smem>>) -> (i32, i32, i32) {
    %c0_i32 = arith.constant 0 : i32
    %c0_i32_0 = arith.constant 0 : i32
    %c0_i32_1 = arith.constant 0 : i32
    return %arg0, %c0_i32, %c0_i32_0 : i32, i32, i32
  }
  func.func @transform_1(%arg0: i32, %arg1: memref<98xf32, #tpu.memory_space<smem>>) -> (i32, i32) {
    %c0_i32 = arith.constant 0 : i32
    %c0_i32_0 = arith.constant 0 : i32
    %c0_i32_1 = arith.constant 0 : i32
    return %c0_i32, %c0_i32_0 : i32, i32
  }
  func.func @transform_2(%arg0: i32, %arg1: memref<98xf32, #tpu.memory_space<smem>>) -> (i32, i32) {
    %c0_i32 = arith.constant 0 : i32
    %c0_i32_0 = arith.constant 0 : i32
    %c0_i32_1 = arith.constant 0 : i32
    return %c0_i32, %c0_i32_0 : i32, i32
  }
  func.func @transform_3(%arg0: i32, %arg1: memref<98xf32, #tpu.memory_space<smem>>) -> (i32, i32, i32) {
    %c0_i32 = arith.constant 0 : i32
    %c0_i32_0 = arith.constant 0 : i32
    %c0_i32_1 = arith.constant 0 : i32
    return %arg0, %c0_i32, %c0_i32_0 : i32, i32, i32
  }
}

</mosaic_0001>

<llo_original>
// kernel: tpu_custom_call.1
$region0: #{tpu_custom_call.1}
  #allocation0 [shape = 'u32[]', space=smem, size = 0x4, offset = 0x4, fixed_abs, tag = 'smem constant byte address 0x4 - core index']
  #allocation1 [shape = 'u32[72,128]{1,0:T(1,128)}', space=vmem, size = 0x9000, scoped, tag = 'internal scratch']
  #allocation2 [shape = 'f32[2,2,22,22]{3,2,1,0:T(8,128)}', space=vmem, size = 0xc000, scoped, tag = 'scratch operand']
  #allocation3 [shape = 'f32[2,1,256]{2,1,0:T(1,128)}', space=vmem, size = 0x800, scoped, tag = 'scratch operand']
  #allocation4 [shape = 's32[1]{0}', space=sflag, size = 0x4, scoped, tag = 'scoped memory for tpu_custom_call.1']
  #allocation5 [shape = 'u8[512]{0}', space=smem, size = 0x200, scoped, tag = 'prefetched SMEM operand 0']
  %s0 = inlined_call_operand.vmem [shape: f32[98], index: 0, kind: input, shape index: {}]
  %s1 = inlined_call_operand.hbm [shape: f32[2,32,256], index: 1, kind: input, shape index: {}]
  %s2 = inlined_call_operand.vmem [shape: f32[32,2], index: 2, kind: input, shape index: {}]
  %s3 = inlined_call_operand.vmem [shape: f32[2,32], index: 3, kind: input, shape index: {}]
  %s4 = inlined_call_operand.hbm [shape: f32[2,32,256], index: 4, kind: output, shape index: {}]
  %s5 = sld [smem:[#allocation0]]
  $region26: #{tpu_custom_call.1} parent=0
    _
  %s7 = ssub.s32 1, %s5
  %s8 = scalar_select 0, %s7, %s5
  %s10 = sshll.u32 %s0, 4
  %s11 = int_to_ptr.vmem [resolvable:$true] %s10
  %13 = dma.vmem_to_smem %s11, 16, [#allocation5], [#allocation4]
  %15 = dma.done [#allocation4], 16
  %16 = sfence
  $region1: #{tpu_custom_call.1} parent=0
    #allocation6 [shape = 'u8[65536]{0}', space=vmem, size = 0x10000, scoped, tag = 'input window, operand 1, single buffered']
    #allocation7 [shape = 's32[1]{0}', space=sflag, size = 0x4, scoped, tag = 'scoped memory for tpu_custom_call.1']
    #allocation8 [shape = 's32[1]{0}', space=sflag, size = 0x4, scoped, tag = 'scoped memory for tpu_custom_call.1']
    #allocation9 [shape = 'u8[65536]{0}', space=vmem, size = 0x10000, scoped, tag = 'output window, operand 0, single buffered']
    %17 = vsyncpa [#allocation7], 0
    %18 = vsyncpa [#allocation8], 0
    // Predicated region
    $region2: #{tpu_custom_call.1} parent=1 // pred_check
      _
    $region3: #{tpu_custom_call.1} parent=1 // pred_check_branch
      %20 = sbr.rel (0) target = $region5
    $region4: #{tpu_custom_call.1} parent=1 // pred_region
      %22 = vsyncadd [#allocation7], 0
      %s23 = sshll.u32 %s1, 4
      %s24 = int_to_ptr.hbm [resolvable:$true] %s23
      %s25 = sshll.u32 [#allocation6], 4
      %s26 = int_to_ptr.vmem [resolvable:$true] %s25
      %31 = dma.hbm_to_vmem [thread:$0]  %s24, 2048, %s26, [#allocation7], 256, 256, 16
    $region5: #{tpu_custom_call.1} parent=1 // pred_fallthru
      _
    // Predicated region
    $region6: #{tpu_custom_call.1} parent=1 // pred_check
      _
    $region7: #{tpu_custom_call.1} parent=1 // pred_check_branch
      %33 = sbr.rel (0) target = $region9
    $region8: #{tpu_custom_call.1} parent=1 // pred_region
      _
    $region9: #{tpu_custom_call.1} parent=1 // pred_fallthru
      _
    // Predicated region
    $region10: #{tpu_custom_call.1} parent=1 // pred_check
      _
    $region11: #{tpu_custom_call.1} parent=1 // pred_check_branch
      %35 = sbr.rel (0) target = $region13
    $region12: #{tpu_custom_call.1} parent=1 // pred_region
      _
    $region13: #{tpu_custom_call.1} parent=1 // pred_fallthru
      _
    // Predicated region
    $region14: #{tpu_custom_call.1} parent=1 // pred_check
      _
    $region15: #{tpu_custom_call.1} parent=1 // pred_check_branch
      %37 = sbr.rel (0) target = $region17
    $region16: #{tpu_custom_call.1} parent=1 // pred_region
      %39 = dma.done [#allocation7], 2048
    $region17: #{tpu_custom_call.1} parent=1 // pred_fallthru
      _
    %v40 = vld [vmem:[#allocation6] sm:$0xff]
    %v41 = vld [vmem:[#allocation6 + $0x8] sm:$0xff]
    %v42 = vld [vmem:[#allocation6 + $0x10] sm:$0xff]
    %v43 = vld [vmem:[#allocation6 + $0x18] sm:$0xff]
    %v44 = vld [vmem:[#allocation6 + $0x20] sm:$0xff]
    %v45 = vld [vmem:[#allocation6 + $0x28] sm:$0xff]
    %v46 = vld [vmem:[#allocation6 + $0x30] sm:$0xff]
    %v47 = vld [vmem:[#allocation6 + $0x38] sm:$0xff]
    %v48 = vld [vmem:[#allocation6 + $0x40] sm:$0xff]
    %v49 = vld [vmem:[#allocation6 + $0x48] sm:$0xff]
    %v50 = vld [vmem:[#allocation6 + $0x50] sm:$0xff]
    %v51 = vld [vmem:[#allocation6 + $0x58] sm:$0xff]
    %v52 = vld [vmem:[#allocation6 + $0x60] sm:$0xff]
    %v53 = vld [vmem:[#allocation6 + $0x68] sm:$0xff]
    %v54 = vld [vmem:[#allocation6 + $0x70] sm:$0xff]
    %v55 = vld [vmem:[#allocation6 + $0x78] sm:$0xff]
    %v56 = vld [vmem:[%s2] sm:$0xff]
    %v57 = vld [vmem:[%s2 + $0x8] sm:$0xff]
    %v58 = vld [vmem:[%s2 + $0x10] sm:$0xff]
    %v59 = vld [vmem:[%s2 + $0x18] sm:$0xff]
    %v60 = vld [vmem:[%s3] sm:$0x3]
    %v61 = vadd.f32 %v40, %v41
    %62 = vadd.xlane.f32.xlu0 %v61
    %v63 = vpop.xlane.xlu0 %62
    %v64 = vadd.f32 %v42, %v43
    %65 = vadd.xlane.f32.xlu0 %v64
    %v66 = vpop.xlane.xlu0 %65
    %v67 = vadd.f32 %v44, %v45
    %68 = vadd.xlane.f32.xlu0 %v67
    %v69 = vpop.xlane.xlu0 %68
    %v70 = vadd.f32 %v46, %v47
    %71 = vadd.xlane.f32.xlu0 %v70
    %v72 = vpop.xlane.xlu0 %71
    %v73 = vadd.f32 %v48, %v49
    %74 = vadd.xlane.f32.xlu0 %v73
    %v75 = vpop.xlane.xlu0 %74
    %v76 = vadd.f32 %v50, %v51
    %77 = vadd.xlane.f32.xlu0 %v76
    %v78 = vpop.xlane.xlu0 %77
    %v79 = vadd.f32 %v52, %v53
    %80 = vadd.xlane.f32.xlu0 %v79
    %v81 = vpop.xlane.xlu0 %80
    %v82 = vadd.f32 %v54, %v55
    %83 = vadd.xlane.f32.xlu0 %v82
    %v84 = vpop.xlane.xlu0 %83
    %v85 = vmul.f32 %v63, 0.00390625
    %v86 = vmul.f32 %v66, 0.00390625
    %v87 = vmul.f32 %v69, 0.00390625
    %v88 = vmul.f32 %v72, 0.00390625
    %v89 = vmul.f32 %v75, 0.00390625
    %v90 = vmul.f32 %v78, 0.00390625
    %v91 = vmul.f32 %v81, 0.00390625
    %v92 = vmul.f32 %v84, 0.00390625
    %v93 = vmax.f32 %v40, %v41
    %94 = vmax.xlane.f32.xlu0 %v93
    %v95 = vpop.xlane.xlu0 %94
    %v96 = vmax.f32 %v42, %v43
    %97 = vmax.xlane.f32.xlu0 %v96
    %v98 = vpop.xlane.xlu0 %97
    %v99 = vmax.f32 %v44, %v45
    %100 = vmax.xlane.f32.xlu0 %v99
    %v101 = vpop.xlane.xlu0 %100
    %v102 = vmax.f32 %v46, %v47
    %103 = vmax.xlane.f32.xlu0 %v102
    %v104 = vpop.xlane.xlu0 %103
    %v105 = vmax.f32 %v48, %v49
    %106 = vmax.xlane.f32.xlu0 %v105
    %v107 = vpop.xlane.xlu0 %106
    %v108 = vmax.f32 %v50, %v51
    %109 = vmax.xlane.f32.xlu0 %v108
    %v110 = vpop.xlane.xlu0 %109
    %v111 = vmax.f32 %v52, %v53
    %112 = vmax.xlane.f32.xlu0 %v111
    %v113 = vpop.xlane.xlu0 %112
    %v114 = vmax.f32 %v54, %v55
    %115 = vmax.xlane.f32.xlu0 %v114
    %v116 = vpop.xlane.xlu0 %115
    %v125 = vlaneseq
    %v126 = vand.u32 %v125, 127
    %v127 = vperm.slane %v85, %v126
    %v128 = vadd.s32 %v126, 4294967288
    %v129 = vperm.slane %v86, %v128
    %vm130 = vcmask 130112
    %v131 = vsel %vm130, %v129, %v127
    %v132 = vadd.s32 %v126, 4294967280
    %v133 = vperm.slane %v87, %v132
    %vm134 = vcmask 195712
    %v135 = vsel %vm134, %v133, %v131
    %v136 = vadd.s32 %v126, 4294967272
    %v137 = vperm.slane %v88, %v136
    %vm138 = vcmask 261312
    %v139 = vsel %vm138, %v137, %v135
    %v140 = vperm.slane %v89, %v126
    %v141 = vperm.slane %v90, %v128
    %v142 = vsel %vm130, %v141, %v140
    %v143 = vperm.slane %v91, %v132
    %v144 = vsel %vm134, %v143, %v142
    %v145 = vperm.slane %v92, %v136
    %v146 = vsel %vm138, %v145, %v144
    %vm147 = vcmask 1041409
    %v148 = vsel %vm147, %v146, %v139
    %vm149 = vcmask 261120
    %v150 = vsel %vm149, %v148, 0
    %152 = vmatpush.msra.mxu0 0.0
    %153 = vmatpush.msra.mxu0 0.0
    %154 = vmatpush.msra.mxu0 0.0
    %155 = vmatpush.msra.mxu0 0.0
    %156 = vmatpush.msra.mxu0 0.0
    %157 = vmatpush.msra.mxu0 0.0
    %158 = vmatpush.msra.mxu0 0.0
    %159 = vmatpush.msra.mxu0 0.0
    %160 = vmatpush.msra.mxu0 0.0
    %161 = vmatpush.msra.mxu0 0.0
    %162 = vmatpush.msra.mxu0 0.0
    %163 = vmatpush.msra.mxu0 0.0
    %v164 = vand.u32 %v59, 4294901760
    %165 = vmatpush.msra.mxu0 %v164
    %v166 = vand.u32 %v58, 4294901760
    %167 = vmatpush.msra.mxu0 %v166
    %v168 = vand.u32 %v57, 4294901760
    %169 = vmatpush.msra.mxu0 %v168
    %v170 = vand.u32 %v56, 4294901760
    %171 = vmatpush.msra.mxu0 %v170
    %v172 = vand.u32 %v150, 4294901760
    %v173 = vsub.f32 %v150, %v172
    %v174 = vand.u32 %v173, 4294901760
    %v175 = vsub.f32 %v173, %v174
    %v176 = vand.u32 %v175, 4294901760
    %177 = vmatmul.f32.gmra.mxu0 %v176
    %v178 = vpop.f32.mrf.mxu0
    %v179 = vadd.f32 0.0, %v178
    %180 = vdwg.mxu0
    %181 = vmatpush.msra.mxu0 0.0
    %182 = vmatpush.msra.mxu0 0.0
    %183 = vmatpush.msra.mxu0 0.0
    %184 = vmatpush.msra.mxu0 0.0
    %185 = vmatpush.msra.mxu0 0.0
    %186 = vmatpush.msra.mxu0 0.0
    %187 = vmatpush.msra.mxu0 0.0
    %188 = vmatpush.msra.mxu0 0.0
    %189 = vmatpush.msra.mxu0 0.0
    %190 = vmatpush.msra.mxu0 0.0
    %191 = vmatpush.msra.mxu0 0.0
    %192 = vmatpush.msra.mxu0 0.0
    %v193 = vand.u32 %v59, 4294901760
    %v194 = vsub.f32 %v59, %v193
    %v195 = vand.u32 %v194, 4294901760
    %v196 = vsub.f32 %v194, %v195
    %v197 = vand.u32 %v196, 4294901760
    %198 = vmatpush.msra.mxu0 %v197
    %v199 = vand.u32 %v58, 4294901760
    %v200 = vsub.f32 %v58, %v199
    %v201 = vand.u32 %v200, 4294901760
    %v202 = vsub.f32 %v200, %v201
    %v203 = vand.u32 %v202, 4294901760
    %204 = vmatpush.msra.mxu0 %v203
    %v205 = vand.u32 %v57, 4294901760
    %v206 = vsub.f32 %v57, %v205
    %v207 = vand.u32 %v206, 4294901760
    %v208 = vsub.f32 %v206, %v207
    %v209 = vand.u32 %v208, 4294901760
    %210 = vmatpush.msra.mxu0 %v209
    %v211 = vand.u32 %v56, 4294901760
    %v212 = vsub.f32 %v56, %v211
    %v213 = vand.u32 %v212, 4294901760
    %v214 = vsub.f32 %v212, %v213
    %v215 = vand.u32 %v214, 4294901760
    %216 = vmatpush.msra.mxu0 %v215
    %v217 = vand.u32 %v150, 4294901760
    %218 = vmatmul.f32.gmra.mxu0 %v217
    %v219 = vpop.f32.mrf.mxu0
    %v220 = vadd.f32 %v179, %v219
    %221 = vdwg.mxu0
    %222 = vmatpush.msra.mxu0 0.0
    %223 = vmatpush.msra.mxu0 0.0
    %224 = vmatpush.msra.mxu0 0.0
    %225 = vmatpush.msra.mxu0 0.0
    %226 = vmatpush.msra.mxu0 0.0
    %227 = vmatpush.msra.mxu0 0.0
    %228 = vmatpush.msra.mxu0 0.0
    %229 = vmatpush.msra.mxu0 0.0
    %230 = vmatpush.msra.mxu0 0.0
    %231 = vmatpush.msra.mxu0 0.0
    %232 = vmatpush.msra.mxu0 0.0
    %233 = vmatpush.msra.mxu0 0.0
    %v234 = vand.u32 %v59, 4294901760
    %v235 = vsub.f32 %v59, %v234
    %236 = vmatpush.msra.mxu0 %v235
    %v237 = vand.u32 %v58, 4294901760
    %v238 = vsub.f32 %v58, %v237
    %239 = vmatpush.msra.mxu0 %v238
    %v240 = vand.u32 %v57, 4294901760
    %v241 = vsub.f32 %v57, %v240
    %242 = vmatpush.msra.mxu0 %v241
    %v243 = vand.u32 %v56, 4294901760
    %v244 = vsub.f32 %v56, %v243
    %245 = vmatpush.msra.mxu0 %v244
    %v246 = vand.u32 %v150, 4294901760
    %v247 = vsub.f32 %v150, %v246
    %248 = vmatmul.f32.gmra.mxu0 %v247
    %v249 = vpop.f32.mrf.mxu0
    %v250 = vadd.f32 %v220, %v249
    %251 = vdwg.mxu0
    %252 = vmatpush.msra.mxu0 0.0
    %253 = vmatpush.msra.mxu0 0.0
    %254 = vmatpush.msra.mxu0 0.0
    %255 = vmatpush.msra.mxu0 0.0
    %256 = vmatpush.msra.mxu0 0.0
    %257 = vmatpush.msra.mxu0 0.0
    %258 = vmatpush.msra.mxu0 0.0
    %259 = vmatpush.msra.mxu0 0.0
    %260 = vmatpush.msra.mxu0 0.0
    %261 = vmatpush.msra.mxu0 0.0
    %262 = vmatpush.msra.mxu0 0.0
    %263 = vmatpush.msra.mxu0 0.0
    %v264 = vand.u32 %v59, 4294901760
    %265 = vmatpush.msra.mxu0 %v264
    %v266 = vand.u32 %v58, 4294901760
    %267 = vmatpush.msra.mxu0 %v266
    %v268 = vand.u32 %v57, 4294901760
    %269 = vmatpush.msra.mxu0 %v268
    %v270 = vand.u32 %v56, 4294901760
    %271 = vmatpush.msra.mxu0 %v270
    %v272 = vand.u32 %v150, 4294901760
    %v273 = vsub.f32 %v150, %v272
    %v274 = vand.u32 %v273, 4294901760
    %275 = vmatmul.f32.gmra.mxu0 %v274
    %v276 = vpop.f32.mrf.mxu0
    %v277 = vadd.f32 %v250, %v276
    %278 = vdwg.mxu0
    %279 = vmatpush.msra.mxu0 0.0
    %280 = vmatpush.msra.mxu0 0.0
    %281 = vmatpush.msra.mxu0 0.0
    %282 = vmatpush.msra.mxu0 0.0
    %283 = vmatpush.msra.mxu0 0.0
    %284 = vmatpush.msra.mxu0 0.0
    %285 = vmatpush.msra.mxu0 0.0
    %286 = vmatpush.msra.mxu0 0.0
    %287 = vmatpush.msra.mxu0 0.0
    %288 = vmatpush.msra.mxu0 0.0
    %289 = vmatpush.msra.mxu0 0.0
    %290 = vmatpush.msra.mxu0 0.0
    %v291 = vand.u32 %v59, 4294901760
    %v292 = vsub.f32 %v59, %v291
    %v293 = vand.u32 %v292, 4294901760
    %294 = vmatpush.msra.mxu0 %v293
    %v295 = vand.u32 %v58, 4294901760
    %v296 = vsub.f32 %v58, %v295
    %v297 = vand.u32 %v296, 4294901760
    %298 = vmatpush.msra.mxu0 %v297
    %v299 = vand.u32 %v57, 4294901760
    %v300 = vsub.f32 %v57, %v299
    %v301 = vand.u32 %v300, 4294901760
    %302 = vmatpush.msra.mxu0 %v301
    %v303 = vand.u32 %v56, 4294901760
    %v304 = vsub.f32 %v56, %v303
    %v305 = vand.u32 %v304, 4294901760
    %306 = vmatpush.msra.mxu0 %v305
    %v307 = vand.u32 %v150, 4294901760
    %308 = vmatmul.f32.gmra.mxu0 %v307
    %v309 = vpop.f32.mrf.mxu0
    %v310 = vadd.f32 %v277, %v309
    %311 = vdwg.mxu0
    %312 = vmatpush.msra.mxu0 0.0
    %313 = vmatpush.msra.mxu0 0.0
    %314 = vmatpush.msra.mxu0 0.0
    %315 = vmatpush.msra.mxu0 0.0
    %316 = vmatpush.msra.mxu0 0.0
    %317 = vmatpush.msra.mxu0 0.0
    %318 = vmatpush.msra.mxu0 0.0
    %319 = vmatpush.msra.mxu0 0.0
    %320 = vmatpush.msra.mxu0 0.0
    %321 = vmatpush.msra.mxu0 0.0
    %322 = vmatpush.msra.mxu0 0.0
    %323 = vmatpush.msra.mxu0 0.0
    %v324 = vand.u32 %v59, 4294901760
    %325 = vmatpush.msra.mxu0 %v324
    %v326 = vand.u32 %v58, 4294901760
    %327 = vmatpush.msra.mxu0 %v326
    %v328 = vand.u32 %v57, 4294901760
    %329 = vmatpush.msra.mxu0 %v328
    %v330 = vand.u32 %v56, 4294901760
    %331 = vmatpush.msra.mxu0 %v330
    %v332 = vand.u32 %v150, 4294901760
    %333 = vmatmul.f32.gmra.mxu0 %v332
    %v334 = vpop.f32.mrf.mxu0
    %v335 = vadd.f32 %v310, %v334
    %336 = vdwg.mxu0
    %v337 = vmax.f32 %v335, 0.0
    %v346 = vperm.slane %v95, %v126
    %v347 = vperm.slane %v98, %v128
    %v348 = vsel %vm130, %v347, %v346
    %v349 = vperm.slane %v101, %v132
    %v350 = vsel %vm134, %v349, %v348
    %v351 = vperm.slane %v104, %v136
    %v352 = vsel %vm138, %v351, %v350
    %v353 = vperm.slane %v107, %v126
    %v354 = vperm.slane %v110, %v128
    %v355 = vsel %vm130, %v354, %v353
    %v356 = vperm.slane %v113, %v132
    %v357 = vsel %vm134, %v356, %v355
    %v358 = vperm.slane %v116, %v136
    %v359 = vsel %vm138, %v358, %v357
    %v360 = vsel %vm147, %v359, %v352
    %v361 = vsel %vm149, %v360, 0
    %363 = vmatpush.msra.mxu0 0.0
    %364 = vmatpush.msra.mxu0 0.0
    %365 = vmatpush.msra.mxu0 0.0
    %366 = vmatpush.msra.mxu0 0.0
    %367 = vmatpush.msra.mxu0 0.0
    %368 = vmatpush.msra.mxu0 0.0
    %369 = vmatpush.msra.mxu0 0.0
    %370 = vmatpush.msra.mxu0 0.0
    %371 = vmatpush.msra.mxu0 0.0
    %372 = vmatpush.msra.mxu0 0.0
    %373 = vmatpush.msra.mxu0 0.0
    %374 = vmatpush.msra.mxu0 0.0
    %v375 = vand.u32 %v59, 4294901760
    %376 = vmatpush.msra.mxu0 %v375
    %v377 = vand.u32 %v58, 4294901760
    %378 = vmatpush.msra.mxu0 %v377
    %v379 = vand.u32 %v57, 4294901760
    %380 = vmatpush.msra.mxu0 %v379
    %v381 = vand.u32 %v56, 4294901760
    %382 = vmatpush.msra.mxu0 %v381
    %v383 = vand.u32 %v361, 4294901760
    %v384 = vsub.f32 %v361, %v383
    %v385 = vand.u32 %v384, 4294901760
    %v386 = vsub.f32 %v384, %v385
    %v387 = vand.u32 %v386, 4294901760
    %388 = vmatmul.f32.gmra.mxu0 %v387
    %v389 = vpop.f32.mrf.mxu0
    %v390 = vadd.f32 0.0, %v389
    %391 = vdwg.mxu0
    %392 = vmatpush.msra.mxu0 0.0
    %393 = vmatpush.msra.mxu0 0.0
    %394 = vmatpush.msra.mxu0 0.0
    %395 = vmatpush.msra.mxu0 0.0
    %396 = vmatpush.msra.mxu0 0.0
    %397 = vmatpush.msra.mxu0 0.0
    %398 = vmatpush.msra.mxu0 0.0
    %399 = vmatpush.msra.mxu0 0.0
    %400 = vmatpush.msra.mxu0 0.0
    %401 = vmatpush.msra.mxu0 0.0
    %402 = vmatpush.msra.mxu0 0.0
    %403 = vmatpush.msra.mxu0 0.0
    %v404 = vand.u32 %v59, 4294901760
    %v405 = vsub.f32 %v59, %v404
    %v406 = vand.u32 %v405, 4294901760
    %v407 = vsub.f32 %v405, %v406
    %v408 = vand.u32 %v407, 4294901760
    %409 = vmatpush.msra.mxu0 %v408
    %v410 = vand.u32 %v58, 4294901760
    %v411 = vsub.f32 %v58, %v410
    %v412 = vand.u32 %v411, 4294901760
    %v413 = vsub.f32 %v411, %v412
    %v414 = vand.u32 %v413, 4294901760
    %415 = vmatpush.msra.mxu0 %v414
    %v416 = vand.u32 %v57, 4294901760
    %v417 = vsub.f32 %v57, %v416
    %v418 = vand.u32 %v417, 4294901760
    %v419 = vsub.f32 %v417, %v418
    %v420 = vand.u32 %v419, 4294901760
    %421 = vmatpush.msra.mxu0 %v420
    %v422 = vand.u32 %v56, 4294901760
    %v423 = vsub.f32 %v56, %v422
    %v424 = vand.u32 %v423, 4294901760
    %v425 = vsub.f32 %v423, %v424
    %v426 = vand.u32 %v425, 4294901760
    %427 = vmatpush.msra.mxu0 %v426
    %v428 = vand.u32 %v361, 4294901760
    %429 = vmatmul.f32.gmra.mxu0 %v428
    %v430 = vpop.f32.mrf.mxu0
    %v431 = vadd.f32 %v390, %v430
    %432 = vdwg.mxu0
    %433 = vmatpush.msra.mxu0 0.0
    %434 = vmatpush.msra.mxu0 0.0
    %435 = vmatpush.msra.mxu0 0.0
    %436 = vmatpush.msra.mxu0 0.0
    %437 = vmatpush.msra.mxu0 0.0
    %438 = vmatpush.msra.mxu0 0.0
    %439 = vmatpush.msra.mxu0 0.0
    %440 = vmatpush.msra.mxu0 0.0
    %441 = vmatpush.msra.mxu0 0.0
    %442 = vmatpush.msra.mxu0 0.0
    %443 = vmatpush.msra.mxu0 0.0
    %444 = vmatpush.msra.mxu0 0.0
    %v445 = vand.u32 %v59, 4294901760
    %v446 = vsub.f32 %v59, %v445
    %447 = vmatpush.msra.mxu0 %v446
    %v448 = vand.u32 %v58, 4294901760
    %v449 = vsub.f32 %v58, %v448
    %450 = vmatpush.msra.mxu0 %v449
    %v451 = vand.u32 %v57, 4294901760
    %v452 = vsub.f32 %v57, %v451
    %453 = vmatpush.msra.mxu0 %v452
    %v454 = vand.u32 %v56, 4294901760
    %v455 = vsub.f32 %v56, %v454
    %456 = vmatpush.msra.mxu0 %v455
    %v457 = vand.u32 %v361, 4294901760
    %v458 = vsub.f32 %v361, %v457
    %459 = vmatmul.f32.gmra.mxu0 %v458
    %v460 = vpop.f32.mrf.mxu0
    %v461 = vadd.f32 %v431, %v460
    %462 = vdwg.mxu0
    %463 = vmatpush.msra.mxu0 0.0
    %464 = vmatpush.msra.mxu0 0.0
    %465 = vmatpush.msra.mxu0 0.0
    %466 = vmatpush.msra.mxu0 0.0
    %467 = vmatpush.msra.mxu0 0.0
    %468 = vmatpush.msra.mxu0 0.0
    %469 = vmatpush.msra.mxu0 0.0
    %470 = vmatpush.msra.mxu0 0.0
    %471 = vmatpush.msra.mxu0 0.0
    %472 = vmatpush.msra.mxu0 0.0
    %473 = vmatpush.msra.mxu0 0.0
    %474 = vmatpush.msra.mxu0 0.0
    %v475 = vand.u32 %v59, 4294901760
    %476 = vmatpush.msra.mxu0 %v475
    %v477 = vand.u32 %v58, 4294901760
    %478 = vmatpush.msra.mxu0 %v477
    %v479 = vand.u32 %v57, 4294901760
    %480 = vmatpush.msra.mxu0 %v479
    %v481 = vand.u32 %v56, 4294901760
    %482 = vmatpush.msra.mxu0 %v481
    %v483 = vand.u32 %v361, 4294901760
    %v484 = vsub.f32 %v361, %v483
    %v485 = vand.u32 %v484, 4294901760
    %486 = vmatmul.f32.gmra.mxu0 %v485
    %v487 = vpop.f32.mrf.mxu0
    %v488 = vadd.f32 %v461, %v487
    %489 = vdwg.mxu0
    %490 = vmatpush.msra.mxu0 0.0
    %491 = vmatpush.msra.mxu0 0.0
    %492 = vmatpush.msra.mxu0 0.0
    %493 = vmatpush.msra.mxu0 0.0
    %494 = vmatpush.msra.mxu0 0.0
    %495 = vmatpush.msra.mxu0 0.0
    %496 = vmatpush.msra.mxu0 0.0
    %497 = vmatpush.msra.mxu0 0.0
    %498 = vmatpush.msra.mxu0 0.0
    %499 = vmatpush.msra.mxu0 0.0
    %500 = vmatpush.msra.mxu0 0.0
    %501 = vmatpush.msra.mxu0 0.0
    %v502 = vand.u32 %v59, 4294901760
    %v503 = vsub.f32 %v59, %v502
    %v504 = vand.u32 %v503, 4294901760
    %505 = vmatpush.msra.mxu0 %v504
    %v506 = vand.u32 %v58, 4294901760
    %v507 = vsub.f32 %v58, %v506
    %v508 = vand.u32 %v507, 4294901760
    %509 = vmatpush.msra.mxu0 %v508
    %v510 = vand.u32 %v57, 4294901760
    %v511 = vsub.f32 %v57, %v510
    %v512 = vand.u32 %v511, 4294901760
    %513 = vmatpush.msra.mxu0 %v512
    %v514 = vand.u32 %v56, 4294901760
    %v515 = vsub.f32 %v56, %v514
    %v516 = vand.u32 %v515, 4294901760
    %517 = vmatpush.msra.mxu0 %v516
    %v518 = vand.u32 %v361, 4294901760
    %519 = vmatmul.f32.gmra.mxu0 %v518
    %v520 = vpop.f32.mrf.mxu0
    %v521 = vadd.f32 %v488, %v520
    %522 = vdwg.mxu0
    %523 = vmatpush.msra.mxu0 0.0
    %524 = vmatpush.msra.mxu0 0.0
    %525 = vmatpush.msra.mxu0 0.0
    %526 = vmatpush.msra.mxu0 0.0
    %527 = vmatpush.msra.mxu0 0.0
    %528 = vmatpush.msra.mxu0 0.0
    %529 = vmatpush.msra.mxu0 0.0
    %530 = vmatpush.msra.mxu0 0.0
    %531 = vmatpush.msra.mxu0 0.0
    %532 = vmatpush.msra.mxu0 0.0
    %533 = vmatpush.msra.mxu0 0.0
    %534 = vmatpush.msra.mxu0 0.0
    %v535 = vand.u32 %v59, 4294901760
    %536 = vmatpush.msra.mxu0 %v535
    %v537 = vand.u32 %v58, 4294901760
    %538 = vmatpush.msra.mxu0 %v537
    %v539 = vand.u32 %v57, 4294901760
    %540 = vmatpush.msra.mxu0 %v539
    %v541 = vand.u32 %v56, 4294901760
    %542 = vmatpush.msra.mxu0 %v541
    %v543 = vand.u32 %v361, 4294901760
    %544 = vmatmul.f32.gmra.mxu0 %v543
    %v545 = vpop.f32.mrf.mxu0
    %v546 = vadd.f32 %v521, %v545
    %547 = vdwg.mxu0
    %v548 = vmax.f32 %v546, 0.0
    %vm549 = vcmask 15360
    %v551 = vsel %vm549, %v548, 0
    %vm553 = vcmask 1041408
    %v555 = vsel %vm553, %v60, 0
    %557 = vmatpush.msra.mxu0 0.0
    %558 = vmatpush.msra.mxu0 0.0
    %559 = vmatpush.msra.mxu0 0.0
    %560 = vmatpush.msra.mxu0 0.0
    %561 = vmatpush.msra.mxu0 0.0
    %562 = vmatpush.msra.mxu0 0.0
    %563 = vmatpush.msra.mxu0 0.0
    %564 = vmatpush.msra.mxu0 0.0
    %565 = vmatpush.msra.mxu0 0.0
    %566 = vmatpush.msra.mxu0 0.0
    %567 = vmatpush.msra.mxu0 0.0
    %568 = vmatpush.msra.mxu0 0.0
    %569 = vmatpush.msra.mxu0 0.0
    %570 = vmatpush.msra.mxu0 0.0
    %571 = vmatpush.msra.mxu0 0.0
    %v572 = vand.u32 %v555, 4294901760
    %573 = vmatpush.msra.mxu0 %v572
    %v574 = vand.u32 %v551, 4294901760
    %v575 = vsub.f32 %v551, %v574
    %v576 = vand.u32 %v575, 4294901760
    %v577 = vsub.f32 %v575, %v576
    %v578 = vand.u32 %v577, 4294901760
    %579 = vmatmul.f32.gmra.mxu0 %v578
    %v580 = vpop.f32.mrf.mxu0
    %v581 = vadd.f32 0.0, %v580
    %582 = vdwg.mxu0
    %583 = vmatpush.msra.mxu0 0.0
    %584 = vmatpush.msra.mxu0 0.0
    %585 = vmatpush.msra.mxu0 0.0
    %586 = vmatpush.msra.mxu0 0.0
    %587 = vmatpush.msra.mxu0 0.0
    %588 = vmatpush.msra.mxu0 0.0
    %589 = vmatpush.msra.mxu0 0.0
    %590 = vmatpush.msra.mxu0 0.0
    %591 = vmatpush.msra.mxu0 0.0
    %592 = vmatpush.msra.mxu0 0.0
    %593 = vmatpush.msra.mxu0 0.0
    %594 = vmatpush.msra.mxu0 0.0
    %595 = vmatpush.msra.mxu0 0.0
    %596 = vmatpush.msra.mxu0 0.0
    %597 = vmatpush.msra.mxu0 0.0
    %v598 = vand.u32 %v555, 4294901760
    %v599 = vsub.f32 %v555, %v598
    %v600 = vand.u32 %v599, 4294901760
    %v601 = vsub.f32 %v599, %v600
    %v602 = vand.u32 %v601, 4294901760
    %603 = vmatpush.msra.mxu0 %v602
    %v604 = vand.u32 %v551, 4294901760
    %605 = vmatmul.f32.gmra.mxu0 %v604
    %v606 = vpop.f32.mrf.mxu0
    %v607 = vadd.f32 %v581, %v606
    %608 = vdwg.mxu0
    %609 = vmatpush.msra.mxu0 0.0
    %610 = vmatpush.msra.mxu0 0.0
    %611 = vmatpush.msra.mxu0 0.0
    %612 = vmatpush.msra.mxu0 0.0
    %613 = vmatpush.msra.mxu0 0.0
    %614 = vmatpush.msra.mxu0 0.0
    %615 = vmatpush.msra.mxu0 0.0
    %616 = vmatpush.msra.mxu0 0.0
    %617 = vmatpush.msra.mxu0 0.0
    %618 = vmatpush.msra.mxu0 0.0
    %619 = vmatpush.msra.mxu0 0.0
    %620 = vmatpush.msra.mxu0 0.0
    %621 = vmatpush.msra.mxu0 0.0
    %622 = vmatpush.msra.mxu0 0.0
    %623 = vmatpush.msra.mxu0 0.0
    %v624 = vand.u32 %v555, 4294901760
    %v625 = vsub.f32 %v555, %v624
    %626 = vmatpush.msra.mxu0 %v625
    %v627 = vand.u32 %v551, 4294901760
    %v628 = vsub.f32 %v551, %v627
    %629 = vmatmul.f32.gmra.mxu0 %v628
    %v630 = vpop.f32.mrf.mxu0
    %v631 = vadd.f32 %v607, %v630
    %632 = vdwg.mxu0
    %633 = vmatpush.msra.mxu0 0.0
    %634 = vmatpush.msra.mxu0 0.0
    %635 = vmatpush.msra.mxu0 0.0
    %636 = vmatpush.msra.mxu0 0.0
    %637 = vmatpush.msra.mxu0 0.0
    %638 = vmatpush.msra.mxu0 0.0
    %639 = vmatpush.msra.mxu0 0.0
    %640 = vmatpush.msra.mxu0 0.0
    %641 = vmatpush.msra.mxu0 0.0
    %642 = vmatpush.msra.mxu0 0.0
    %643 = vmatpush.msra.mxu0 0.0
    %644 = vmatpush.msra.mxu0 0.0
    %645 = vmatpush.msra.mxu0 0.0
    %646 = vmatpush.msra.mxu0 0.0
    %647 = vmatpush.msra.mxu0 0.0
    %v648 = vand.u32 %v555, 4294901760
    %649 = vmatpush.msra.mxu0 %v648
    %v650 = vand.u32 %v551, 4294901760
    %v651 = vsub.f32 %v551, %v650
    %v652 = vand.u32 %v651, 4294901760
    %653 = vmatmul.f32.gmra.mxu0 %v652
    %v654 = vpop.f32.mrf.mxu0
    %v655 = vadd.f32 %v631, %v654
    %656 = vdwg.mxu0
    %657 = vmatpush.msra.mxu0 0.0
    %658 = vmatpush.msra.mxu0 0.0
    %659 = vmatpush.msra.mxu0 0.0
    %660 = vmatpush.msra.mxu0 0.0
    %661 = vmatpush.msra.mxu0 0.0
    %662 = vmatpush.msra.mxu0 0.0
    %663 = vmatpush.msra.mxu0 0.0
    %664 = vmatpush.msra.mxu0 0.0
    %665 = vmatpush.msra.mxu0 0.0
    %666 = vmatpush.msra.mxu0 0.0
    %667 = vmatpush.msra.mxu0 0.0
    %668 = vmatpush.msra.mxu0 0.0
    %669 = vmatpush.msra.mxu0 0.0
    %670 = vmatpush.msra.mxu0 0.0
    %671 = vmatpush.msra.mxu0 0.0
    %v672 = vand.u32 %v555, 4294901760
    %v673 = vsub.f32 %v555, %v672
    %v674 = vand.u32 %v673, 4294901760
    %675 = vmatpush.msra.mxu0 %v674
    %v676 = vand.u32 %v551, 4294901760
    %677 = vmatmul.f32.gmra.mxu0 %v676
    %v678 = vpop.f32.mrf.mxu0
    %v679 = vadd.f32 %v655, %v678
    %680 = vdwg.mxu0
    %681 = vmatpush.msra.mxu0 0.0
    %682 = vmatpush.msra.mxu0 0.0
    %683 = vmatpush.msra.mxu0 0.0
    %684 = vmatpush.msra.mxu0 0.0
    %685 = vmatpush.msra.mxu0 0.0
    %686 = vmatpush.msra.mxu0 0.0
    %687 = vmatpush.msra.mxu0 0.0
    %688 = vmatpush.msra.mxu0 0.0
    %689 = vmatpush.msra.mxu0 0.0
    %690 = vmatpush.msra.mxu0 0.0
    %691 = vmatpush.msra.mxu0 0.0
    %692 = vmatpush.msra.mxu0 0.0
    %693 = vmatpush.msra.mxu0 0.0
    %694 = vmatpush.msra.mxu0 0.0
    %695 = vmatpush.msra.mxu0 0.0
    %v696 = vand.u32 %v555, 4294901760
    %697 = vmatpush.msra.mxu0 %v696
    %v698 = vand.u32 %v551, 4294901760
    %699 = vmatmul.f32.gmra.mxu0 %v698
    %v700 = vpop.f32.mrf.mxu0
    %v701 = vadd.f32 %v679, %v700
    %702 = vdwg.mxu0
    %v704 = vsel %vm549, %v337, 0
    %706 = vmatpush.msra.mxu0 0.0
    %707 = vmatpush.msra.mxu0 0.0
    %708 = vmatpush.msra.mxu0 0.0
    %709 = vmatpush.msra.mxu0 0.0
    %710 = vmatpush.msra.mxu0 0.0
    %711 = vmatpush.msra.mxu0 0.0
    %712 = vmatpush.msra.mxu0 0.0
    %713 = vmatpush.msra.mxu0 0.0
    %714 = vmatpush.msra.mxu0 0.0
    %715 = vmatpush.msra.mxu0 0.0
    %716 = vmatpush.msra.mxu0 0.0
    %717 = vmatpush.msra.mxu0 0.0
    %718 = vmatpush.msra.mxu0 0.0
    %719 = vmatpush.msra.mxu0 0.0
    %720 = vmatpush.msra.mxu0 0.0
    %v721 = vand.u32 %v555, 4294901760
    %722 = vmatpush.msra.mxu0 %v721
    %v723 = vand.u32 %v704, 4294901760
    %v724 = vsub.f32 %v704, %v723
    %v725 = vand.u32 %v724, 4294901760
    %v726 = vsub.f32 %v724, %v725
    %v727 = vand.u32 %v726, 4294901760
    %728 = vmatmul.f32.gmra.mxu0 %v727
    %v729 = vpop.f32.mrf.mxu0
    %v730 = vadd.f32 %v701, %v729
    %731 = vdwg.mxu0
    %732 = vmatpush.msra.mxu0 0.0
    %733 = vmatpush.msra.mxu0 0.0
    %734 = vmatpush.msra.mxu0 0.0
    %735 = vmatpush.msra.mxu0 0.0
    %736 = vmatpush.msra.mxu0 0.0
    %737 = vmatpush.msra.mxu0 0.0
    %738 = vmatpush.msra.mxu0 0.0
    %739 = vmatpush.msra.mxu0 0.0
    %740 = vmatpush.msra.mxu0 0.0
    %741 = vmatpush.msra.mxu0 0.0
    %742 = vmatpush.msra.mxu0 0.0
    %743 = vmatpush.msra.mxu0 0.0
    %744 = vmatpush.msra.mxu0 0.0
    %745 = vmatpush.msra.mxu0 0.0
    %746 = vmatpush.msra.mxu0 0.0
    %v747 = vand.u32 %v555, 4294901760
    %v748 = vsub.f32 %v555, %v747
    %v749 = vand.u32 %v748, 4294901760
    %v750 = vsub.f32 %v748, %v749
    %v751 = vand.u32 %v750, 4294901760
    %752 = vmatpush.msra.mxu0 %v751
    %v753 = vand.u32 %v704, 4294901760
    %754 = vmatmul.f32.gmra.mxu0 %v753
    %v755 = vpop.f32.mrf.mxu0
    %v756 = vadd.f32 %v730, %v755
    %757 = vdwg.mxu0
    %758 = vmatpush.msra.mxu0 0.0
    %759 = vmatpush.msra.mxu0 0.0
    %760 = vmatpush.msra.mxu0 0.0
    %761 = vmatpush.msra.mxu0 0.0
    %762 = vmatpush.msra.mxu0 0.0
    %763 = vmatpush.msra.mxu0 0.0
    %764 = vmatpush.msra.mxu0 0.0
    %765 = vmatpush.msra.mxu0 0.0
    %766 = vmatpush.msra.mxu0 0.0
    %767 = vmatpush.msra.mxu0 0.0
    %768 = vmatpush.msra.mxu0 0.0
    %769 = vmatpush.msra.mxu0 0.0
    %770 = vmatpush.msra.mxu0 0.0
    %771 = vmatpush.msra.mxu0 0.0
    %772 = vmatpush.msra.mxu0 0.0
    %v773 = vand.u32 %v555, 4294901760
    %v774 = vsub.f32 %v555, %v773
    %775 = vmatpush.msra.mxu0 %v774
    %v776 = vand.u32 %v704, 4294901760
    %v777 = vsub.f32 %v704, %v776
    %778 = vmatmul.f32.gmra.mxu0 %v777
    %v779 = vpop.f32.mrf.mxu0
    %v780 = vadd.f32 %v756, %v779
    %781 = vdwg.mxu0
    %782 = vmatpush.msra.mxu0 0.0
    %783 = vmatpush.msra.mxu0 0.0
    %784 = vmatpush.msra.mxu0 0.0
    %785 = vmatpush.msra.mxu0 0.0
    %786 = vmatpush.msra.mxu0 0.0
    %787 = vmatpush.msra.mxu0 0.0
    %788 = vmatpush.msra.mxu0 0.0
    %789 = vmatpush.msra.mxu0 0.0
    %790 = vmatpush.msra.mxu0 0.0
    %791 = vmatpush.msra.mxu0 0.0
    %792 = vmatpush.msra.mxu0 0.0
    %793 = vmatpush.msra.mxu0 0.0
    %794 = vmatpush.msra.mxu0 0.0
    %795 = vmatpush.msra.mxu0 0.0
    %796 = vmatpush.msra.mxu0 0.0
    %v797 = vand.u32 %v555, 4294901760
    %798 = vmatpush.msra.mxu0 %v797
    %v799 = vand.u32 %v704, 4294901760
    %v800 = vsub.f32 %v704, %v799
    %v801 = vand.u32 %v800, 4294901760
    %802 = vmatmul.f32.gmra.mxu0 %v801
    %v803 = vpop.f32.mrf.mxu0
    %v804 = vadd.f32 %v780, %v803
    %805 = vdwg.mxu0
    %806 = vmatpush.msra.mxu0 0.0
    %807 = vmatpush.msra.mxu0 0.0
    %808 = vmatpush.msra.mxu0 0.0
    %809 = vmatpush.msra.mxu0 0.0
    %810 = vmatpush.msra.mxu0 0.0
    %811 = vmatpush.msra.mxu0 0.0
    %812 = vmatpush.msra.mxu0 0.0
    %813 = vmatpush.msra.mxu0 0.0
    %814 = vmatpush.msra.mxu0 0.0
    %815 = vmatpush.msra.mxu0 0.0
    %816 = vmatpush.msra.mxu0 0.0
    %817 = vmatpush.msra.mxu0 0.0
    %818 = vmatpush.msra.mxu0 0.0
    %819 = vmatpush.msra.mxu0 0.0
    %820 = vmatpush.msra.mxu0 0.0
    %v821 = vand.u32 %v555, 4294901760
    %v822 = vsub.f32 %v555, %v821
    %v823 = vand.u32 %v822, 4294901760
    %824 = vmatpush.msra.mxu0 %v823
    %v825 = vand.u32 %v704, 4294901760
    %826 = vmatmul.f32.gmra.mxu0 %v825
    %v827 = vpop.f32.mrf.mxu0
    %v828 = vadd.f32 %v804, %v827
    %829 = vdwg.mxu0
    %830 = vmatpush.msra.mxu0 0.0
    %831 = vmatpush.msra.mxu0 0.0
    %832 = vmatpush.msra.mxu0 0.0
    %833 = vmatpush.msra.mxu0 0.0
    %834 = vmatpush.msra.mxu0 0.0
    %835 = vmatpush.msra.mxu0 0.0
    %836 = vmatpush.msra.mxu0 0.0
    %837 = vmatpush.msra.mxu0 0.0
    %838 = vmatpush.msra.mxu0 0.0
    %839 = vmatpush.msra.mxu0 0.0
    %840 = vmatpush.msra.mxu0 0.0
    %841 = vmatpush.msra.mxu0 0.0
    %842 = vmatpush.msra.mxu0 0.0
    %843 = vmatpush.msra.mxu0 0.0
    %844 = vmatpush.msra.mxu0 0.0
    %v845 = vand.u32 %v555, 4294901760
    %846 = vmatpush.msra.mxu0 %v845
    %v847 = vand.u32 %v704, 4294901760
    %848 = vmatmul.f32.gmra.mxu0 %v847
    %v849 = vpop.f32.mrf.mxu0
    %v850 = vadd.f32 %v828, %v849
    %851 = vdwg.mxu0
    %v852 = vxor.u32 %v850, 2147483648
    %v853 = vmul.f32 %v852, 1.442695
    %v854 = vpow.pop %v853
    %v855 = vadd.f32 %v854, 1.0
    %v856 = vrcp.pop %v855
    %v857 = vmul.f32 %v855, %v856
    %v858 = vsub.f32 1.0, %v857
    %v859 = vmul.f32 %v856, %v858
    %v860 = vadd.f32 %v856, %v859
    %vm861 = vweird.f32 %v855
    %vm862 = vweird.f32 %v856
    %vm863 = vmor %vm861, %vm862
    %v864 = vsel %vm863, %v856, %v860
    %v865 = vand.u32 2147483647, %v855
    %vm866 = vcmp.eq.f32.partialorder %v865, 8.507059e+37
    %v867 = vand.u32 %v855, 2147483648
    %v868 = vor.u32 1.1754944e-38, %v867
    %v869 = vsel %vm866, %v868, %v864
    %v870 = vmul.f32 1.0, %v869
    %v871 = vperm.slane %v870, 0
    %v872 = vlaneseq
    %v873 = vshrl.u32 %v872, 7
    %875 = vset.pattern.permute.xlu0 %v873
    %876 = vperm.xlu0 %875, %v871
    %v877 = vpop.permute.xlu0 %876
    %v878 = vlaneseq
    %v879 = vshrl.u32 %v878, 7
    %v880 = vadd.s32 %v879, 8
    %881 = vset.pattern.permute.xlu0 %v880
    %882 = vperm.xlu0 %881, %v871
    %v883 = vpop.permute.xlu0 %882
    %v884 = vlaneseq
    %v885 = vshrl.u32 %v884, 7
    %v886 = vadd.s32 %v885, 16
    %887 = vset.pattern.permute.xlu0 %v886
    %888 = vperm.xlu0 %887, %v871
    %v889 = vpop.permute.xlu0 %888
    %v890 = vlaneseq
    %v891 = vshrl.u32 %v890, 7
    %v892 = vadd.s32 %v891, 24
    %893 = vset.pattern.permute.xlu0 %v892
    %894 = vperm.xlu0 %893, %v871
    %v895 = vpop.permute.xlu0 %894
    %v896 = vperm.slane %v870, 1
    %v897 = vlaneseq
    %v898 = vshrl.u32 %v897, 7
    %900 = vset.pattern.permute.xlu0 %v898
    %901 = vperm.xlu0 %900, %v896
    %v902 = vpop.permute.xlu0 %901
    %v903 = vlaneseq
    %v904 = vshrl.u32 %v903, 7
    %v905 = vadd.s32 %v904, 8
    %906 = vset.pattern.permute.xlu0 %v905
    %907 = vperm.xlu0 %906, %v896
    %v908 = vpop.permute.xlu0 %907
    %v909 = vlaneseq
    %v910 = vshrl.u32 %v909, 7
    %v911 = vadd.s32 %v910, 16
    %912 = vset.pattern.permute.xlu0 %v911
    %913 = vperm.xlu0 %912, %v896
    %v914 = vpop.permute.xlu0 %913
    %v915 = vlaneseq
    %v916 = vshrl.u32 %v915, 7
    %v917 = vadd.s32 %v916, 24
    %918 = vset.pattern.permute.xlu0 %v917
    %919 = vperm.xlu0 %918, %v896
    %v920 = vpop.permute.xlu0 %919
    %v921 = vmul.f32 %v40, %v877
    %v922 = vmul.f32 %v41, %v877
    %v923 = vmul.f32 %v42, %v883
    %v924 = vmul.f32 %v43, %v883
    %v925 = vmul.f32 %v44, %v889
    %v926 = vmul.f32 %v45, %v889
    %v927 = vmul.f32 %v46, %v895
    %v928 = vmul.f32 %v47, %v895
    %v929 = vmul.f32 %v48, %v902
    %v930 = vmul.f32 %v49, %v902
    %v931 = vmul.f32 %v50, %v908
    %v932 = vmul.f32 %v51, %v908
    %v933 = vmul.f32 %v52, %v914
    %v934 = vmul.f32 %v53, %v914
    %v935 = vmul.f32 %v54, %v920
    %v936 = vmul.f32 %v55, %v920
    %v937 = vadd.f32 %v921, %v923
    %v938 = vadd.f32 %v937, %v925
    %v939 = vadd.f32 %v938, %v927
    %v940 = vrot.slane %v939, 4
    %v941 = vadd.f32 %v939, %v940
    %v942 = vrot.slane %v941, 2
    %v943 = vadd.f32 %v941, %v942
    %v944 = vrot.slane %v943, 1
    %v945 = vadd.f32 %v943, %v944
    %v946 = vadd.f32 %v922, %v924
    %v947 = vadd.f32 %v946, %v926
    %v948 = vadd.f32 %v947, %v928
    %v949 = vrot.slane %v948, 4
    %v950 = vadd.f32 %v948, %v949
    %v951 = vrot.slane %v950, 2
    %v952 = vadd.f32 %v950, %v951
    %v953 = vrot.slane %v952, 1
    %v954 = vadd.f32 %v952, %v953
    %v955 = vadd.f32 %v929, %v931
    %v956 = vadd.f32 %v955, %v933
    %v957 = vadd.f32 %v956, %v935
    %v958 = vrot.slane %v957, 4
    %v959 = vadd.f32 %v957, %v958
    %v960 = vrot.slane %v959, 2
    %v961 = vadd.f32 %v959, %v960
    %v962 = vrot.slane %v961, 1
    %v963 = vadd.f32 %v961, %v962
    %v964 = vadd.f32 %v930, %v932
    %v965 = vadd.f32 %v964, %v934
    %v966 = vadd.f32 %v965, %v936
    %v967 = vrot.slane %v966, 4
    %v968 = vadd.f32 %v966, %v967
    %v969 = vrot.slane %v968, 2
    %v970 = vadd.f32 %v968, %v969
    %v971 = vrot.slane %v970, 1
    %v972 = vadd.f32 %v970, %v971
    %v973 = vadd.f32 %v945, 0.0
    %v974 = vadd.f32 %v954, 0.0
    %v975 = vadd.f32 %v963, 0.0
    %v976 = vadd.f32 %v972, 0.0
    %v977 = vmax.f32 %v921, %v923
    %v978 = vmax.f32 %v977, %v925
    %v979 = vmax.f32 %v978, %v927
    %v980 = vrot.slane %v979, 4
    %v981 = vmax.f32 %v979, %v980
    %v982 = vrot.slane %v981, 2
    %v983 = vmax.f32 %v981, %v982
    %v984 = vrot.slane %v983, 1
    %v985 = vmax.f32 %v983, %v984
    %v986 = vmax.f32 %v922, %v924
    %v987 = vmax.f32 %v986, %v926
    %v988 = vmax.f32 %v987, %v928
    %v989 = vrot.slane %v988, 4
    %v990 = vmax.f32 %v988, %v989
    %v991 = vrot.slane %v990, 2
    %v992 = vmax.f32 %v990, %v991
    %v993 = vrot.slane %v992, 1
    %v994 = vmax.f32 %v992, %v993
    %v995 = vmax.f32 %v929, %v931
    %v996 = vmax.f32 %v995, %v933
    %v997 = vmax.f32 %v996, %v935
    %v998 = vrot.slane %v997, 4
    %v999 = vmax.f32 %v997, %v998
    %v1000 = vrot.slane %v999, 2
    %v1001 = vmax.f32 %v999, %v1000
    %v1002 = vrot.slane %v1001, 1
    %v1003 = vmax.f32 %v1001, %v1002
    %v1004 = vmax.f32 %v930, %v932
    %v1005 = vmax.f32 %v1004, %v934
    %v1006 = vmax.f32 %v1005, %v936
    %v1007 = vrot.slane %v1006, 4
    %v1008 = vmax.f32 %v1006, %v1007
    %v1009 = vrot.slane %v1008, 2
    %v1010 = vmax.f32 %v1008, %v1009
    %v1011 = vrot.slane %v1010, 1
    %v1012 = vmax.f32 %v1010, %v1011
    %v1013 = vmul.f32 %v973, 0.03125
    %v1014 = vmul.f32 %v974, 0.03125
    %v1015 = vmul.f32 %v975, 0.03125
    %v1016 = vmul.f32 %v976, 0.03125
    %vm1017 = vcmask 179200
    %1018 = vst.msk [vmem:[#allocation2] sm:$0xff] %vm1017, 0.0
    %1019 = vst.msk [vmem:[#allocation2 + $0x8] sm:$0xff] %vm1017, 0.0
    %vm1020 = vcmask 177152
    %1021 = vst.msk [vmem:[#allocation2 + $0x10] sm:$0x3f] %vm1020, 0.0
    %1022 = vst.msk [vmem:[#allocation2 + $0x18] sm:$0xff] %vm1017, 0.0
    %1023 = vst.msk [vmem:[#allocation2 + $0x20] sm:$0xff] %vm1017, 0.0
    %1024 = vst.msk [vmem:[#allocation2 + $0x28] sm:$0x3f] %vm1020, 0.0
    %1025 = vst.msk [vmem:[#allocation2 + $0x30] sm:$0xff] %vm1017, 0.0
    %1026 = vst.msk [vmem:[#allocation2 + $0x38] sm:$0xff] %vm1017, 0.0
    %1027 = vst.msk [vmem:[#allocation2 + $0x40] sm:$0x3f] %vm1020, 0.0
    %1028 = vst.msk [vmem:[#allocation2 + $0x48] sm:$0xff] %vm1017, 0.0
    %1029 = vst.msk [vmem:[#allocation2 + $0x50] sm:$0xff] %vm1017, 0.0
    %1030 = vst.msk [vmem:[#allocation2 + $0x58] sm:$0x3f] %vm1020, 0.0
    %1033 = vrot.lane.b32.xlu0 %v1013, 3
    %v1034 = vpop.permute.xlu0 %1033
    %1035 = vrot.lane.b32.xlu0 %v1015, 3
    %v1036 = vpop.permute.xlu0 %1035
    %vm1039 = vcmask 147480
    %1040 = vst.msk [vmem:[#allocation2 + $0x3] sm:$0x1] %vm1039, %v1034
    %1041 = vst.msk [vmem:[#allocation2 + $0x1b] sm:$0x1] %vm1039, %v1036
    %1044 = vrot.lane.b32.xlu0 %v985, 3
    %v1045 = vpop.permute.xlu0 %1044
    %1046 = vrot.lane.b32.xlu0 %v1003, 3
    %v1047 = vpop.permute.xlu0 %1046
    %s1050 = scalar_lea.vmem [#allocation2], 48
    %1051 = vst.msk [vmem:[%s1050 + $0x3] sm:$0x1] %vm1039, %v1045
    %1052 = vst.msk [vmem:[%s1050 + $0x1b] sm:$0x1] %vm1039, %v1047
    %1053 = vrot.lane.b32.xlu0 %v1013, 115
    %v1054 = vpop.permute.xlu0 %1053
    %1055 = vrot.lane.b32.xlu0 %v1015, 115
    %v1056 = vpop.permute.xlu0 %1055
    %1059 = vst.msk [vmem:[#allocation2 + $0x4] sm:$0x1] %vm1039, %v1054
    %1060 = vst.msk [vmem:[#allocation2 + $0x1c] sm:$0x1] %vm1039, %v1056
    %1061 = vrot.lane.b32.xlu0 %v985, 115
    %v1062 = vpop.permute.xlu0 %1061
    %1063 = vrot.lane.b32.xlu0 %v1003, 115
    %v1064 = vpop.permute.xlu0 %1063
    %1067 = vst.msk [vmem:[%s1050 + $0x4] sm:$0x1] %vm1039, %v1062
    %1068 = vst.msk [vmem:[%s1050 + $0x1c] sm:$0x1] %vm1039, %v1064
    %1069 = vrot.lane.b32.xlu0 %v1013, 99
    %v1070 = vpop.permute.xlu0 %1069
    %1071 = vrot.lane.b32.xlu0 %v1015, 99
    %v1072 = vpop.permute.xlu0 %1071
    %1075 = vst.msk [vmem:[#allocation2 + $0x5] sm:$0x1] %vm1039, %v1070
    %1076 = vst.msk [vmem:[#allocation2 + $0x1d] sm:$0x1] %vm1039, %v1072
    %1077 = vrot.lane.b32.xlu0 %v985, 99
    %v1078 = vpop.permute.xlu0 %1077
    %1079 = vrot.lane.b32.xlu0 %v1003, 99
    %v1080 = vpop.permute.xlu0 %1079
    %1083 = vst.msk [vmem:[%s1050 + $0x5] sm:$0x1] %vm1039, %v1078
    %1084 = vst.msk [vmem:[%s1050 + $0x1d] sm:$0x1] %vm1039, %v1080
    %1085 = vrot.lane.b32.xlu0 %v1013, 83
    %v1086 = vpop.permute.xlu0 %1085
    %1087 = vrot.lane.b32.xlu0 %v1015, 83
    %v1088 = vpop.permute.xlu0 %1087
    %1091 = vst.msk [vmem:[#allocation2 + $0x6] sm:$0x1] %vm1039, %v1086
    %1092 = vst.msk [vmem:[#allocation2 + $0x1e] sm:$0x1] %vm1039, %v1088
    %1093 = vrot.lane.b32.xlu0 %v985, 83
    %v1094 = vpop.permute.xlu0 %1093
    %1095 = vrot.lane.b32.xlu0 %v1003, 83
    %v1096 = vpop.permute.xlu0 %1095
    %1099 = vst.msk [vmem:[%s1050 + $0x6] sm:$0x1] %vm1039, %v1094
    %1100 = vst.msk [vmem:[%s1050 + $0x1e] sm:$0x1] %vm1039, %v1096
    %1101 = vrot.lane.b32.xlu0 %v1013, 67
    %v1102 = vpop.permute.xlu0 %1101
    %1103 = vrot.lane.b32.xlu0 %v1015, 67
    %v1104 = vpop.permute.xlu0 %1103
    %1107 = vst.msk [vmem:[#allocation2 + $0x7] sm:$0x1] %vm1039, %v1102
    %1108 = vst.msk [vmem:[#allocation2 + $0x1f] sm:$0x1] %vm1039, %v1104
    %1109 = vrot.lane.b32.xlu0 %v985, 67
    %v1110 = vpop.permute.xlu0 %1109
    %1111 = vrot.lane.b32.xlu0 %v1003, 67
    %v1112 = vpop.permute.xlu0 %1111
    %1115 = vst.msk [vmem:[%s1050 + $0x7] sm:$0x1] %vm1039, %v1110
    %1116 = vst.msk [vmem:[%s1050 + $0x1f] sm:$0x1] %vm1039, %v1112
    %1117 = vrot.lane.b32.xlu0 %v1013, 51
    %v1118 = vpop.permute.xlu0 %1117
    %1119 = vrot.lane.b32.xlu0 %v1015, 51
    %v1120 = vpop.permute.xlu0 %1119
    %1123 = vst.msk [vmem:[#allocation2 + $0x8] sm:$0x1] %vm1039, %v1118
    %1124 = vst.msk [vmem:[#allocation2 + $0x20] sm:$0x1] %vm1039, %v1120
    %1125 = vrot.lane.b32.xlu0 %v985, 51
    %v1126 = vpop.permute.xlu0 %1125
    %1127 = vrot.lane.b32.xlu0 %v1003, 51
    %v1128 = vpop.permute.xlu0 %1127
    %1131 = vst.msk [vmem:[%s1050 + $0x8] sm:$0x1] %vm1039, %v1126
    %1132 = vst.msk [vmem:[%s1050 + $0x20] sm:$0x1] %vm1039, %v1128
    %1133 = vrot.lane.b32.xlu0 %v1013, 35
    %v1134 = vpop.permute.xlu0 %1133
    %1135 = vrot.lane.b32.xlu0 %v1015, 35
    %v1136 = vpop.permute.xlu0 %1135
    %1139 = vst.msk [vmem:[#allocation2 + $0x9] sm:$0x1] %vm1039, %v1134
    %1140 = vst.msk [vmem:[#allocation2 + $0x21] sm:$0x1] %vm1039, %v1136
    %1141 = vrot.lane.b32.xlu0 %v985, 35
    %v1142 = vpop.permute.xlu0 %1141
    %1143 = vrot.lane.b32.xlu0 %v1003, 35
    %v1144 = vpop.permute.xlu0 %1143
    %1147 = vst.msk [vmem:[%s1050 + $0x9] sm:$0x1] %vm1039, %v1142
    %1148 = vst.msk [vmem:[%s1050 + $0x21] sm:$0x1] %vm1039, %v1144
    %1149 = vrot.lane.b32.xlu0 %v1013, 19
    %v1150 = vpop.permute.xlu0 %1149
    %1151 = vrot.lane.b32.xlu0 %v1015, 19
    %v1152 = vpop.permute.xlu0 %1151
    %1155 = vst.msk [vmem:[#allocation2 + $0xa] sm:$0x1] %vm1039, %v1150
    %1156 = vst.msk [vmem:[#allocation2 + $0x22] sm:$0x1] %vm1039, %v1152
    %1157 = vrot.lane.b32.xlu0 %v985, 19
    %v1158 = vpop.permute.xlu0 %1157
    %1159 = vrot.lane.b32.xlu0 %v1003, 19
    %v1160 = vpop.permute.xlu0 %1159
    %1163 = vst.msk [vmem:[%s1050 + $0xa] sm:$0x1] %vm1039, %v1158
    %1164 = vst.msk [vmem:[%s1050 + $0x22] sm:$0x1] %vm1039, %v1160
    %1167 = vrot.lane.b32.xlu0 %v1014, 3
    %v1168 = vpop.permute.xlu0 %1167
    %1169 = vrot.lane.b32.xlu0 %v1016, 3
    %v1170 = vpop.permute.xlu0 %1169
    %1173 = vst.msk [vmem:[#allocation2 + $0xb] sm:$0x1] %vm1039, %v1168
    %1174 = vst.msk [vmem:[#allocation2 + $0x23] sm:$0x1] %vm1039, %v1170
    %1177 = vrot.lane.b32.xlu0 %v994, 3
    %v1178 = vpop.permute.xlu0 %1177
    %1179 = vrot.lane.b32.xlu0 %v1012, 3
    %v1180 = vpop.permute.xlu0 %1179
    %1183 = vst.msk [vmem:[%s1050 + $0xb] sm:$0x1] %vm1039, %v1178
    %1184 = vst.msk [vmem:[%s1050 + $0x23] sm:$0x1] %vm1039, %v1180
    %1185 = vrot.lane.b32.xlu0 %v1014, 115
    %v1186 = vpop.permute.xlu0 %1185
    %1187 = vrot.lane.b32.xlu0 %v1016, 115
    %v1188 = vpop.permute.xlu0 %1187
    %1191 = vst.msk [vmem:[#allocation2 + $0xc] sm:$0x1] %vm1039, %v1186
    %1192 = vst.msk [vmem:[#allocation2 + $0x24] sm:$0x1] %vm1039, %v1188
    %1193 = vrot.lane.b32.xlu0 %v994, 115
    %v1194 = vpop.permute.xlu0 %1193
    %1195 = vrot.lane.b32.xlu0 %v1012, 115
    %v1196 = vpop.permute.xlu0 %1195
    %1199 = vst.msk [vmem:[%s1050 + $0xc] sm:$0x1] %vm1039, %v1194
    %1200 = vst.msk [vmem:[%s1050 + $0x24] sm:$0x1] %vm1039, %v1196
    %1201 = vrot.lane.b32.xlu0 %v1014, 99
    %v1202 = vpop.permute.xlu0 %1201
    %1203 = vrot.lane.b32.xlu0 %v1016, 99
    %v1204 = vpop.permute.xlu0 %1203
    %1207 = vst.msk [vmem:[#allocation2 + $0xd] sm:$0x1] %vm1039, %v1202
    %1208 = vst.msk [vmem:[#allocation2 + $0x25] sm:$0x1] %vm1039, %v1204
    %1209 = vrot.lane.b32.xlu0 %v994, 99
    %v1210 = vpop.permute.xlu0 %1209
    %1211 = vrot.lane.b32.xlu0 %v1012, 99
    %v1212 = vpop.permute.xlu0 %1211
    %1215 = vst.msk [vmem:[%s1050 + $0xd] sm:$0x1] %vm1039, %v1210
    %1216 = vst.msk [vmem:[%s1050 + $0x25] sm:$0x1] %vm1039, %v1212
    %1217 = vrot.lane.b32.xlu0 %v1014, 83
    %v1218 = vpop.permute.xlu0 %1217
    %1219 = vrot.lane.b32.xlu0 %v1016, 83
    %v1220 = vpop.permute.xlu0 %1219
    %1223 = vst.msk [vmem:[#allocation2 + $0xe] sm:$0x1] %vm1039, %v1218
    %1224 = vst.msk [vmem:[#allocation2 + $0x26] sm:$0x1] %vm1039, %v1220
    %1225 = vrot.lane.b32.xlu0 %v994, 83
    %v1226 = vpop.permute.xlu0 %1225
    %1227 = vrot.lane.b32.xlu0 %v1012, 83
    %v1228 = vpop.permute.xlu0 %1227
    %1231 = vst.msk [vmem:[%s1050 + $0xe] sm:$0x1] %vm1039, %v1226
    %1232 = vst.msk [vmem:[%s1050 + $0x26] sm:$0x1] %vm1039, %v1228
    %1233 = vrot.lane.b32.xlu0 %v1014, 67
    %v1234 = vpop.permute.xlu0 %1233
    %1235 = vrot.lane.b32.xlu0 %v1016, 67
    %v1236 = vpop.permute.xlu0 %1235
    %1239 = vst.msk [vmem:[#allocation2 + $0xf] sm:$0x1] %vm1039, %v1234
    %1240 = vst.msk [vmem:[#allocation2 + $0x27] sm:$0x1] %vm1039, %v1236
    %1241 = vrot.lane.b32.xlu0 %v994, 67
    %v1242 = vpop.permute.xlu0 %1241
    %1243 = vrot.lane.b32.xlu0 %v1012, 67
    %v1244 = vpop.permute.xlu0 %1243
    %1247 = vst.msk [vmem:[%s1050 + $0xf] sm:$0x1] %vm1039, %v1242
    %1248 = vst.msk [vmem:[%s1050 + $0x27] sm:$0x1] %vm1039, %v1244
    %1249 = vrot.lane.b32.xlu0 %v1014, 51
    %v1250 = vpop.permute.xlu0 %1249
    %1251 = vrot.lane.b32.xlu0 %v1016, 51
    %v1252 = vpop.permute.xlu0 %1251
    %1255 = vst.msk [vmem:[#allocation2 + $0x10] sm:$0x1] %vm1039, %v1250
    %1256 = vst.msk [vmem:[#allocation2 + $0x28] sm:$0x1] %vm1039, %v1252
    %1257 = vrot.lane.b32.xlu0 %v994, 51
    %v1258 = vpop.permute.xlu0 %1257
    %1259 = vrot.lane.b32.xlu0 %v1012, 51
    %v1260 = vpop.permute.xlu0 %1259
    %1263 = vst.msk [vmem:[%s1050 + $0x10] sm:$0x1] %vm1039, %v1258
    %1264 = vst.msk [vmem:[%s1050 + $0x28] sm:$0x1] %vm1039, %v1260
    %1265 = vrot.lane.b32.xlu0 %v1014, 35
    %v1266 = vpop.permute.xlu0 %1265
    %1267 = vrot.lane.b32.xlu0 %v1016, 35
    %v1268 = vpop.permute.xlu0 %1267
    %1271 = vst.msk [vmem:[#allocation2 + $0x11] sm:$0x1] %vm1039, %v1266
    %1272 = vst.msk [vmem:[#allocation2 + $0x29] sm:$0x1] %vm1039, %v1268
    %1273 = vrot.lane.b32.xlu0 %v994, 35
    %v1274 = vpop.permute.xlu0 %1273
    %1275 = vrot.lane.b32.xlu0 %v1012, 35
    %v1276 = vpop.permute.xlu0 %1275
    %1279 = vst.msk [vmem:[%s1050 + $0x11] sm:$0x1] %vm1039, %v1274
    %1280 = vst.msk [vmem:[%s1050 + $0x29] sm:$0x1] %vm1039, %v1276
    %1281 = vrot.lane.b32.xlu0 %v1014, 19
    %v1282 = vpop.permute.xlu0 %1281
    %1283 = vrot.lane.b32.xlu0 %v1016, 19
    %v1284 = vpop.permute.xlu0 %1283
    %1287 = vst.msk [vmem:[#allocation2 + $0x12] sm:$0x1] %vm1039, %v1282
    %1288 = vst.msk [vmem:[#allocation2 + $0x2a] sm:$0x1] %vm1039, %v1284
    %1289 = vrot.lane.b32.xlu0 %v994, 19
    %v1290 = vpop.permute.xlu0 %1289
    %1291 = vrot.lane.b32.xlu0 %v1012, 19
    %v1292 = vpop.permute.xlu0 %1291
    %1295 = vst.msk [vmem:[%s1050 + $0x12] sm:$0x1] %vm1039, %v1290
    %1296 = vst.msk [vmem:[%s1050 + $0x2a] sm:$0x1] %vm1039, %v1292
    %v1297 = vld [vmem:[#allocation2] sm:$0xff]
    %v1298 = vld [vmem:[#allocation2 + $0x8] sm:$0xff]
    %v1299 = vld [vmem:[#allocation2 + $0x18] sm:$0xff]
    %v1300 = vld [vmem:[#allocation2 + $0x20] sm:$0xff]
    %s1301 = sld [smem:[#allocation5]]
    %v1302 = vstv %s1301
    %v1303 = vmul.f32 %v1302, %v1297
    %v1304 = vmul.f32 %v1302, %v1298
    %v1305 = vmul.f32 %v1302, %v1299
    %v1306 = vmul.f32 %v1302, %v1300
    %v1307 = vadd.f32 %v1303, 0.0
    %v1308 = vadd.f32 %v1304, 0.0
    %v1309 = vadd.f32 %v1305, 0.0
    %v1310 = vadd.f32 %v1306, 0.0
    %s1311 = sld [smem:[#allocation5 + $0x1]]
    %v1312 = vstv %s1311
    %v1313 = vmul.f32 %v1312, %v1297
    %v1314 = vmul.f32 %v1312, %v1298
    %v1315 = vmul.f32 %v1312, %v1299
    %v1316 = vmul.f32 %v1312, %v1300
    %1321 = vrot.lane.b32.xlu0 %v1313, 127
    %v1322 = vpop.permute.xlu0 %1321
    %1323 = vrot.lane.b32.xlu0 %v1314, 127
    %v1324 = vpop.permute.xlu0 %1323
    %1325 = vrot.lane.b32.xlu0 %v1315, 127
    %v1326 = vpop.permute.xlu0 %1325
    %1327 = vrot.lane.b32.xlu0 %v1316, 127
    %v1328 = vpop.permute.xlu0 %1327
    %v1333 = vadd.f32 %v1307, %v1322
    %v1334 = vadd.f32 %v1308, %v1324
    %v1335 = vadd.f32 %v1309, %v1326
    %v1336 = vadd.f32 %v1310, %v1328
    %s1337 = sld [smem:[#allocation5 + $0x2]]
    %v1338 = vstv %s1337
    %v1339 = vmul.f32 %v1338, %v1297
    %v1340 = vmul.f32 %v1338, %v1298
    %v1341 = vmul.f32 %v1338, %v1299
    %v1342 = vmul.f32 %v1338, %v1300
    %1347 = vrot.lane.b32.xlu0 %v1339, 126
    %v1348 = vpop.permute.xlu0 %1347
    %1349 = vrot.lane.b32.xlu0 %v1340, 126
    %v1350 = vpop.permute.xlu0 %1349
    %1351 = vrot.lane.b32.xlu0 %v1341, 126
    %v1352 = vpop.permute.xlu0 %1351
    %1353 = vrot.lane.b32.xlu0 %v1342, 126
    %v1354 = vpop.permute.xlu0 %1353
    %v1359 = vadd.f32 %v1333, %v1348
    %v1360 = vadd.f32 %v1334, %v1350
    %v1361 = vadd.f32 %v1335, %v1352
    %v1362 = vadd.f32 %v1336, %v1354
    %s1363 = sld [smem:[#allocation5 + $0x3]]
    %v1364 = vstv %s1363
    %v1365 = vmul.f32 %v1364, %v1297
    %v1366 = vmul.f32 %v1364, %v1298
    %v1367 = vmul.f32 %v1364, %v1299
    %v1368 = vmul.f32 %v1364, %v1300
    %1373 = vrot.lane.b32.xlu0 %v1365, 125
    %v1374 = vpop.permute.xlu0 %1373
    %1375 = vrot.lane.b32.xlu0 %v1366, 125
    %v1376 = vpop.permute.xlu0 %1375
    %1377 = vrot.lane.b32.xlu0 %v1367, 125
    %v1378 = vpop.permute.xlu0 %1377
    %1379 = vrot.lane.b32.xlu0 %v1368, 125
    %v1380 = vpop.permute.xlu0 %1379
    %v1385 = vadd.f32 %v1359, %v1374
    %v1386 = vadd.f32 %v1360, %v1376
    %v1387 = vadd.f32 %v1361, %v1378
    %v1388 = vadd.f32 %v1362, %v1380
    %s1389 = sld [smem:[#allocation5 + $0x4]]
    %v1390 = vstv %s1389
    %v1391 = vmul.f32 %v1390, %v1297
    %v1392 = vmul.f32 %v1390, %v1298
    %v1393 = vmul.f32 %v1390, %v1299
    %v1394 = vmul.f32 %v1390, %v1300
    %1399 = vrot.lane.b32.xlu0 %v1391, 124
    %v1400 = vpop.permute.xlu0 %1399
    %1401 = vrot.lane.b32.xlu0 %v1392, 124
    %v1402 = vpop.permute.xlu0 %1401
    %1403 = vrot.lane.b32.xlu0 %v1393, 124
    %v1404 = vpop.permute.xlu0 %1403
    %1405 = vrot.lane.b32.xlu0 %v1394, 124
    %v1406 = vpop.permute.xlu0 %1405
    %v1411 = vadd.f32 %v1385, %v1400
    %v1412 = vadd.f32 %v1386, %v1402
    %v1413 = vadd.f32 %v1387, %v1404
    %v1414 = vadd.f32 %v1388, %v1406
    %s1415 = sld [smem:[#allocation5 + $0x5]]
    %v1416 = vstv %s1415
    %v1417 = vmul.f32 %v1416, %v1297
    %v1418 = vmul.f32 %v1416, %v1298
    %v1419 = vmul.f32 %v1416, %v1299
    %v1420 = vmul.f32 %v1416, %v1300
    %1425 = vrot.lane.b32.xlu0 %v1417, 123
    %v1426 = vpop.permute.xlu0 %1425
    %1427 = vrot.lane.b32.xlu0 %v1418, 123
    %v1428 = vpop.permute.xlu0 %1427
    %1429 = vrot.lane.b32.xlu0 %v1419, 123
    %v1430 = vpop.permute.xlu0 %1429
    %1431 = vrot.lane.b32.xlu0 %v1420, 123
    %v1432 = vpop.permute.xlu0 %1431
    %v1437 = vadd.f32 %v1411, %v1426
    %v1438 = vadd.f32 %v1412, %v1428
    %v1439 = vadd.f32 %v1413, %v1430
    %v1440 = vadd.f32 %v1414, %v1432
    %s1441 = sld [smem:[#allocation5 + $0x6]]
    %v1442 = vstv %s1441
    %v1443 = vmul.f32 %v1442, %v1297
    %v1444 = vmul.f32 %v1442, %v1298
    %v1445 = vmul.f32 %v1442, %v1299
    %v1446 = vmul.f32 %v1442, %v1300
    %1451 = vrot.lane.b32.xlu0 %v1443, 122
    %v1452 = vpop.permute.xlu0 %1451
    %1453 = vrot.lane.b32.xlu0 %v1444, 122
    %v1454 = vpop.permute.xlu0 %1453
    %1455 = vrot.lane.b32.xlu0 %v1445, 122
    %v1456 = vpop.permute.xlu0 %1455
    %1457 = vrot.lane.b32.xlu0 %v1446, 122
    %v1458 = vpop.permute.xlu0 %1457
    %v1463 = vadd.f32 %v1437, %v1452
    %v1464 = vadd.f32 %v1438, %v1454
    %v1465 = vadd.f32 %v1439, %v1456
    %v1466 = vadd.f32 %v1440, %v1458
    %v1467 = vld [vmem:[#allocation2 + $0x1] sm:$0xff]
    %v1468 = vld [vmem:[#allocation2 + $0x9] sm:$0xff]
    %v1469 = vld [vmem:[#allocation2 + $0x19] sm:$0xff]
    %v1470 = vld [vmem:[#allocation2 + $0x21] sm:$0xff]
    %s1471 = sld [smem:[#allocation5 + $0x7]]
    %v1472 = vstv %s1471
    %v1473 = vmul.f32 %v1472, %v1467
    %v1474 = vmul.f32 %v1472, %v1468
    %v1475 = vmul.f32 %v1472, %v1469
    %v1476 = vmul.f32 %v1472, %v1470
    %v1477 = vadd.f32 %v1473, 0.0
    %v1478 = vadd.f32 %v1474, 0.0
    %v1479 = vadd.f32 %v1475, 0.0
    %v1480 = vadd.f32 %v1476, 0.0
    %s1481 = sld [smem:[#allocation5 + $0x8]]
    %v1482 = vstv %s1481
    %v1483 = vmul.f32 %v1482, %v1467
    %v1484 = vmul.f32 %v1482, %v1468
    %v1485 = vmul.f32 %v1482, %v1469
    %v1486 = vmul.f32 %v1482, %v1470
    %1491 = vrot.lane.b32.xlu0 %v1483, 127
    %v1492 = vpop.permute.xlu0 %1491
    %1493 = vrot.lane.b32.xlu0 %v1484, 127
    %v1494 = vpop.permute.xlu0 %1493
    %1495 = vrot.lane.b32.xlu0 %v1485, 127
    %v1496 = vpop.permute.xlu0 %1495
    %1497 = vrot.lane.b32.xlu0 %v1486, 127
    %v1498 = vpop.permute.xlu0 %1497
    %v1503 = vadd.f32 %v1477, %v1492
    %v1504 = vadd.f32 %v1478, %v1494
    %v1505 = vadd.f32 %v1479, %v1496
    %v1506 = vadd.f32 %v1480, %v1498
    %s1507 = sld [smem:[#allocation5 + $0x9]]
    %v1508 = vstv %s1507
    %v1509 = vmul.f32 %v1508, %v1467
    %v1510 = vmul.f32 %v1508, %v1468
    %v1511 = vmul.f32 %v1508, %v1469
    %v1512 = vmul.f32 %v1508, %v1470
    %1517 = vrot.lane.b32.xlu0 %v1509, 126
    %v1518 = vpop.permute.xlu0 %1517
    %1519 = vrot.lane.b32.xlu0 %v1510, 126
    %v1520 = vpop.permute.xlu0 %1519
    %1521 = vrot.lane.b32.xlu0 %v1511, 126
    %v1522 = vpop.permute.xlu0 %1521
    %1523 = vrot.lane.b32.xlu0 %v1512, 126
    %v1524 = vpop.permute.xlu0 %1523
    %v1529 = vadd.f32 %v1503, %v1518
    %v1530 = vadd.f32 %v1504, %v1520
    %v1531 = vadd.f32 %v1505, %v1522
    %v1532 = vadd.f32 %v1506, %v1524
    %s1533 = sld [smem:[#allocation5 + $0xa]]
    %v1534 = vstv %s1533
    %v1535 = vmul.f32 %v1534, %v1467
    %v1536 = vmul.f32 %v1534, %v1468
    %v1537 = vmul.f32 %v1534, %v1469
    %v1538 = vmul.f32 %v1534, %v1470
    %1543 = vrot.lane.b32.xlu0 %v1535, 125
    %v1544 = vpop.permute.xlu0 %1543
    %1545 = vrot.lane.b32.xlu0 %v1536, 125
    %v1546 = vpop.permute.xlu0 %1545
    %1547 = vrot.lane.b32.xlu0 %v1537, 125
    %v1548 = vpop.permute.xlu0 %1547
    %1549 = vrot.lane.b32.xlu0 %v1538, 125
    %v1550 = vpop.permute.xlu0 %1549
    %v1555 = vadd.f32 %v1529, %v1544
    %v1556 = vadd.f32 %v1530, %v1546
    %v1557 = vadd.f32 %v1531, %v1548
    %v1558 = vadd.f32 %v1532, %v1550
    %s1559 = sld [smem:[#allocation5 + $0xb]]
    %v1560 = vstv %s1559
    %v1561 = vmul.f32 %v1560, %v1467
    %v1562 = vmul.f32 %v1560, %v1468
    %v1563 = vmul.f32 %v1560, %v1469
    %v1564 = vmul.f32 %v1560, %v1470
    %1569 = vrot.lane.b32.xlu0 %v1561, 124
    %v1570 = vpop.permute.xlu0 %1569
    %1571 = vrot.lane.b32.xlu0 %v1562, 124
    %v1572 = vpop.permute.xlu0 %1571
    %1573 = vrot.lane.b32.xlu0 %v1563, 124
    %v1574 = vpop.permute.xlu0 %1573
    %1575 = vrot.lane.b32.xlu0 %v1564, 124
    %v1576 = vpop.permute.xlu0 %1575
    %v1581 = vadd.f32 %v1555, %v1570
    %v1582 = vadd.f32 %v1556, %v1572
    %v1583 = vadd.f32 %v1557, %v1574
    %v1584 = vadd.f32 %v1558, %v1576
    %s1585 = sld [smem:[#allocation5 + $0xc]]
    %v1586 = vstv %s1585
    %v1587 = vmul.f32 %v1586, %v1467
    %v1588 = vmul.f32 %v1586, %v1468
    %v1589 = vmul.f32 %v1586, %v1469
    %v1590 = vmul.f32 %v1586, %v1470
    %1595 = vrot.lane.b32.xlu0 %v1587, 123
    %v1596 = vpop.permute.xlu0 %1595
    %1597 = vrot.lane.b32.xlu0 %v1588, 123
    %v1598 = vpop.permute.xlu0 %1597
    %1599 = vrot.lane.b32.xlu0 %v1589, 123
    %v1600 = vpop.permute.xlu0 %1599
    %1601 = vrot.lane.b32.xlu0 %v1590, 123
    %v1602 = vpop.permute.xlu0 %1601
    %v1607 = vadd.f32 %v1581, %v1596
    %v1608 = vadd.f32 %v1582, %v1598
    %v1609 = vadd.f32 %v1583, %v1600
    %v1610 = vadd.f32 %v1584, %v1602
    %s1611 = sld [smem:[#allocation5 + $0xd]]
    %v1612 = vstv %s1611
    %v1613 = vmul.f32 %v1612, %v1467
    %v1614 = vmul.f32 %v1612, %v1468
    %v1615 = vmul.f32 %v1612, %v1469
    %v1616 = vmul.f32 %v1612, %v1470
    %1621 = vrot.lane.b32.xlu0 %v1613, 122
    %v1622 = vpop.permute.xlu0 %1621
    %1623 = vrot.lane.b32.xlu0 %v1614, 122
    %v1624 = vpop.permute.xlu0 %1623
    %1625 = vrot.lane.b32.xlu0 %v1615, 122
    %v1626 = vpop.permute.xlu0 %1625
    %1627 = vrot.lane.b32.xlu0 %v1616, 122
    %v1628 = vpop.permute.xlu0 %1627
    %v1633 = vadd.f32 %v1607, %v1622
    %v1634 = vadd.f32 %v1608, %v1624
    %v1635 = vadd.f32 %v1609, %v1626
    %v1636 = vadd.f32 %v1610, %v1628
    %v1637 = vld [vmem:[#allocation2 + $0x2] sm:$0xff]
    %v1638 = vld [vmem:[#allocation2 + $0xa] sm:$0xff]
    %v1639 = vld [vmem:[#allocation2 + $0x1a] sm:$0xff]
    %v1640 = vld [vmem:[#allocation2 + $0x22] sm:$0xff]
    %s1641 = sld [smem:[#allocation5 + $0xe]]
    %v1642 = vstv %s1641
    %v1643 = vmul.f32 %v1642, %v1637
    %v1644 = vmul.f32 %v1642, %v1638
    %v1645 = vmul.f32 %v1642, %v1639
    %v1646 = vmul.f32 %v1642, %v1640
    %v1647 = vadd.f32 %v1463, %v1643
    %v1648 = vadd.f32 %v1464, %v1644
    %v1649 = vadd.f32 %v1465, %v1645
    %v1650 = vadd.f32 %v1466, %v1646
    %s1651 = sld [smem:[#allocation5 + $0xf]]
    %v1652 = vstv %s1651
    %v1653 = vmul.f32 %v1652, %v1637
    %v1654 = vmul.f32 %v1652, %v1638
    %v1655 = vmul.f32 %v1652, %v1639
    %v1656 = vmul.f32 %v1652, %v1640
    %1661 = vrot.lane.b32.xlu0 %v1653, 127
    %v1662 = vpop.permute.xlu0 %1661
    %1663 = vrot.lane.b32.xlu0 %v1654, 127
    %v1664 = vpop.permute.xlu0 %1663
    %1665 = vrot.lane.b32.xlu0 %v1655, 127
    %v1666 = vpop.permute.xlu0 %1665
    %1667 = vrot.lane.b32.xlu0 %v1656, 127
    %v1668 = vpop.permute.xlu0 %1667
    %v1673 = vadd.f32 %v1647, %v1662
    %v1674 = vadd.f32 %v1648, %v1664
    %v1675 = vadd.f32 %v1649, %v1666
    %v1676 = vadd.f32 %v1650, %v1668
    %s1677 = sld [smem:[#allocation5 + $0x10]]
    %v1678 = vstv %s1677
    %v1679 = vmul.f32 %v1678, %v1637
    %v1680 = vmul.f32 %v1678, %v1638
    %v1681 = vmul.f32 %v1678, %v1639
    %v1682 = vmul.f32 %v1678, %v1640
    %1687 = vrot.lane.b32.xlu0 %v1679, 126
    %v1688 = vpop.permute.xlu0 %1687
    %1689 = vrot.lane.b32.xlu0 %v1680, 126
    %v1690 = vpop.permute.xlu0 %1689
    %1691 = vrot.lane.b32.xlu0 %v1681, 126
    %v1692 = vpop.permute.xlu0 %1691
    %1693 = vrot.lane.b32.xlu0 %v1682, 126
    %v1694 = vpop.permute.xlu0 %1693
    %v1699 = vadd.f32 %v1673, %v1688
    %v1700 = vadd.f32 %v1674, %v1690
    %v1701 = vadd.f32 %v1675, %v1692
    %v1702 = vadd.f32 %v1676, %v1694
    %s1703 = sld [smem:[#allocation5 + $0x11]]
    %v1704 = vstv %s1703
    %v1705 = vmul.f32 %v1704, %v1637
    %v1706 = vmul.f32 %v1704, %v1638
    %v1707 = vmul.f32 %v1704, %v1639
    %v1708 = vmul.f32 %v1704, %v1640
    %1713 = vrot.lane.b32.xlu0 %v1705, 125
    %v1714 = vpop.permute.xlu0 %1713
    %1715 = vrot.lane.b32.xlu0 %v1706, 125
    %v1716 = vpop.permute.xlu0 %1715
    %1717 = vrot.lane.b32.xlu0 %v1707, 125
    %v1718 = vpop.permute.xlu0 %1717
    %1719 = vrot.lane.b32.xlu0 %v1708, 125
    %v1720 = vpop.permute.xlu0 %1719
    %v1725 = vadd.f32 %v1699, %v1714
    %v1726 = vadd.f32 %v1700, %v1716
    %v1727 = vadd.f32 %v1701, %v1718
    %v1728 = vadd.f32 %v1702, %v1720
    %s1729 = sld [smem:[#allocation5 + $0x12]]
    %v1730 = vstv %s1729
    %v1731 = vmul.f32 %v1730, %v1637
    %v1732 = vmul.f32 %v1730, %v1638
    %v1733 = vmul.f32 %v1730, %v1639
    %v1734 = vmul.f32 %v1730, %v1640
    %1739 = vrot.lane.b32.xlu0 %v1731, 124
    %v1740 = vpop.permute.xlu0 %1739
    %1741 = vrot.lane.b32.xlu0 %v1732, 124
    %v1742 = vpop.permute.xlu0 %1741
    %1743 = vrot.lane.b32.xlu0 %v1733, 124
    %v1744 = vpop.permute.xlu0 %1743
    %1745 = vrot.lane.b32.xlu0 %v1734, 124
    %v1746 = vpop.permute.xlu0 %1745
    %v1751 = vadd.f32 %v1725, %v1740
    %v1752 = vadd.f32 %v1726, %v1742
    %v1753 = vadd.f32 %v1727, %v1744
    %v1754 = vadd.f32 %v1728, %v1746
    %s1755 = sld [smem:[#allocation5 + $0x13]]
    %v1756 = vstv %s1755
    %v1757 = vmul.f32 %v1756, %v1637
    %v1758 = vmul.f32 %v1756, %v1638
    %v1759 = vmul.f32 %v1756, %v1639
    %v1760 = vmul.f32 %v1756, %v1640
    %1765 = vrot.lane.b32.xlu0 %v1757, 123
    %v1766 = vpop.permute.xlu0 %1765
    %1767 = vrot.lane.b32.xlu0 %v1758, 123
    %v1768 = vpop.permute.xlu0 %1767
    %1769 = vrot.lane.b32.xlu0 %v1759, 123
    %v1770 = vpop.permute.xlu0 %1769
    %1771 = vrot.lane.b32.xlu0 %v1760, 123
    %v1772 = vpop.permute.xlu0 %1771
    %v1777 = vadd.f32 %v1751, %v1766
    %v1778 = vadd.f32 %v1752, %v1768
    %v1779 = vadd.f32 %v1753, %v1770
    %v1780 = vadd.f32 %v1754, %v1772
    %s1781 = sld [smem:[#allocation5 + $0x14]]
    %v1782 = vstv %s1781
    %v1783 = vmul.f32 %v1782, %v1637
    %v1784 = vmul.f32 %v1782, %v1638
    %v1785 = vmul.f32 %v1782, %v1639
    %v1786 = vmul.f32 %v1782, %v1640
    %1791 = vrot.lane.b32.xlu0 %v1783, 122
    %v1792 = vpop.permute.xlu0 %1791
    %1793 = vrot.lane.b32.xlu0 %v1784, 122
    %v1794 = vpop.permute.xlu0 %1793
    %1795 = vrot.lane.b32.xlu0 %v1785, 122
    %v1796 = vpop.permute.xlu0 %1795
    %1797 = vrot.lane.b32.xlu0 %v1786, 122
    %v1798 = vpop.permute.xlu0 %1797
    %v1803 = vadd.f32 %v1777, %v1792
    %v1804 = vadd.f32 %v1778, %v1794
    %v1805 = vadd.f32 %v1779, %v1796
    %v1806 = vadd.f32 %v1780, %v1798
    %v1807 = vld [vmem:[#allocation2 + $0x3] sm:$0xff]
    %v1808 = vld [vmem:[#allocation2 + $0xb] sm:$0xff]
    %v1809 = vld [vmem:[#allocation2 + $0x1b] sm:$0xff]
    %v1810 = vld [vmem:[#allocation2 + $0x23] sm:$0xff]
    %s1811 = sld [smem:[#allocation5 + $0x15]]
    %v1812 = vstv %s1811
    %v1813 = vmul.f32 %v1812, %v1807
    %v1814 = vmul.f32 %v1812, %v1808
    %v1815 = vmul.f32 %v1812, %v1809
    %v1816 = vmul.f32 %v1812, %v1810
    %v1817 = vadd.f32 %v1633, %v1813
    %v1818 = vadd.f32 %v1634, %v1814
    %v1819 = vadd.f32 %v1635, %v1815
    %v1820 = vadd.f32 %v1636, %v1816
    %s1821 = sld [smem:[#allocation5 + $0x16]]
    %v1822 = vstv %s1821
    %v1823 = vmul.f32 %v1822, %v1807
    %v1824 = vmul.f32 %v1822, %v1808
    %v1825 = vmul.f32 %v1822, %v1809
    %v1826 = vmul.f32 %v1822, %v1810
    %1831 = vrot.lane.b32.xlu0 %v1823, 127
    %v1832 = vpop.permute.xlu0 %1831
    %1833 = vrot.lane.b32.xlu0 %v1824, 127
    %v1834 = vpop.permute.xlu0 %1833
    %1835 = vrot.lane.b32.xlu0 %v1825, 127
    %v1836 = vpop.permute.xlu0 %1835
    %1837 = vrot.lane.b32.xlu0 %v1826, 127
    %v1838 = vpop.permute.xlu0 %1837
    %v1843 = vadd.f32 %v1817, %v1832
    %v1844 = vadd.f32 %v1818, %v1834
    %v1845 = vadd.f32 %v1819, %v1836
    %v1846 = vadd.f32 %v1820, %v1838
    %s1847 = sld [smem:[#allocation5 + $0x17]]
    %v1848 = vstv %s1847
    %v1849 = vmul.f32 %v1848, %v1807
    %v1850 = vmul.f32 %v1848, %v1808
    %v1851 = vmul.f32 %v1848, %v1809
    %v1852 = vmul.f32 %v1848, %v1810
    %1857 = vrot.lane.b32.xlu0 %v1849, 126
    %v1858 = vpop.permute.xlu0 %1857
    %1859 = vrot.lane.b32.xlu0 %v1850, 126
    %v1860 = vpop.permute.xlu0 %1859
    %1861 = vrot.lane.b32.xlu0 %v1851, 126
    %v1862 = vpop.permute.xlu0 %1861
    %1863 = vrot.lane.b32.xlu0 %v1852, 126
    %v1864 = vpop.permute.xlu0 %1863
    %v1869 = vadd.f32 %v1843, %v1858
    %v1870 = vadd.f32 %v1844, %v1860
    %v1871 = vadd.f32 %v1845, %v1862
    %v1872 = vadd.f32 %v1846, %v1864
    %s1873 = sld [smem:[#allocation5 + $0x18]]
    %v1874 = vstv %s1873
    %v1875 = vmul.f32 %v1874, %v1807
    %v1876 = vmul.f32 %v1874, %v1808
    %v1877 = vmul.f32 %v1874, %v1809
    %v1878 = vmul.f32 %v1874, %v1810
    %1883 = vrot.lane.b32.xlu0 %v1875, 125
    %v1884 = vpop.permute.xlu0 %1883
    %1885 = vrot.lane.b32.xlu0 %v1876, 125
    %v1886 = vpop.permute.xlu0 %1885
    %1887 = vrot.lane.b32.xlu0 %v1877, 125
    %v1888 = vpop.permute.xlu0 %1887
    %1889 = vrot.lane.b32.xlu0 %v1878, 125
    %v1890 = vpop.permute.xlu0 %1889
    %v1895 = vadd.f32 %v1869, %v1884
    %v1896 = vadd.f32 %v1870, %v1886
    %v1897 = vadd.f32 %v1871, %v1888
    %v1898 = vadd.f32 %v1872, %v1890
    %s1899 = sld [smem:[#allocation5 + $0x19]]
    %v1900 = vstv %s1899
    %v1901 = vmul.f32 %v1900, %v1807
    %v1902 = vmul.f32 %v1900, %v1808
    %v1903 = vmul.f32 %v1900, %v1809
    %v1904 = vmul.f32 %v1900, %v1810
    %1909 = vrot.lane.b32.xlu0 %v1901, 124
    %v1910 = vpop.permute.xlu0 %1909
    %1911 = vrot.lane.b32.xlu0 %v1902, 124
    %v1912 = vpop.permute.xlu0 %1911
    %1913 = vrot.lane.b32.xlu0 %v1903, 124
    %v1914 = vpop.permute.xlu0 %1913
    %1915 = vrot.lane.b32.xlu0 %v1904, 124
    %v1916 = vpop.permute.xlu0 %1915
    %v1921 = vadd.f32 %v1895, %v1910
    %v1922 = vadd.f32 %v1896, %v1912
    %v1923 = vadd.f32 %v1897, %v1914
    %v1924 = vadd.f32 %v1898, %v1916
    %s1925 = sld [smem:[#allocation5 + $0x1a]]
    %v1926 = vstv %s1925
    %v1927 = vmul.f32 %v1926, %v1807
    %v1928 = vmul.f32 %v1926, %v1808
    %v1929 = vmul.f32 %v1926, %v1809
    %v1930 = vmul.f32 %v1926, %v1810
    %1935 = vrot.lane.b32.xlu0 %v1927, 123
    %v1936 = vpop.permute.xlu0 %1935
    %1937 = vrot.lane.b32.xlu0 %v1928, 123
    %v1938 = vpop.permute.xlu0 %1937
    %1939 = vrot.lane.b32.xlu0 %v1929, 123
    %v1940 = vpop.permute.xlu0 %1939
    %1941 = vrot.lane.b32.xlu0 %v1930, 123
    %v1942 = vpop.permute.xlu0 %1941
    %v1947 = vadd.f32 %v1921, %v1936
    %v1948 = vadd.f32 %v1922, %v1938
    %v1949 = vadd.f32 %v1923, %v1940
    %v1950 = vadd.f32 %v1924, %v1942
    %s1951 = sld [smem:[#allocation5 + $0x1b]]
    %v1952 = vstv %s1951
    %v1953 = vmul.f32 %v1952, %v1807
    %v1954 = vmul.f32 %v1952, %v1808
    %v1955 = vmul.f32 %v1952, %v1809
    %v1956 = vmul.f32 %v1952, %v1810
    %1961 = vrot.lane.b32.xlu0 %v1953, 122
    %v1962 = vpop.permute.xlu0 %1961
    %1963 = vrot.lane.b32.xlu0 %v1954, 122
    %v1964 = vpop.permute.xlu0 %1963
    %1965 = vrot.lane.b32.xlu0 %v1955, 122
    %v1966 = vpop.permute.xlu0 %1965
    %1967 = vrot.lane.b32.xlu0 %v1956, 122
    %v1968 = vpop.permute.xlu0 %1967
    %v1973 = vadd.f32 %v1947, %v1962
    %v1974 = vadd.f32 %v1948, %v1964
    %v1975 = vadd.f32 %v1949, %v1966
    %v1976 = vadd.f32 %v1950, %v1968
    %v1977 = vld [vmem:[#allocation2 + $0x4] sm:$0xff]
    %v1978 = vld [vmem:[#allocation2 + $0xc] sm:$0xff]
    %v1979 = vld [vmem:[#allocation2 + $0x1c] sm:$0xff]
    %v1980 = vld [vmem:[#allocation2 + $0x24] sm:$0xff]
    %s1981 = sld [smem:[#allocation5 + $0x1c]]
    %v1982 = vstv %s1981
    %v1983 = vmul.f32 %v1982, %v1977
    %v1984 = vmul.f32 %v1982, %v1978
    %v1985 = vmul.f32 %v1982, %v1979
    %v1986 = vmul.f32 %v1982, %v1980
    %v1987 = vadd.f32 %v1803, %v1983
    %v1988 = vadd.f32 %v1804, %v1984
    %v1989 = vadd.f32 %v1805, %v1985
    %v1990 = vadd.f32 %v1806, %v1986
    %s1991 = sld [smem:[#allocation5 + $0x1d]]
    %v1992 = vstv %s1991
    %v1993 = vmul.f32 %v1992, %v1977
    %v1994 = vmul.f32 %v1992, %v1978
    %v1995 = vmul.f32 %v1992, %v1979
    %v1996 = vmul.f32 %v1992, %v1980
    %2001 = vrot.lane.b32.xlu0 %v1993, 127
    %v2002 = vpop.permute.xlu0 %2001
    %2003 = vrot.lane.b32.xlu0 %v1994, 127
    %v2004 = vpop.permute.xlu0 %2003
    %2005 = vrot.lane.b32.xlu0 %v1995, 127
    %v2006 = vpop.permute.xlu0 %2005
    %2007 = vrot.lane.b32.xlu0 %v1996, 127
    %v2008 = vpop.permute.xlu0 %2007
    %v2013 = vadd.f32 %v1987, %v2002
    %v2014 = vadd.f32 %v1988, %v2004
    %v2015 = vadd.f32 %v1989, %v2006
    %v2016 = vadd.f32 %v1990, %v2008
    %s2017 = sld [smem:[#allocation5 + $0x1e]]
    %v2018 = vstv %s2017
    %v2019 = vmul.f32 %v2018, %v1977
    %v2020 = vmul.f32 %v2018, %v1978
    %v2021 = vmul.f32 %v2018, %v1979
    %v2022 = vmul.f32 %v2018, %v1980
    %2027 = vrot.lane.b32.xlu0 %v2019, 126
    %v2028 = vpop.permute.xlu0 %2027
    %2029 = vrot.lane.b32.xlu0 %v2020, 126
    %v2030 = vpop.permute.xlu0 %2029
    %2031 = vrot.lane.b32.xlu0 %v2021, 126
    %v2032 = vpop.permute.xlu0 %2031
    %2033 = vrot.lane.b32.xlu0 %v2022, 126
    %v2034 = vpop.permute.xlu0 %2033
    %v2039 = vadd.f32 %v2013, %v2028
    %v2040 = vadd.f32 %v2014, %v2030
    %v2041 = vadd.f32 %v2015, %v2032
    %v2042 = vadd.f32 %v2016, %v2034
    %s2043 = sld [smem:[#allocation5 + $0x1f]]
    %v2044 = vstv %s2043
    %v2045 = vmul.f32 %v2044, %v1977
    %v2046 = vmul.f32 %v2044, %v1978
    %v2047 = vmul.f32 %v2044, %v1979
    %v2048 = vmul.f32 %v2044, %v1980
    %2053 = vrot.lane.b32.xlu0 %v2045, 125
    %v2054 = vpop.permute.xlu0 %2053
    %2055 = vrot.lane.b32.xlu0 %v2046, 125
    %v2056 = vpop.permute.xlu0 %2055
    %2057 = vrot.lane.b32.xlu0 %v2047, 125
    %v2058 = vpop.permute.xlu0 %2057
    %2059 = vrot.lane.b32.xlu0 %v2048, 125
    %v2060 = vpop.permute.xlu0 %2059
    %v2065 = vadd.f32 %v2039, %v2054
    %v2066 = vadd.f32 %v2040, %v2056
    %v2067 = vadd.f32 %v2041, %v2058
    %v2068 = vadd.f32 %v2042, %v2060
    %s2069 = sld [smem:[#allocation5 + $0x20]]
    %v2070 = vstv %s2069
    %v2071 = vmul.f32 %v2070, %v1977
    %v2072 = vmul.f32 %v2070, %v1978
    %v2073 = vmul.f32 %v2070, %v1979
    %v2074 = vmul.f32 %v2070, %v1980
    %2079 = vrot.lane.b32.xlu0 %v2071, 124
    %v2080 = vpop.permute.xlu0 %2079
    %2081 = vrot.lane.b32.xlu0 %v2072, 124
    %v2082 = vpop.permute.xlu0 %2081
    %2083 = vrot.lane.b32.xlu0 %v2073, 124
    %v2084 = vpop.permute.xlu0 %2083
    %2085 = vrot.lane.b32.xlu0 %v2074, 124
    %v2086 = vpop.permute.xlu0 %2085
    %v2091 = vadd.f32 %v2065, %v2080
    %v2092 = vadd.f32 %v2066, %v2082
    %v2093 = vadd.f32 %v2067, %v2084
    %v2094 = vadd.f32 %v2068, %v2086
    %s2095 = sld [smem:[#allocation5 + $0x21]]
    %v2096 = vstv %s2095
    %v2097 = vmul.f32 %v2096, %v1977
    %v2098 = vmul.f32 %v2096, %v1978
    %v2099 = vmul.f32 %v2096, %v1979
    %v2100 = vmul.f32 %v2096, %v1980
    %2105 = vrot.lane.b32.xlu0 %v2097, 123
    %v2106 = vpop.permute.xlu0 %2105
    %2107 = vrot.lane.b32.xlu0 %v2098, 123
    %v2108 = vpop.permute.xlu0 %2107
    %2109 = vrot.lane.b32.xlu0 %v2099, 123
    %v2110 = vpop.permute.xlu0 %2109
    %2111 = vrot.lane.b32.xlu0 %v2100, 123
    %v2112 = vpop.permute.xlu0 %2111
    %v2117 = vadd.f32 %v2091, %v2106
    %v2118 = vadd.f32 %v2092, %v2108
    %v2119 = vadd.f32 %v2093, %v2110
    %v2120 = vadd.f32 %v2094, %v2112
    %s2121 = sld [smem:[#allocation5 + $0x22]]
    %v2122 = vstv %s2121
    %v2123 = vmul.f32 %v2122, %v1977
    %v2124 = vmul.f32 %v2122, %v1978
    %v2125 = vmul.f32 %v2122, %v1979
    %v2126 = vmul.f32 %v2122, %v1980
    %2131 = vrot.lane.b32.xlu0 %v2123, 122
    %v2132 = vpop.permute.xlu0 %2131
    %2133 = vrot.lane.b32.xlu0 %v2124, 122
    %v2134 = vpop.permute.xlu0 %2133
    %2135 = vrot.lane.b32.xlu0 %v2125, 122
    %v2136 = vpop.permute.xlu0 %2135
    %2137 = vrot.lane.b32.xlu0 %v2126, 122
    %v2138 = vpop.permute.xlu0 %2137
    %v2143 = vadd.f32 %v2117, %v2132
    %v2144 = vadd.f32 %v2118, %v2134
    %v2145 = vadd.f32 %v2119, %v2136
    %v2146 = vadd.f32 %v2120, %v2138
    %v2147 = vld [vmem:[#allocation2 + $0x5] sm:$0xff]
    %v2148 = vld [vmem:[#allocation2 + $0xd] sm:$0xff]
    %v2149 = vld [vmem:[#allocation2 + $0x1d] sm:$0xff]
    %v2150 = vld [vmem:[#allocation2 + $0x25] sm:$0xff]
    %s2151 = sld [smem:[#allocation5 + $0x23]]
    %v2152 = vstv %s2151
    %v2153 = vmul.f32 %v2152, %v2147
    %v2154 = vmul.f32 %v2152, %v2148
    %v2155 = vmul.f32 %v2152, %v2149
    %v2156 = vmul.f32 %v2152, %v2150
    %v2157 = vadd.f32 %v1973, %v2153
    %v2158 = vadd.f32 %v1974, %v2154
    %v2159 = vadd.f32 %v1975, %v2155
    %v2160 = vadd.f32 %v1976, %v2156
    %s2161 = sld [smem:[#allocation5 + $0x24]]
    %v2162 = vstv %s2161
    %v2163 = vmul.f32 %v2162, %v2147
    %v2164 = vmul.f32 %v2162, %v2148
    %v2165 = vmul.f32 %v2162, %v2149
    %v2166 = vmul.f32 %v2162, %v2150
    %2171 = vrot.lane.b32.xlu0 %v2163, 127
    %v2172 = vpop.permute.xlu0 %2171
    %2173 = vrot.lane.b32.xlu0 %v2164, 127
    %v2174 = vpop.permute.xlu0 %2173
    %2175 = vrot.lane.b32.xlu0 %v2165, 127
    %v2176 = vpop.permute.xlu0 %2175
    %2177 = vrot.lane.b32.xlu0 %v2166, 127
    %v2178 = vpop.permute.xlu0 %2177
    %v2183 = vadd.f32 %v2157, %v2172
    %v2184 = vadd.f32 %v2158, %v2174
    %v2185 = vadd.f32 %v2159, %v2176
    %v2186 = vadd.f32 %v2160, %v2178
    %s2187 = sld [smem:[#allocation5 + $0x25]]
    %v2188 = vstv %s2187
    %v2189 = vmul.f32 %v2188, %v2147
    %v2190 = vmul.f32 %v2188, %v2148
    %v2191 = vmul.f32 %v2188, %v2149
    %v2192 = vmul.f32 %v2188, %v2150
    %2197 = vrot.lane.b32.xlu0 %v2189, 126
    %v2198 = vpop.permute.xlu0 %2197
    %2199 = vrot.lane.b32.xlu0 %v2190, 126
    %v2200 = vpop.permute.xlu0 %2199
    %2201 = vrot.lane.b32.xlu0 %v2191, 126
    %v2202 = vpop.permute.xlu0 %2201
    %2203 = vrot.lane.b32.xlu0 %v2192, 126
    %v2204 = vpop.permute.xlu0 %2203
    %v2209 = vadd.f32 %v2183, %v2198
    %v2210 = vadd.f32 %v2184, %v2200
    %v2211 = vadd.f32 %v2185, %v2202
    %v2212 = vadd.f32 %v2186, %v2204
    %s2213 = sld [smem:[#allocation5 + $0x26]]
    %v2214 = vstv %s2213
    %v2215 = vmul.f32 %v2214, %v2147
    %v2216 = vmul.f32 %v2214, %v2148
    %v2217 = vmul.f32 %v2214, %v2149
    %v2218 = vmul.f32 %v2214, %v2150
    %2223 = vrot.lane.b32.xlu0 %v2215, 125
    %v2224 = vpop.permute.xlu0 %2223
    %2225 = vrot.lane.b32.xlu0 %v2216, 125
    %v2226 = vpop.permute.xlu0 %2225
    %2227 = vrot.lane.b32.xlu0 %v2217, 125
    %v2228 = vpop.permute.xlu0 %2227
    %2229 = vrot.lane.b32.xlu0 %v2218, 125
    %v2230 = vpop.permute.xlu0 %2229
    %v2235 = vadd.f32 %v2209, %v2224
    %v2236 = vadd.f32 %v2210, %v2226
    %v2237 = vadd.f32 %v2211, %v2228
    %v2238 = vadd.f32 %v2212, %v2230
    %s2239 = sld [smem:[#allocation5 + $0x27]]
    %v2240 = vstv %s2239
    %v2241 = vmul.f32 %v2240, %v2147
    %v2242 = vmul.f32 %v2240, %v2148
    %v2243 = vmul.f32 %v2240, %v2149
    %v2244 = vmul.f32 %v2240, %v2150
    %2249 = vrot.lane.b32.xlu0 %v2241, 124
    %v2250 = vpop.permute.xlu0 %2249
    %2251 = vrot.lane.b32.xlu0 %v2242, 124
    %v2252 = vpop.permute.xlu0 %2251
    %2253 = vrot.lane.b32.xlu0 %v2243, 124
    %v2254 = vpop.permute.xlu0 %2253
    %2255 = vrot.lane.b32.xlu0 %v2244, 124
    %v2256 = vpop.permute.xlu0 %2255
    %v2261 = vadd.f32 %v2235, %v2250
    %v2262 = vadd.f32 %v2236, %v2252
    %v2263 = vadd.f32 %v2237, %v2254
    %v2264 = vadd.f32 %v2238, %v2256
    %s2265 = sld [smem:[#allocation5 + $0x28]]
    %v2266 = vstv %s2265
    %v2267 = vmul.f32 %v2266, %v2147
    %v2268 = vmul.f32 %v2266, %v2148
    %v2269 = vmul.f32 %v2266, %v2149
    %v2270 = vmul.f32 %v2266, %v2150
    %2275 = vrot.lane.b32.xlu0 %v2267, 123
    %v2276 = vpop.permute.xlu0 %2275
    %2277 = vrot.lane.b32.xlu0 %v2268, 123
    %v2278 = vpop.permute.xlu0 %2277
    %2279 = vrot.lane.b32.xlu0 %v2269, 123
    %v2280 = vpop.permute.xlu0 %2279
    %2281 = vrot.lane.b32.xlu0 %v2270, 123
    %v2282 = vpop.permute.xlu0 %2281
    %v2287 = vadd.f32 %v2261, %v2276
    %v2288 = vadd.f32 %v2262, %v2278
    %v2289 = vadd.f32 %v2263, %v2280
    %v2290 = vadd.f32 %v2264, %v2282
    %s2291 = sld [smem:[#allocation5 + $0x29]]
    %v2292 = vstv %s2291
    %v2293 = vmul.f32 %v2292, %v2147
    %v2294 = vmul.f32 %v2292, %v2148
    %v2295 = vmul.f32 %v2292, %v2149
    %v2296 = vmul.f32 %v2292, %v2150
    %2301 = vrot.lane.b32.xlu0 %v2293, 122
    %v2302 = vpop.permute.xlu0 %2301
    %2303 = vrot.lane.b32.xlu0 %v2294, 122
    %v2304 = vpop.permute.xlu0 %2303
    %2305 = vrot.lane.b32.xlu0 %v2295, 122
    %v2306 = vpop.permute.xlu0 %2305
    %2307 = vrot.lane.b32.xlu0 %v2296, 122
    %v2308 = vpop.permute.xlu0 %2307
    %v2313 = vadd.f32 %v2287, %v2302
    %v2314 = vadd.f32 %v2288, %v2304
    %v2315 = vadd.f32 %v2289, %v2306
    %v2316 = vadd.f32 %v2290, %v2308
    %v2317 = vld [vmem:[#allocation2 + $0x6] sm:$0xff]
    %v2318 = vld [vmem:[#allocation2 + $0xe] sm:$0xff]
    %v2319 = vld [vmem:[#allocation2 + $0x1e] sm:$0xff]
    %v2320 = vld [vmem:[#allocation2 + $0x26] sm:$0xff]
    %s2321 = sld [smem:[#allocation5 + $0x2a]]
    %v2322 = vstv %s2321
    %v2323 = vmul.f32 %v2322, %v2317
    %v2324 = vmul.f32 %v2322, %v2318
    %v2325 = vmul.f32 %v2322, %v2319
    %v2326 = vmul.f32 %v2322, %v2320
    %v2327 = vadd.f32 %v2143, %v2323
    %v2328 = vadd.f32 %v2144, %v2324
    %v2329 = vadd.f32 %v2145, %v2325
    %v2330 = vadd.f32 %v2146, %v2326
    %s2331 = sld [smem:[#allocation5 + $0x2b]]
    %v2332 = vstv %s2331
    %v2333 = vmul.f32 %v2332, %v2317
    %v2334 = vmul.f32 %v2332, %v2318
    %v2335 = vmul.f32 %v2332, %v2319
    %v2336 = vmul.f32 %v2332, %v2320
    %2341 = vrot.lane.b32.xlu0 %v2333, 127
    %v2342 = vpop.permute.xlu0 %2341
    %2343 = vrot.lane.b32.xlu0 %v2334, 127
    %v2344 = vpop.permute.xlu0 %2343
    %2345 = vrot.lane.b32.xlu0 %v2335, 127
    %v2346 = vpop.permute.xlu0 %2345
    %2347 = vrot.lane.b32.xlu0 %v2336, 127
    %v2348 = vpop.permute.xlu0 %2347
    %v2353 = vadd.f32 %v2327, %v2342
    %v2354 = vadd.f32 %v2328, %v2344
    %v2355 = vadd.f32 %v2329, %v2346
    %v2356 = vadd.f32 %v2330, %v2348
    %s2357 = sld [smem:[#allocation5 + $0x2c]]
    %v2358 = vstv %s2357
    %v2359 = vmul.f32 %v2358, %v2317
    %v2360 = vmul.f32 %v2358, %v2318
    %v2361 = vmul.f32 %v2358, %v2319
    %v2362 = vmul.f32 %v2358, %v2320
    %2367 = vrot.lane.b32.xlu0 %v2359, 126
    %v2368 = vpop.permute.xlu0 %2367
    %2369 = vrot.lane.b32.xlu0 %v2360, 126
    %v2370 = vpop.permute.xlu0 %2369
    %2371 = vrot.lane.b32.xlu0 %v2361, 126
    %v2372 = vpop.permute.xlu0 %2371
    %2373 = vrot.lane.b32.xlu0 %v2362, 126
    %v2374 = vpop.permute.xlu0 %2373
    %v2379 = vadd.f32 %v2353, %v2368
    %v2380 = vadd.f32 %v2354, %v2370
    %v2381 = vadd.f32 %v2355, %v2372
    %v2382 = vadd.f32 %v2356, %v2374
    %s2383 = sld [smem:[#allocation5 + $0x2d]]
    %v2384 = vstv %s2383
    %v2385 = vmul.f32 %v2384, %v2317
    %v2386 = vmul.f32 %v2384, %v2318
    %v2387 = vmul.f32 %v2384, %v2319
    %v2388 = vmul.f32 %v2384, %v2320
    %2393 = vrot.lane.b32.xlu0 %v2385, 125
    %v2394 = vpop.permute.xlu0 %2393
    %2395 = vrot.lane.b32.xlu0 %v2386, 125
    %v2396 = vpop.permute.xlu0 %2395
    %2397 = vrot.lane.b32.xlu0 %v2387, 125
    %v2398 = vpop.permute.xlu0 %2397
    %2399 = vrot.lane.b32.xlu0 %v2388, 125
    %v2400 = vpop.permute.xlu0 %2399
    %v2405 = vadd.f32 %v2379, %v2394
    %v2406 = vadd.f32 %v2380, %v2396
    %v2407 = vadd.f32 %v2381, %v2398
    %v2408 = vadd.f32 %v2382, %v2400
    %s2409 = sld [smem:[#allocation5 + $0x2e]]
    %v2410 = vstv %s2409
    %v2411 = vmul.f32 %v2410, %v2317
    %v2412 = vmul.f32 %v2410, %v2318
    %v2413 = vmul.f32 %v2410, %v2319
    %v2414 = vmul.f32 %v2410, %v2320
    %2419 = vrot.lane.b32.xlu0 %v2411, 124
    %v2420 = vpop.permute.xlu0 %2419
    %2421 = vrot.lane.b32.xlu0 %v2412, 124
    %v2422 = vpop.permute.xlu0 %2421
    %2423 = vrot.lane.b32.xlu0 %v2413, 124
    %v2424 = vpop.permute.xlu0 %2423
    %2425 = vrot.lane.b32.xlu0 %v2414, 124
    %v2426 = vpop.permute.xlu0 %2425
    %v2431 = vadd.f32 %v2405, %v2420
    %v2432 = vadd.f32 %v2406, %v2422
    %v2433 = vadd.f32 %v2407, %v2424
    %v2434 = vadd.f32 %v2408, %v2426
    %s2435 = sld [smem:[#allocation5 + $0x2f]]
    %v2436 = vstv %s2435
    %v2437 = vmul.f32 %v2436, %v2317
    %v2438 = vmul.f32 %v2436, %v2318
    %v2439 = vmul.f32 %v2436, %v2319
    %v2440 = vmul.f32 %v2436, %v2320
    %2445 = vrot.lane.b32.xlu0 %v2437, 123
    %v2446 = vpop.permute.xlu0 %2445
    %2447 = vrot.lane.b32.xlu0 %v2438, 123
    %v2448 = vpop.permute.xlu0 %2447
    %2449 = vrot.lane.b32.xlu0 %v2439, 123
    %v2450 = vpop.permute.xlu0 %2449
    %2451 = vrot.lane.b32.xlu0 %v2440, 123
    %v2452 = vpop.permute.xlu0 %2451
    %v2457 = vadd.f32 %v2431, %v2446
    %v2458 = vadd.f32 %v2432, %v2448
    %v2459 = vadd.f32 %v2433, %v2450
    %v2460 = vadd.f32 %v2434, %v2452
    %s2461 = sld [smem:[#allocation5 + $0x30]]
    %v2462 = vstv %s2461
    %v2463 = vmul.f32 %v2462, %v2317
    %v2464 = vmul.f32 %v2462, %v2318
    %v2465 = vmul.f32 %v2462, %v2319
    %v2466 = vmul.f32 %v2462, %v2320
    %2471 = vrot.lane.b32.xlu0 %v2463, 122
    %v2472 = vpop.permute.xlu0 %2471
    %2473 = vrot.lane.b32.xlu0 %v2464, 122
    %v2474 = vpop.permute.xlu0 %2473
    %2475 = vrot.lane.b32.xlu0 %v2465, 122
    %v2476 = vpop.permute.xlu0 %2475
    %2477 = vrot.lane.b32.xlu0 %v2466, 122
    %v2478 = vpop.permute.xlu0 %2477
    %v2483 = vadd.f32 %v2457, %v2472
    %v2484 = vadd.f32 %v2458, %v2474
    %v2485 = vadd.f32 %v2459, %v2476
    %v2486 = vadd.f32 %v2460, %v2478
    %v2487 = vld [vmem:[%s1050] sm:$0xff]
    %v2488 = vld [vmem:[%s1050 + $0x8] sm:$0xff]
    %v2489 = vld [vmem:[%s1050 + $0x18] sm:$0xff]
    %v2490 = vld [vmem:[%s1050 + $0x20] sm:$0xff]
    %s2491 = sld [smem:[#allocation5 + $0x31]]
    %v2492 = vstv %s2491
    %v2493 = vmul.f32 %v2492, %v2487
    %v2494 = vmul.f32 %v2492, %v2488
    %v2495 = vmul.f32 %v2492, %v2489
    %v2496 = vmul.f32 %v2492, %v2490
    %v2497 = vadd.f32 %v2493, 0.0
    %v2498 = vadd.f32 %v2494, 0.0
    %v2499 = vadd.f32 %v2495, 0.0
    %v2500 = vadd.f32 %v2496, 0.0
    %s2501 = sld [smem:[#allocation5 + $0x32]]
    %v2502 = vstv %s2501
    %v2503 = vmul.f32 %v2502, %v2487
    %v2504 = vmul.f32 %v2502, %v2488
    %v2505 = vmul.f32 %v2502, %v2489
    %v2506 = vmul.f32 %v2502, %v2490
    %2511 = vrot.lane.b32.xlu0 %v2503, 127
    %v2512 = vpop.permute.xlu0 %2511
    %2513 = vrot.lane.b32.xlu0 %v2504, 127
    %v2514 = vpop.permute.xlu0 %2513
    %2515 = vrot.lane.b32.xlu0 %v2505, 127
    %v2516 = vpop.permute.xlu0 %2515
    %2517 = vrot.lane.b32.xlu0 %v2506, 127
    %v2518 = vpop.permute.xlu0 %2517
    %v2523 = vadd.f32 %v2497, %v2512
    %v2524 = vadd.f32 %v2498, %v2514
    %v2525 = vadd.f32 %v2499, %v2516
    %v2526 = vadd.f32 %v2500, %v2518
    %s2527 = sld [smem:[#allocation5 + $0x33]]
    %v2528 = vstv %s2527
    %v2529 = vmul.f32 %v2528, %v2487
    %v2530 = vmul.f32 %v2528, %v2488
    %v2531 = vmul.f32 %v2528, %v2489
    %v2532 = vmul.f32 %v2528, %v2490
    %2537 = vrot.lane.b32.xlu0 %v2529, 126
    %v2538 = vpop.permute.xlu0 %2537
    %2539 = vrot.lane.b32.xlu0 %v2530, 126
    %v2540 = vpop.permute.xlu0 %2539
    %2541 = vrot.lane.b32.xlu0 %v2531, 126
    %v2542 = vpop.permute.xlu0 %2541
    %2543 = vrot.lane.b32.xlu0 %v2532, 126
    %v2544 = vpop.permute.xlu0 %2543
    %v2549 = vadd.f32 %v2523, %v2538
    %v2550 = vadd.f32 %v2524, %v2540
    %v2551 = vadd.f32 %v2525, %v2542
    %v2552 = vadd.f32 %v2526, %v2544
    %s2553 = sld [smem:[#allocation5 + $0x34]]
    %v2554 = vstv %s2553
    %v2555 = vmul.f32 %v2554, %v2487
    %v2556 = vmul.f32 %v2554, %v2488
    %v2557 = vmul.f32 %v2554, %v2489
    %v2558 = vmul.f32 %v2554, %v2490
    %2563 = vrot.lane.b32.xlu0 %v2555, 125
    %v2564 = vpop.permute.xlu0 %2563
    %2565 = vrot.lane.b32.xlu0 %v2556, 125
    %v2566 = vpop.permute.xlu0 %2565
    %2567 = vrot.lane.b32.xlu0 %v2557, 125
    %v2568 = vpop.permute.xlu0 %2567
    %2569 = vrot.lane.b32.xlu0 %v2558, 125
    %v2570 = vpop.permute.xlu0 %2569
    %v2575 = vadd.f32 %v2549, %v2564
    %v2576 = vadd.f32 %v2550, %v2566
    %v2577 = vadd.f32 %v2551, %v2568
    %v2578 = vadd.f32 %v2552, %v2570
    %s2579 = sld [smem:[#allocation5 + $0x35]]
    %v2580 = vstv %s2579
    %v2581 = vmul.f32 %v2580, %v2487
    %v2582 = vmul.f32 %v2580, %v2488
    %v2583 = vmul.f32 %v2580, %v2489
    %v2584 = vmul.f32 %v2580, %v2490
    %2589 = vrot.lane.b32.xlu0 %v2581, 124
    %v2590 = vpop.permute.xlu0 %2589
    %2591 = vrot.lane.b32.xlu0 %v2582, 124
    %v2592 = vpop.permute.xlu0 %2591
    %2593 = vrot.lane.b32.xlu0 %v2583, 124
    %v2594 = vpop.permute.xlu0 %2593
    %2595 = vrot.lane.b32.xlu0 %v2584, 124
    %v2596 = vpop.permute.xlu0 %2595
    %v2601 = vadd.f32 %v2575, %v2590
    %v2602 = vadd.f32 %v2576, %v2592
    %v2603 = vadd.f32 %v2577, %v2594
    %v2604 = vadd.f32 %v2578, %v2596
    %s2605 = sld [smem:[#allocation5 + $0x36]]
    %v2606 = vstv %s2605
    %v2607 = vmul.f32 %v2606, %v2487
    %v2608 = vmul.f32 %v2606, %v2488
    %v2609 = vmul.f32 %v2606, %v2489
    %v2610 = vmul.f32 %v2606, %v2490
    %2615 = vrot.lane.b32.xlu0 %v2607, 123
    %v2616 = vpop.permute.xlu0 %2615
    %2617 = vrot.lane.b32.xlu0 %v2608, 123
    %v2618 = vpop.permute.xlu0 %2617
    %2619 = vrot.lane.b32.xlu0 %v2609, 123
    %v2620 = vpop.permute.xlu0 %2619
    %2621 = vrot.lane.b32.xlu0 %v2610, 123
    %v2622 = vpop.permute.xlu0 %2621
    %v2627 = vadd.f32 %v2601, %v2616
    %v2628 = vadd.f32 %v2602, %v2618
    %v2629 = vadd.f32 %v2603, %v2620
    %v2630 = vadd.f32 %v2604, %v2622
    %s2631 = sld [smem:[#allocation5 + $0x37]]
    %v2632 = vstv %s2631
    %v2633 = vmul.f32 %v2632, %v2487
    %v2634 = vmul.f32 %v2632, %v2488
    %v2635 = vmul.f32 %v2632, %v2489
    %v2636 = vmul.f32 %v2632, %v2490
    %2641 = vrot.lane.b32.xlu0 %v2633, 122
    %v2642 = vpop.permute.xlu0 %2641
    %2643 = vrot.lane.b32.xlu0 %v2634, 122
    %v2644 = vpop.permute.xlu0 %2643
    %2645 = vrot.lane.b32.xlu0 %v2635, 122
    %v2646 = vpop.permute.xlu0 %2645
    %2647 = vrot.lane.b32.xlu0 %v2636, 122
    %v2648 = vpop.permute.xlu0 %2647
    %v2653 = vadd.f32 %v2627, %v2642
    %v2654 = vadd.f32 %v2628, %v2644
    %v2655 = vadd.f32 %v2629, %v2646
    %v2656 = vadd.f32 %v2630, %v2648
    %v2657 = vld [vmem:[%s1050 + $0x1] sm:$0xff]
    %v2658 = vld [vmem:[%s1050 + $0x9] sm:$0xff]
    %v2659 = vld [vmem:[%s1050 + $0x19] sm:$0xff]
    %v2660 = vld [vmem:[%s1050 + $0x21] sm:$0xff]
    %s2661 = sld [smem:[#allocation5 + $0x38]]
    %v2662 = vstv %s2661
    %v2663 = vmul.f32 %v2662, %v2657
    %v2664 = vmul.f32 %v2662, %v2658
    %v2665 = vmul.f32 %v2662, %v2659
    %v2666 = vmul.f32 %v2662, %v2660
    %v2667 = vadd.f32 %v2663, 0.0
    %v2668 = vadd.f32 %v2664, 0.0
    %v2669 = vadd.f32 %v2665, 0.0
    %v2670 = vadd.f32 %v2666, 0.0
    %s2671 = sld [smem:[#allocation5 + $0x39]]
    %v2672 = vstv %s2671
    %v2673 = vmul.f32 %v2672, %v2657
    %v2674 = vmul.f32 %v2672, %v2658
    %v2675 = vmul.f32 %v2672, %v2659
    %v2676 = vmul.f32 %v2672, %v2660
    %2681 = vrot.lane.b32.xlu0 %v2673, 127
    %v2682 = vpop.permute.xlu0 %2681
    %2683 = vrot.lane.b32.xlu0 %v2674, 127
    %v2684 = vpop.permute.xlu0 %2683
    %2685 = vrot.lane.b32.xlu0 %v2675, 127
    %v2686 = vpop.permute.xlu0 %2685
    %2687 = vrot.lane.b32.xlu0 %v2676, 127
    %v2688 = vpop.permute.xlu0 %2687
    %v2693 = vadd.f32 %v2667, %v2682
    %v2694 = vadd.f32 %v2668, %v2684
    %v2695 = vadd.f32 %v2669, %v2686
    %v2696 = vadd.f32 %v2670, %v2688
    %s2697 = sld [smem:[#allocation5 + $0x3a]]
    %v2698 = vstv %s2697
    %v2699 = vmul.f32 %v2698, %v2657
    %v2700 = vmul.f32 %v2698, %v2658
    %v2701 = vmul.f32 %v2698, %v2659
    %v2702 = vmul.f32 %v2698, %v2660
    %2707 = vrot.lane.b32.xlu0 %v2699, 126
    %v2708 = vpop.permute.xlu0 %2707
    %2709 = vrot.lane.b32.xlu0 %v2700, 126
    %v2710 = vpop.permute.xlu0 %2709
    %2711 = vrot.lane.b32.xlu0 %v2701, 126
    %v2712 = vpop.permute.xlu0 %2711
    %2713 = vrot.lane.b32.xlu0 %v2702, 126
    %v2714 = vpop.permute.xlu0 %2713
    %v2719 = vadd.f32 %v2693, %v2708
    %v2720 = vadd.f32 %v2694, %v2710
    %v2721 = vadd.f32 %v2695, %v2712
    %v2722 = vadd.f32 %v2696, %v2714
    %s2723 = sld [smem:[#allocation5 + $0x3b]]
    %v2724 = vstv %s2723
    %v2725 = vmul.f32 %v2724, %v2657
    %v2726 = vmul.f32 %v2724, %v2658
    %v2727 = vmul.f32 %v2724, %v2659
    %v2728 = vmul.f32 %v2724, %v2660
    %2733 = vrot.lane.b32.xlu0 %v2725, 125
    %v2734 = vpop.permute.xlu0 %2733
    %2735 = vrot.lane.b32.xlu0 %v2726, 125
    %v2736 = vpop.permute.xlu0 %2735
    %2737 = vrot.lane.b32.xlu0 %v2727, 125
    %v2738 = vpop.permute.xlu0 %2737
    %2739 = vrot.lane.b32.xlu0 %v2728, 125
    %v2740 = vpop.permute.xlu0 %2739
    %v2745 = vadd.f32 %v2719, %v2734
    %v2746 = vadd.f32 %v2720, %v2736
    %v2747 = vadd.f32 %v2721, %v2738
    %v2748 = vadd.f32 %v2722, %v2740
    %s2749 = sld [smem:[#allocation5 + $0x3c]]
    %v2750 = vstv %s2749
    %v2751 = vmul.f32 %v2750, %v2657
    %v2752 = vmul.f32 %v2750, %v2658
    %v2753 = vmul.f32 %v2750, %v2659
    %v2754 = vmul.f32 %v2750, %v2660
    %2759 = vrot.lane.b32.xlu0 %v2751, 124
    %v2760 = vpop.permute.xlu0 %2759
    %2761 = vrot.lane.b32.xlu0 %v2752, 124
    %v2762 = vpop.permute.xlu0 %2761
    %2763 = vrot.lane.b32.xlu0 %v2753, 124
    %v2764 = vpop.permute.xlu0 %2763
    %2765 = vrot.lane.b32.xlu0 %v2754, 124
    %v2766 = vpop.permute.xlu0 %2765
    %v2771 = vadd.f32 %v2745, %v2760
    %v2772 = vadd.f32 %v2746, %v2762
    %v2773 = vadd.f32 %v2747, %v2764
    %v2774 = vadd.f32 %v2748, %v2766
    %s2775 = sld [smem:[#allocation5 + $0x3d]]
    %v2776 = vstv %s2775
    %v2777 = vmul.f32 %v2776, %v2657
    %v2778 = vmul.f32 %v2776, %v2658
    %v2779 = vmul.f32 %v2776, %v2659
    %v2780 = vmul.f32 %v2776, %v2660
    %2785 = vrot.lane.b32.xlu0 %v2777, 123
    %v2786 = vpop.permute.xlu0 %2785
    %2787 = vrot.lane.b32.xlu0 %v2778, 123
    %v2788 = vpop.permute.xlu0 %2787
    %2789 = vrot.lane.b32.xlu0 %v2779, 123
    %v2790 = vpop.permute.xlu0 %2789
    %2791 = vrot.lane.b32.xlu0 %v2780, 123
    %v2792 = vpop.permute.xlu0 %2791
    %v2797 = vadd.f32 %v2771, %v2786
    %v2798 = vadd.f32 %v2772, %v2788
    %v2799 = vadd.f32 %v2773, %v2790
    %v2800 = vadd.f32 %v2774, %v2792
    %s2801 = sld [smem:[#allocation5 + $0x3e]]
    %v2802 = vstv %s2801
    %v2803 = vmul.f32 %v2802, %v2657
    %v2804 = vmul.f32 %v2802, %v2658
    %v2805 = vmul.f32 %v2802, %v2659
    %v2806 = vmul.f32 %v2802, %v2660
    %2811 = vrot.lane.b32.xlu0 %v2803, 122
    %v2812 = vpop.permute.xlu0 %2811
    %2813 = vrot.lane.b32.xlu0 %v2804, 122
    %v2814 = vpop.permute.xlu0 %2813
    %2815 = vrot.lane.b32.xlu0 %v2805, 122
    %v2816 = vpop.permute.xlu0 %2815
    %2817 = vrot.lane.b32.xlu0 %v2806, 122
    %v2818 = vpop.permute.xlu0 %2817
    %v2823 = vadd.f32 %v2797, %v2812
    %v2824 = vadd.f32 %v2798, %v2814
    %v2825 = vadd.f32 %v2799, %v2816
    %v2826 = vadd.f32 %v2800, %v2818
    %v2827 = vld [vmem:[%s1050 + $0x2] sm:$0xff]
    %v2828 = vld [vmem:[%s1050 + $0xa] sm:$0xff]
    %v2829 = vld [vmem:[%s1050 + $0x1a] sm:$0xff]
    %v2830 = vld [vmem:[%s1050 + $0x22] sm:$0xff]
    %s2831 = sld [smem:[#allocation5 + $0x3f]]
    %v2832 = vstv %s2831
    %v2833 = vmul.f32 %v2832, %v2827
    %v2834 = vmul.f32 %v2832, %v2828
    %v2835 = vmul.f32 %v2832, %v2829
    %v2836 = vmul.f32 %v2832, %v2830
    %v2837 = vadd.f32 %v2653, %v2833
    %v2838 = vadd.f32 %v2654, %v2834
    %v2839 = vadd.f32 %v2655, %v2835
    %v2840 = vadd.f32 %v2656, %v2836
    %s2841 = sld [smem:[#allocation5 + $0x40]]
    %v2842 = vstv %s2841
    %v2843 = vmul.f32 %v2842, %v2827
    %v2844 = vmul.f32 %v2842, %v2828
    %v2845 = vmul.f32 %v2842, %v2829
    %v2846 = vmul.f32 %v2842, %v2830
    %2851 = vrot.lane.b32.xlu0 %v2843, 127
    %v2852 = vpop.permute.xlu0 %2851
    %2853 = vrot.lane.b32.xlu0 %v2844, 127
    %v2854 = vpop.permute.xlu0 %2853
    %2855 = vrot.lane.b32.xlu0 %v2845, 127
    %v2856 = vpop.permute.xlu0 %2855
    %2857 = vrot.lane.b32.xlu0 %v2846, 127
    %v2858 = vpop.permute.xlu0 %2857
    %v2863 = vadd.f32 %v2837, %v2852
    %v2864 = vadd.f32 %v2838, %v2854
    %v2865 = vadd.f32 %v2839, %v2856
    %v2866 = vadd.f32 %v2840, %v2858
    %s2867 = sld [smem:[#allocation5 + $0x41]]
    %v2868 = vstv %s2867
    %v2869 = vmul.f32 %v2868, %v2827
    %v2870 = vmul.f32 %v2868, %v2828
    %v2871 = vmul.f32 %v2868, %v2829
    %v2872 = vmul.f32 %v2868, %v2830
    %2877 = vrot.lane.b32.xlu0 %v2869, 126
    %v2878 = vpop.permute.xlu0 %2877
    %2879 = vrot.lane.b32.xlu0 %v2870, 126
    %v2880 = vpop.permute.xlu0 %2879
    %2881 = vrot.lane.b32.xlu0 %v2871, 126
    %v2882 = vpop.permute.xlu0 %2881
    %2883 = vrot.lane.b32.xlu0 %v2872, 126
    %v2884 = vpop.permute.xlu0 %2883
    %v2889 = vadd.f32 %v2863, %v2878
    %v2890 = vadd.f32 %v2864, %v2880
    %v2891 = vadd.f32 %v2865, %v2882
    %v2892 = vadd.f32 %v2866, %v2884
    %s2893 = sld [smem:[#allocation5 + $0x42]]
    %v2894 = vstv %s2893
    %v2895 = vmul.f32 %v2894, %v2827
    %v2896 = vmul.f32 %v2894, %v2828
    %v2897 = vmul.f32 %v2894, %v2829
    %v2898 = vmul.f32 %v2894, %v2830
    %2903 = vrot.lane.b32.xlu0 %v2895, 125
    %v2904 = vpop.permute.xlu0 %2903
    %2905 = vrot.lane.b32.xlu0 %v2896, 125
    %v2906 = vpop.permute.xlu0 %2905
    %2907 = vrot.lane.b32.xlu0 %v2897, 125
    %v2908 = vpop.permute.xlu0 %2907
    %2909 = vrot.lane.b32.xlu0 %v2898, 125
    %v2910 = vpop.permute.xlu0 %2909
    %v2915 = vadd.f32 %v2889, %v2904
    %v2916 = vadd.f32 %v2890, %v2906
    %v2917 = vadd.f32 %v2891, %v2908
    %v2918 = vadd.f32 %v2892, %v2910
    %s2919 = sld [smem:[#allocation5 + $0x43]]
    %v2920 = vstv %s2919
    %v2921 = vmul.f32 %v2920, %v2827
    %v2922 = vmul.f32 %v2920, %v2828
    %v2923 = vmul.f32 %v2920, %v2829
    %v2924 = vmul.f32 %v2920, %v2830
    %2929 = vrot.lane.b32.xlu0 %v2921, 124
    %v2930 = vpop.permute.xlu0 %2929
    %2931 = vrot.lane.b32.xlu0 %v2922, 124
    %v2932 = vpop.permute.xlu0 %2931
    %2933 = vrot.lane.b32.xlu0 %v2923, 124
    %v2934 = vpop.permute.xlu0 %2933
    %2935 = vrot.lane.b32.xlu0 %v2924, 124
    %v2936 = vpop.permute.xlu0 %2935
    %v2941 = vadd.f32 %v2915, %v2930
    %v2942 = vadd.f32 %v2916, %v2932
    %v2943 = vadd.f32 %v2917, %v2934
    %v2944 = vadd.f32 %v2918, %v2936
    %s2945 = sld [smem:[#allocation5 + $0x44]]
    %v2946 = vstv %s2945
    %v2947 = vmul.f32 %v2946, %v2827
    %v2948 = vmul.f32 %v2946, %v2828
    %v2949 = vmul.f32 %v2946, %v2829
    %v2950 = vmul.f32 %v2946, %v2830
    %2955 = vrot.lane.b32.xlu0 %v2947, 123
    %v2956 = vpop.permute.xlu0 %2955
    %2957 = vrot.lane.b32.xlu0 %v2948, 123
    %v2958 = vpop.permute.xlu0 %2957
    %2959 = vrot.lane.b32.xlu0 %v2949, 123
    %v2960 = vpop.permute.xlu0 %2959
    %2961 = vrot.lane.b32.xlu0 %v2950, 123
    %v2962 = vpop.permute.xlu0 %2961
    %v2967 = vadd.f32 %v2941, %v2956
    %v2968 = vadd.f32 %v2942, %v2958
    %v2969 = vadd.f32 %v2943, %v2960
    %v2970 = vadd.f32 %v2944, %v2962
    %s2971 = sld [smem:[#allocation5 + $0x45]]
    %v2972 = vstv %s2971
    %v2973 = vmul.f32 %v2972, %v2827
    %v2974 = vmul.f32 %v2972, %v2828
    %v2975 = vmul.f32 %v2972, %v2829
    %v2976 = vmul.f32 %v2972, %v2830
    %2981 = vrot.lane.b32.xlu0 %v2973, 122
    %v2982 = vpop.permute.xlu0 %2981
    %2983 = vrot.lane.b32.xlu0 %v2974, 122
    %v2984 = vpop.permute.xlu0 %2983
    %2985 = vrot.lane.b32.xlu0 %v2975, 122
    %v2986 = vpop.permute.xlu0 %2985
    %2987 = vrot.lane.b32.xlu0 %v2976, 122
    %v2988 = vpop.permute.xlu0 %2987
    %v2993 = vadd.f32 %v2967, %v2982
    %v2994 = vadd.f32 %v2968, %v2984
    %v2995 = vadd.f32 %v2969, %v2986
    %v2996 = vadd.f32 %v2970, %v2988
    %v2997 = vld [vmem:[%s1050 + $0x3] sm:$0xff]
    %v2998 = vld [vmem:[%s1050 + $0xb] sm:$0xff]
    %v2999 = vld [vmem:[%s1050 + $0x1b] sm:$0xff]
    %v3000 = vld [vmem:[%s1050 + $0x23] sm:$0xff]
    %s3001 = sld [smem:[#allocation5 + $0x46]]
    %v3002 = vstv %s3001
    %v3003 = vmul.f32 %v3002, %v2997
    %v3004 = vmul.f32 %v3002, %v2998
    %v3005 = vmul.f32 %v3002, %v2999
    %v3006 = vmul.f32 %v3002, %v3000
    %v3007 = vadd.f32 %v2823, %v3003
    %v3008 = vadd.f32 %v2824, %v3004
    %v3009 = vadd.f32 %v2825, %v3005
    %v3010 = vadd.f32 %v2826, %v3006
    %s3011 = sld [smem:[#allocation5 + $0x47]]
    %v3012 = vstv %s3011
    %v3013 = vmul.f32 %v3012, %v2997
    %v3014 = vmul.f32 %v3012, %v2998
    %v3015 = vmul.f32 %v3012, %v2999
    %v3016 = vmul.f32 %v3012, %v3000
    %3021 = vrot.lane.b32.xlu0 %v3013, 127
    %v3022 = vpop.permute.xlu0 %3021
    %3023 = vrot.lane.b32.xlu0 %v3014, 127
    %v3024 = vpop.permute.xlu0 %3023
    %3025 = vrot.lane.b32.xlu0 %v3015, 127
    %v3026 = vpop.permute.xlu0 %3025
    %3027 = vrot.lane.b32.xlu0 %v3016, 127
    %v3028 = vpop.permute.xlu0 %3027
    %v3033 = vadd.f32 %v3007, %v3022
    %v3034 = vadd.f32 %v3008, %v3024
    %v3035 = vadd.f32 %v3009, %v3026
    %v3036 = vadd.f32 %v3010, %v3028
    %s3037 = sld [smem:[#allocation5 + $0x48]]
    %v3038 = vstv %s3037
    %v3039 = vmul.f32 %v3038, %v2997
    %v3040 = vmul.f32 %v3038, %v2998
    %v3041 = vmul.f32 %v3038, %v2999
    %v3042 = vmul.f32 %v3038, %v3000
    %3047 = vrot.lane.b32.xlu0 %v3039, 126
    %v3048 = vpop.permute.xlu0 %3047
    %3049 = vrot.lane.b32.xlu0 %v3040, 126
    %v3050 = vpop.permute.xlu0 %3049
    %3051 = vrot.lane.b32.xlu0 %v3041, 126
    %v3052 = vpop.permute.xlu0 %3051
    %3053 = vrot.lane.b32.xlu0 %v3042, 126
    %v3054 = vpop.permute.xlu0 %3053
    %v3059 = vadd.f32 %v3033, %v3048
    %v3060 = vadd.f32 %v3034, %v3050
    %v3061 = vadd.f32 %v3035, %v3052
    %v3062 = vadd.f32 %v3036, %v3054
    %s3063 = sld [smem:[#allocation5 + $0x49]]
    %v3064 = vstv %s3063
    %v3065 = vmul.f32 %v3064, %v2997
    %v3066 = vmul.f32 %v3064, %v2998
    %v3067 = vmul.f32 %v3064, %v2999
    %v3068 = vmul.f32 %v3064, %v3000
    %3073 = vrot.lane.b32.xlu0 %v3065, 125
    %v3074 = vpop.permute.xlu0 %3073
    %3075 = vrot.lane.b32.xlu0 %v3066, 125
    %v3076 = vpop.permute.xlu0 %3075
    %3077 = vrot.lane.b32.xlu0 %v3067, 125
    %v3078 = vpop.permute.xlu0 %3077
    %3079 = vrot.lane.b32.xlu0 %v3068, 125
    %v3080 = vpop.permute.xlu0 %3079
    %v3085 = vadd.f32 %v3059, %v3074
    %v3086 = vadd.f32 %v3060, %v3076
    %v3087 = vadd.f32 %v3061, %v3078
    %v3088 = vadd.f32 %v3062, %v3080
    %s3089 = sld [smem:[#allocation5 + $0x4a]]
    %v3090 = vstv %s3089
    %v3091 = vmul.f32 %v3090, %v2997
    %v3092 = vmul.f32 %v3090, %v2998
    %v3093 = vmul.f32 %v3090, %v2999
    %v3094 = vmul.f32 %v3090, %v3000
    %3099 = vrot.lane.b32.xlu0 %v3091, 124
    %v3100 = vpop.permute.xlu0 %3099
    %3101 = vrot.lane.b32.xlu0 %v3092, 124
    %v3102 = vpop.permute.xlu0 %3101
    %3103 = vrot.lane.b32.xlu0 %v3093, 124
    %v3104 = vpop.permute.xlu0 %3103
    %3105 = vrot.lane.b32.xlu0 %v3094, 124
    %v3106 = vpop.permute.xlu0 %3105
    %v3111 = vadd.f32 %v3085, %v3100
    %v3112 = vadd.f32 %v3086, %v3102
    %v3113 = vadd.f32 %v3087, %v3104
    %v3114 = vadd.f32 %v3088, %v3106
    %s3115 = sld [smem:[#allocation5 + $0x4b]]
    %v3116 = vstv %s3115
    %v3117 = vmul.f32 %v3116, %v2997
    %v3118 = vmul.f32 %v3116, %v2998
    %v3119 = vmul.f32 %v3116, %v2999
    %v3120 = vmul.f32 %v3116, %v3000
    %3125 = vrot.lane.b32.xlu0 %v3117, 123
    %v3126 = vpop.permute.xlu0 %3125
    %3127 = vrot.lane.b32.xlu0 %v3118, 123
    %v3128 = vpop.permute.xlu0 %3127
    %3129 = vrot.lane.b32.xlu0 %v3119, 123
    %v3130 = vpop.permute.xlu0 %3129
    %3131 = vrot.lane.b32.xlu0 %v3120, 123
    %v3132 = vpop.permute.xlu0 %3131
    %v3137 = vadd.f32 %v3111, %v3126
    %v3138 = vadd.f32 %v3112, %v3128
    %v3139 = vadd.f32 %v3113, %v3130
    %v3140 = vadd.f32 %v3114, %v3132
    %s3141 = sld [smem:[#allocation5 + $0x4c]]
    %v3142 = vstv %s3141
    %v3143 = vmul.f32 %v3142, %v2997
    %v3144 = vmul.f32 %v3142, %v2998
    %v3145 = vmul.f32 %v3142, %v2999
    %v3146 = vmul.f32 %v3142, %v3000
    %3151 = vrot.lane.b32.xlu0 %v3143, 122
    %v3152 = vpop.permute.xlu0 %3151
    %3153 = vrot.lane.b32.xlu0 %v3144, 122
    %v3154 = vpop.permute.xlu0 %3153
    %3155 = vrot.lane.b32.xlu0 %v3145, 122
    %v3156 = vpop.permute.xlu0 %3155
    %3157 = vrot.lane.b32.xlu0 %v3146, 122
    %v3158 = vpop.permute.xlu0 %3157
    %v3163 = vadd.f32 %v3137, %v3152
    %v3164 = vadd.f32 %v3138, %v3154
    %v3165 = vadd.f32 %v3139, %v3156
    %v3166 = vadd.f32 %v3140, %v3158
    %v3167 = vld [vmem:[%s1050 + $0x4] sm:$0xff]
    %v3168 = vld [vmem:[%s1050 + $0xc] sm:$0xff]
    %v3169 = vld [vmem:[%s1050 + $0x1c] sm:$0xff]
    %v3170 = vld [vmem:[%s1050 + $0x24] sm:$0xff]
    %s3171 = sld [smem:[#allocation5 + $0x4d]]
    %v3172 = vstv %s3171
    %v3173 = vmul.f32 %v3172, %v3167
    %v3174 = vmul.f32 %v3172, %v3168
    %v3175 = vmul.f32 %v3172, %v3169
    %v3176 = vmul.f32 %v3172, %v3170
    %v3177 = vadd.f32 %v2993, %v3173
    %v3178 = vadd.f32 %v2994, %v3174
    %v3179 = vadd.f32 %v2995, %v3175
    %v3180 = vadd.f32 %v2996, %v3176
    %s3181 = sld [smem:[#allocation5 + $0x4e]]
    %v3182 = vstv %s3181
    %v3183 = vmul.f32 %v3182, %v3167
    %v3184 = vmul.f32 %v3182, %v3168
    %v3185 = vmul.f32 %v3182, %v3169
    %v3186 = vmul.f32 %v3182, %v3170
    %3191 = vrot.lane.b32.xlu0 %v3183, 127
    %v3192 = vpop.permute.xlu0 %3191
    %3193 = vrot.lane.b32.xlu0 %v3184, 127
    %v3194 = vpop.permute.xlu0 %3193
    %3195 = vrot.lane.b32.xlu0 %v3185, 127
    %v3196 = vpop.permute.xlu0 %3195
    %3197 = vrot.lane.b32.xlu0 %v3186, 127
    %v3198 = vpop.permute.xlu0 %3197
    %v3203 = vadd.f32 %v3177, %v3192
    %v3204 = vadd.f32 %v3178, %v3194
    %v3205 = vadd.f32 %v3179, %v3196
    %v3206 = vadd.f32 %v3180, %v3198
    %s3207 = sld [smem:[#allocation5 + $0x4f]]
    %v3208 = vstv %s3207
    %v3209 = vmul.f32 %v3208, %v3167
    %v3210 = vmul.f32 %v3208, %v3168
    %v3211 = vmul.f32 %v3208, %v3169
    %v3212 = vmul.f32 %v3208, %v3170
    %3217 = vrot.lane.b32.xlu0 %v3209, 126
    %v3218 = vpop.permute.xlu0 %3217
    %3219 = vrot.lane.b32.xlu0 %v3210, 126
    %v3220 = vpop.permute.xlu0 %3219
    %3221 = vrot.lane.b32.xlu0 %v3211, 126
    %v3222 = vpop.permute.xlu0 %3221
    %3223 = vrot.lane.b32.xlu0 %v3212, 126
    %v3224 = vpop.permute.xlu0 %3223
    %v3229 = vadd.f32 %v3203, %v3218
    %v3230 = vadd.f32 %v3204, %v3220
    %v3231 = vadd.f32 %v3205, %v3222
    %v3232 = vadd.f32 %v3206, %v3224
    %s3233 = sld [smem:[#allocation5 + $0x50]]
    %v3234 = vstv %s3233
    %v3235 = vmul.f32 %v3234, %v3167
    %v3236 = vmul.f32 %v3234, %v3168
    %v3237 = vmul.f32 %v3234, %v3169
    %v3238 = vmul.f32 %v3234, %v3170
    %3243 = vrot.lane.b32.xlu0 %v3235, 125
    %v3244 = vpop.permute.xlu0 %3243
    %3245 = vrot.lane.b32.xlu0 %v3236, 125
    %v3246 = vpop.permute.xlu0 %3245
    %3247 = vrot.lane.b32.xlu0 %v3237, 125
    %v3248 = vpop.permute.xlu0 %3247
    %3249 = vrot.lane.b32.xlu0 %v3238, 125
    %v3250 = vpop.permute.xlu0 %3249
    %v3255 = vadd.f32 %v3229, %v3244
    %v3256 = vadd.f32 %v3230, %v3246
    %v3257 = vadd.f32 %v3231, %v3248
    %v3258 = vadd.f32 %v3232, %v3250
    %s3259 = sld [smem:[#allocation5 + $0x51]]
    %v3260 = vstv %s3259
    %v3261 = vmul.f32 %v3260, %v3167
    %v3262 = vmul.f32 %v3260, %v3168
    %v3263 = vmul.f32 %v3260, %v3169
    %v3264 = vmul.f32 %v3260, %v3170
    %3269 = vrot.lane.b32.xlu0 %v3261, 124
    %v3270 = vpop.permute.xlu0 %3269
    %3271 = vrot.lane.b32.xlu0 %v3262, 124
    %v3272 = vpop.permute.xlu0 %3271
    %3273 = vrot.lane.b32.xlu0 %v3263, 124
    %v3274 = vpop.permute.xlu0 %3273
    %3275 = vrot.lane.b32.xlu0 %v3264, 124
    %v3276 = vpop.permute.xlu0 %3275
    %v3281 = vadd.f32 %v3255, %v3270
    %v3282 = vadd.f32 %v3256, %v3272
    %v3283 = vadd.f32 %v3257, %v3274
    %v3284 = vadd.f32 %v3258, %v3276
    %s3285 = sld [smem:[#allocation5 + $0x52]]
    %v3286 = vstv %s3285
    %v3287 = vmul.f32 %v3286, %v3167
    %v3288 = vmul.f32 %v3286, %v3168
    %v3289 = vmul.f32 %v3286, %v3169
    %v3290 = vmul.f32 %v3286, %v3170
    %3295 = vrot.lane.b32.xlu0 %v3287, 123
    %v3296 = vpop.permute.xlu0 %3295
    %3297 = vrot.lane.b32.xlu0 %v3288, 123
    %v3298 = vpop.permute.xlu0 %3297
    %3299 = vrot.lane.b32.xlu0 %v3289, 123
    %v3300 = vpop.permute.xlu0 %3299
    %3301 = vrot.lane.b32.xlu0 %v3290, 123
    %v3302 = vpop.permute.xlu0 %3301
    %v3307 = vadd.f32 %v3281, %v3296
    %v3308 = vadd.f32 %v3282, %v3298
    %v3309 = vadd.f32 %v3283, %v3300
    %v3310 = vadd.f32 %v3284, %v3302
    %s3311 = sld [smem:[#allocation5 + $0x53]]
    %v3312 = vstv %s3311
    %v3313 = vmul.f32 %v3312, %v3167
    %v3314 = vmul.f32 %v3312, %v3168
    %v3315 = vmul.f32 %v3312, %v3169
    %v3316 = vmul.f32 %v3312, %v3170
    %3321 = vrot.lane.b32.xlu0 %v3313, 122
    %v3322 = vpop.permute.xlu0 %3321
    %3323 = vrot.lane.b32.xlu0 %v3314, 122
    %v3324 = vpop.permute.xlu0 %3323
    %3325 = vrot.lane.b32.xlu0 %v3315, 122
    %v3326 = vpop.permute.xlu0 %3325
    %3327 = vrot.lane.b32.xlu0 %v3316, 122
    %v3328 = vpop.permute.xlu0 %3327
    %v3333 = vadd.f32 %v3307, %v3322
    %v3334 = vadd.f32 %v3308, %v3324
    %v3335 = vadd.f32 %v3309, %v3326
    %v3336 = vadd.f32 %v3310, %v3328
    %v3337 = vld [vmem:[%s1050 + $0x5] sm:$0xff]
    %v3338 = vld [vmem:[%s1050 + $0xd] sm:$0xff]
    %v3339 = vld [vmem:[%s1050 + $0x1d] sm:$0xff]
    %v3340 = vld [vmem:[%s1050 + $0x25] sm:$0xff]
    %s3341 = sld [smem:[#allocation5 + $0x54]]
    %v3342 = vstv %s3341
    %v3343 = vmul.f32 %v3342, %v3337
    %v3344 = vmul.f32 %v3342, %v3338
    %v3345 = vmul.f32 %v3342, %v3339
    %v3346 = vmul.f32 %v3342, %v3340
    %v3347 = vadd.f32 %v3163, %v3343
    %v3348 = vadd.f32 %v3164, %v3344
    %v3349 = vadd.f32 %v3165, %v3345
    %v3350 = vadd.f32 %v3166, %v3346
    %s3351 = sld [smem:[#allocation5 + $0x55]]
    %v3352 = vstv %s3351
    %v3353 = vmul.f32 %v3352, %v3337
    %v3354 = vmul.f32 %v3352, %v3338
    %v3355 = vmul.f32 %v3352, %v3339
    %v3356 = vmul.f32 %v3352, %v3340
    %3361 = vrot.lane.b32.xlu0 %v3353, 127
    %v3362 = vpop.permute.xlu0 %3361
    %3363 = vrot.lane.b32.xlu0 %v3354, 127
    %v3364 = vpop.permute.xlu0 %3363
    %3365 = vrot.lane.b32.xlu0 %v3355, 127
    %v3366 = vpop.permute.xlu0 %3365
    %3367 = vrot.lane.b32.xlu0 %v3356, 127
    %v3368 = vpop.permute.xlu0 %3367
    %v3373 = vadd.f32 %v3347, %v3362
    %v3374 = vadd.f32 %v3348, %v3364
    %v3375 = vadd.f32 %v3349, %v3366
    %v3376 = vadd.f32 %v3350, %v3368
    %s3377 = sld [smem:[#allocation5 + $0x56]]
    %v3378 = vstv %s3377
    %v3379 = vmul.f32 %v3378, %v3337
    %v3380 = vmul.f32 %v3378, %v3338
    %v3381 = vmul.f32 %v3378, %v3339
    %v3382 = vmul.f32 %v3378, %v3340
    %3387 = vrot.lane.b32.xlu0 %v3379, 126
    %v3388 = vpop.permute.xlu0 %3387
    %3389 = vrot.lane.b32.xlu0 %v3380, 126
    %v3390 = vpop.permute.xlu0 %3389
    %3391 = vrot.lane.b32.xlu0 %v3381, 126
    %v3392 = vpop.permute.xlu0 %3391
    %3393 = vrot.lane.b32.xlu0 %v3382, 126
    %v3394 = vpop.permute.xlu0 %3393
    %v3399 = vadd.f32 %v3373, %v3388
    %v3400 = vadd.f32 %v3374, %v3390
    %v3401 = vadd.f32 %v3375, %v3392
    %v3402 = vadd.f32 %v3376, %v3394
    %s3403 = sld [smem:[#allocation5 + $0x57]]
    %v3404 = vstv %s3403
    %v3405 = vmul.f32 %v3404, %v3337
    %v3406 = vmul.f32 %v3404, %v3338
    %v3407 = vmul.f32 %v3404, %v3339
    %v3408 = vmul.f32 %v3404, %v3340
    %3413 = vrot.lane.b32.xlu0 %v3405, 125
    %v3414 = vpop.permute.xlu0 %3413
    %3415 = vrot.lane.b32.xlu0 %v3406, 125
    %v3416 = vpop.permute.xlu0 %3415
    %3417 = vrot.lane.b32.xlu0 %v3407, 125
    %v3418 = vpop.permute.xlu0 %3417
    %3419 = vrot.lane.b32.xlu0 %v3408, 125
    %v3420 = vpop.permute.xlu0 %3419
    %v3425 = vadd.f32 %v3399, %v3414
    %v3426 = vadd.f32 %v3400, %v3416
    %v3427 = vadd.f32 %v3401, %v3418
    %v3428 = vadd.f32 %v3402, %v3420
    %s3429 = sld [smem:[#allocation5 + $0x58]]
    %v3430 = vstv %s3429
    %v3431 = vmul.f32 %v3430, %v3337
    %v3432 = vmul.f32 %v3430, %v3338
    %v3433 = vmul.f32 %v3430, %v3339
    %v3434 = vmul.f32 %v3430, %v3340
    %3439 = vrot.lane.b32.xlu0 %v3431, 124
    %v3440 = vpop.permute.xlu0 %3439
    %3441 = vrot.lane.b32.xlu0 %v3432, 124
    %v3442 = vpop.permute.xlu0 %3441
    %3443 = vrot.lane.b32.xlu0 %v3433, 124
    %v3444 = vpop.permute.xlu0 %3443
    %3445 = vrot.lane.b32.xlu0 %v3434, 124
    %v3446 = vpop.permute.xlu0 %3445
    %v3451 = vadd.f32 %v3425, %v3440
    %v3452 = vadd.f32 %v3426, %v3442
    %v3453 = vadd.f32 %v3427, %v3444
    %v3454 = vadd.f32 %v3428, %v3446
    %s3455 = sld [smem:[#allocation5 + $0x59]]
    %v3456 = vstv %s3455
    %v3457 = vmul.f32 %v3456, %v3337
    %v3458 = vmul.f32 %v3456, %v3338
    %v3459 = vmul.f32 %v3456, %v3339
    %v3460 = vmul.f32 %v3456, %v3340
    %3465 = vrot.lane.b32.xlu0 %v3457, 123
    %v3466 = vpop.permute.xlu0 %3465
    %3467 = vrot.lane.b32.xlu0 %v3458, 123
    %v3468 = vpop.permute.xlu0 %3467
    %3469 = vrot.lane.b32.xlu0 %v3459, 123
    %v3470 = vpop.permute.xlu0 %3469
    %3471 = vrot.lane.b32.xlu0 %v3460, 123
    %v3472 = vpop.permute.xlu0 %3471
    %v3477 = vadd.f32 %v3451, %v3466
    %v3478 = vadd.f32 %v3452, %v3468
    %v3479 = vadd.f32 %v3453, %v3470
    %v3480 = vadd.f32 %v3454, %v3472
    %s3481 = sld [smem:[#allocation5 + $0x5a]]
    %v3482 = vstv %s3481
    %v3483 = vmul.f32 %v3482, %v3337
    %v3484 = vmul.f32 %v3482, %v3338
    %v3485 = vmul.f32 %v3482, %v3339
    %v3486 = vmul.f32 %v3482, %v3340
    %3491 = vrot.lane.b32.xlu0 %v3483, 122
    %v3492 = vpop.permute.xlu0 %3491
    %3493 = vrot.lane.b32.xlu0 %v3484, 122
    %v3494 = vpop.permute.xlu0 %3493
    %3495 = vrot.lane.b32.xlu0 %v3485, 122
    %v3496 = vpop.permute.xlu0 %3495
    %3497 = vrot.lane.b32.xlu0 %v3486, 122
    %v3498 = vpop.permute.xlu0 %3497
    %v3503 = vadd.f32 %v3477, %v3492
    %v3504 = vadd.f32 %v3478, %v3494
    %v3505 = vadd.f32 %v3479, %v3496
    %v3506 = vadd.f32 %v3480, %v3498
    %v3507 = vld [vmem:[%s1050 + $0x6] sm:$0xff]
    %v3508 = vld [vmem:[%s1050 + $0xe] sm:$0xff]
    %v3509 = vld [vmem:[%s1050 + $0x1e] sm:$0xff]
    %v3510 = vld [vmem:[%s1050 + $0x26] sm:$0xff]
    %s3511 = sld [smem:[#allocation5 + $0x5b]]
    %v3512 = vstv %s3511
    %v3513 = vmul.f32 %v3512, %v3507
    %v3514 = vmul.f32 %v3512, %v3508
    %v3515 = vmul.f32 %v3512, %v3509
    %v3516 = vmul.f32 %v3512, %v3510
    %v3517 = vadd.f32 %v3333, %v3513
    %v3518 = vadd.f32 %v3334, %v3514
    %v3519 = vadd.f32 %v3335, %v3515
    %v3520 = vadd.f32 %v3336, %v3516
    %s3521 = sld [smem:[#allocation5 + $0x5c]]
    %v3522 = vstv %s3521
    %v3523 = vmul.f32 %v3522, %v3507
    %v3524 = vmul.f32 %v3522, %v3508
    %v3525 = vmul.f32 %v3522, %v3509
    %v3526 = vmul.f32 %v3522, %v3510
    %3531 = vrot.lane.b32.xlu0 %v3523, 127
    %v3532 = vpop.permute.xlu0 %3531
    %3533 = vrot.lane.b32.xlu0 %v3524, 127
    %v3534 = vpop.permute.xlu0 %3533
    %3535 = vrot.lane.b32.xlu0 %v3525, 127
    %v3536 = vpop.permute.xlu0 %3535
    %3537 = vrot.lane.b32.xlu0 %v3526, 127
    %v3538 = vpop.permute.xlu0 %3537
    %v3543 = vadd.f32 %v3517, %v3532
    %v3544 = vadd.f32 %v3518, %v3534
    %v3545 = vadd.f32 %v3519, %v3536
    %v3546 = vadd.f32 %v3520, %v3538
    %s3547 = sld [smem:[#allocation5 + $0x5d]]
    %v3548 = vstv %s3547
    %v3549 = vmul.f32 %v3548, %v3507
    %v3550 = vmul.f32 %v3548, %v3508
    %v3551 = vmul.f32 %v3548, %v3509
    %v3552 = vmul.f32 %v3548, %v3510
    %3557 = vrot.lane.b32.xlu0 %v3549, 126
    %v3558 = vpop.permute.xlu0 %3557
    %3559 = vrot.lane.b32.xlu0 %v3550, 126
    %v3560 = vpop.permute.xlu0 %3559
    %3561 = vrot.lane.b32.xlu0 %v3551, 126
    %v3562 = vpop.permute.xlu0 %3561
    %3563 = vrot.lane.b32.xlu0 %v3552, 126
    %v3564 = vpop.permute.xlu0 %3563
    %v3569 = vadd.f32 %v3543, %v3558
    %v3570 = vadd.f32 %v3544, %v3560
    %v3571 = vadd.f32 %v3545, %v3562
    %v3572 = vadd.f32 %v3546, %v3564
    %s3573 = sld [smem:[#allocation5 + $0x5e]]
    %v3574 = vstv %s3573
    %v3575 = vmul.f32 %v3574, %v3507
    %v3576 = vmul.f32 %v3574, %v3508
    %v3577 = vmul.f32 %v3574, %v3509
    %v3578 = vmul.f32 %v3574, %v3510
    %3583 = vrot.lane.b32.xlu0 %v3575, 125
    %v3584 = vpop.permute.xlu0 %3583
    %3585 = vrot.lane.b32.xlu0 %v3576, 125
    %v3586 = vpop.permute.xlu0 %3585
    %3587 = vrot.lane.b32.xlu0 %v3577, 125
    %v3588 = vpop.permute.xlu0 %3587
    %3589 = vrot.lane.b32.xlu0 %v3578, 125
    %v3590 = vpop.permute.xlu0 %3589
    %v3595 = vadd.f32 %v3569, %v3584
    %v3596 = vadd.f32 %v3570, %v3586
    %v3597 = vadd.f32 %v3571, %v3588
    %v3598 = vadd.f32 %v3572, %v3590
    %s3599 = sld [smem:[#allocation5 + $0x5f]]
    %v3600 = vstv %s3599
    %v3601 = vmul.f32 %v3600, %v3507
    %v3602 = vmul.f32 %v3600, %v3508
    %v3603 = vmul.f32 %v3600, %v3509
    %v3604 = vmul.f32 %v3600, %v3510
    %3609 = vrot.lane.b32.xlu0 %v3601, 124
    %v3610 = vpop.permute.xlu0 %3609
    %3611 = vrot.lane.b32.xlu0 %v3602, 124
    %v3612 = vpop.permute.xlu0 %3611
    %3613 = vrot.lane.b32.xlu0 %v3603, 124
    %v3614 = vpop.permute.xlu0 %3613
    %3615 = vrot.lane.b32.xlu0 %v3604, 124
    %v3616 = vpop.permute.xlu0 %3615
    %v3621 = vadd.f32 %v3595, %v3610
    %v3622 = vadd.f32 %v3596, %v3612
    %v3623 = vadd.f32 %v3597, %v3614
    %v3624 = vadd.f32 %v3598, %v3616
    %s3625 = sld [smem:[#allocation5 + $0x60]]
    %v3626 = vstv %s3625
    %v3627 = vmul.f32 %v3626, %v3507
    %v3628 = vmul.f32 %v3626, %v3508
    %v3629 = vmul.f32 %v3626, %v3509
    %v3630 = vmul.f32 %v3626, %v3510
    %3635 = vrot.lane.b32.xlu0 %v3627, 123
    %v3636 = vpop.permute.xlu0 %3635
    %3637 = vrot.lane.b32.xlu0 %v3628, 123
    %v3638 = vpop.permute.xlu0 %3637
    %3639 = vrot.lane.b32.xlu0 %v3629, 123
    %v3640 = vpop.permute.xlu0 %3639
    %3641 = vrot.lane.b32.xlu0 %v3630, 123
    %v3642 = vpop.permute.xlu0 %3641
    %v3647 = vadd.f32 %v3621, %v3636
    %v3648 = vadd.f32 %v3622, %v3638
    %v3649 = vadd.f32 %v3623, %v3640
    %v3650 = vadd.f32 %v3624, %v3642
    %s3651 = sld [smem:[#allocation5 + $0x61]]
    %v3652 = vstv %s3651
    %v3653 = vmul.f32 %v3652, %v3507
    %v3654 = vmul.f32 %v3652, %v3508
    %v3655 = vmul.f32 %v3652, %v3509
    %v3656 = vmul.f32 %v3652, %v3510
    %3661 = vrot.lane.b32.xlu0 %v3653, 122
    %v3662 = vpop.permute.xlu0 %3661
    %3663 = vrot.lane.b32.xlu0 %v3654, 122
    %v3664 = vpop.permute.xlu0 %3663
    %3665 = vrot.lane.b32.xlu0 %v3655, 122
    %v3666 = vpop.permute.xlu0 %3665
    %3667 = vrot.lane.b32.xlu0 %v3656, 122
    %v3668 = vpop.permute.xlu0 %3667
    %v3673 = vadd.f32 %v3647, %v3662
    %v3674 = vadd.f32 %v3648, %v3664
    %v3675 = vadd.f32 %v3649, %v3666
    %v3676 = vadd.f32 %v3650, %v3668
    %v3677 = vadd.f32 %v2483, %v2313
    %v3678 = vadd.f32 %v2484, %v2314
    %v3679 = vadd.f32 %v2485, %v2315
    %v3680 = vadd.f32 %v2486, %v2316
    %v3681 = vadd.f32 %v3673, %v3503
    %v3682 = vadd.f32 %v3674, %v3504
    %v3683 = vadd.f32 %v3675, %v3505
    %v3684 = vadd.f32 %v3676, %v3506
    %v3685 = vadd.f32 %v3677, %v3681
    %v3686 = vadd.f32 %v3678, %v3682
    %v3687 = vadd.f32 %v3679, %v3683
    %v3688 = vadd.f32 %v3680, %v3684
    %3693 = vrot.lane.b32.xlu0 %v3685, 3
    %v3694 = vpop.permute.xlu0 %3693
    %3695 = vrot.lane.b32.xlu0 %v3686, 3
    %v3696 = vpop.permute.xlu0 %3695
    %3697 = vrot.lane.b32.xlu0 %v3687, 3
    %v3698 = vpop.permute.xlu0 %3697
    %3699 = vrot.lane.b32.xlu0 %v3688, 3
    %v3700 = vpop.permute.xlu0 %3699
    %vm3705 = vcmask 154648
    %3706 = vst.msk [vmem:[#allocation2 + $0x3] sm:$0xff] %vm3705, %v3694
    %3707 = vst.msk [vmem:[#allocation2 + $0xb] sm:$0xff] %vm3705, %v3696
    %3708 = vst.msk [vmem:[#allocation2 + $0x1b] sm:$0xff] %vm3705, %v3698
    %3709 = vst.msk [vmem:[#allocation2 + $0x23] sm:$0xff] %vm3705, %v3700
    %v3710 = vld [vmem:[#allocation2 + $0x3] sm:$0x1]
    %v3711 = vld [vmem:[#allocation2 + $0x1b] sm:$0x1]
    %3714 = vrot.lane.b32.xlu0 %v3710, 125
    %v3715 = vpop.permute.xlu0 %3714
    %3716 = vrot.lane.b32.xlu0 %v3711, 125
    %v3717 = vpop.permute.xlu0 %3716
    %v3720 = vlaneseq
    %vm3721 = vcmp.ge.s32.totalorder %v3720, 0
    %vm3722 = vcmp.lt.s32.totalorder %v3720, 16
    %vm3723 = vmand %vm3721, %vm3722
    %3724 = vst.msk [vmem:[#allocation3] sm:$0x1] %vm3723, %v3715
    %3725 = vst.msk [vmem:[#allocation3 + $0x2] sm:$0x1] %vm3723, %v3717
    %v3726 = vld [vmem:[#allocation2 + $0x4] sm:$0x1]
    %v3727 = vld [vmem:[#allocation2 + $0x1c] sm:$0x1]
    %3730 = vrot.lane.b32.xlu0 %v3726, 13
    %v3731 = vpop.permute.xlu0 %3730
    %3732 = vrot.lane.b32.xlu0 %v3727, 13
    %v3733 = vpop.permute.xlu0 %3732
    %vm3736 = vcmp.ge.s32.totalorder %v3720, 16
    %vm3737 = vcmp.lt.s32.totalorder %v3720, 32
    %vm3738 = vmand %vm3736, %vm3737
    %3739 = vst.msk [vmem:[#allocation3] sm:$0x1] %vm3738, %v3731
    %3740 = vst.msk [vmem:[#allocation3 + $0x2] sm:$0x1] %vm3738, %v3733
    %v3741 = vld [vmem:[#allocation2 + $0x5] sm:$0x1]
    %v3742 = vld [vmem:[#allocation2 + $0x1d] sm:$0x1]
    %3745 = vrot.lane.b32.xlu0 %v3741, 29
    %v3746 = vpop.permute.xlu0 %3745
    %3747 = vrot.lane.b32.xlu0 %v3742, 29
    %v3748 = vpop.permute.xlu0 %3747
    %vm3751 = vcmp.ge.s32.totalorder %v3720, 32
    %vm3752 = vcmp.lt.s32.totalorder %v3720, 48
    %vm3753 = vmand %vm3751, %vm3752
    %3754 = vst.msk [vmem:[#allocation3] sm:$0x1] %vm3753, %v3746
    %3755 = vst.msk [vmem:[#allocation3 + $0x2] sm:$0x1] %vm3753, %v3748
    %v3756 = vld [vmem:[#allocation2 + $0x6] sm:$0x1]
    %v3757 = vld [vmem:[#allocation2 + $0x1e] sm:$0x1]
    %3760 = vrot.lane.b32.xlu0 %v3756, 45
    %v3761 = vpop.permute.xlu0 %3760
    %3762 = vrot.lane.b32.xlu0 %v3757, 45
    %v3763 = vpop.permute.xlu0 %3762
    %vm3766 = vcmp.ge.s32.totalorder %v3720, 48
    %vm3767 = vcmp.lt.s32.totalorder %v3720, 64
    %vm3768 = vmand %vm3766, %vm3767
    %3769 = vst.msk [vmem:[#allocation3] sm:$0x1] %vm3768, %v3761
    %3770 = vst.msk [vmem:[#allocation3 + $0x2] sm:$0x1] %vm3768, %v3763
    %v3771 = vld [vmem:[#allocation2 + $0x7] sm:$0x1]
    %v3772 = vld [vmem:[#allocation2 + $0x1f] sm:$0x1]
    %3775 = vrot.lane.b32.xlu0 %v3771, 61
    %v3776 = vpop.permute.xlu0 %3775
    %3777 = vrot.lane.b32.xlu0 %v3772, 61
    %v3778 = vpop.permute.xlu0 %3777
    %vm3781 = vcmp.ge.s32.totalorder %v3720, 64
    %vm3782 = vcmp.lt.s32.totalorder %v3720, 80
    %vm3783 = vmand %vm3781, %vm3782
    %3784 = vst.msk [vmem:[#allocation3] sm:$0x1] %vm3783, %v3776
    %3785 = vst.msk [vmem:[#allocation3 + $0x2] sm:$0x1] %vm3783, %v3778
    %v3786 = vld [vmem:[#allocation2 + $0x8] sm:$0x1]
    %v3787 = vld [vmem:[#allocation2 + $0x20] sm:$0x1]
    %3790 = vrot.lane.b32.xlu0 %v3786, 77
    %v3791 = vpop.permute.xlu0 %3790
    %3792 = vrot.lane.b32.xlu0 %v3787, 77
    %v3793 = vpop.permute.xlu0 %3792
    %vm3796 = vcmp.ge.s32.totalorder %v3720, 80
    %vm3797 = vcmp.lt.s32.totalorder %v3720, 96
    %vm3798 = vmand %vm3796, %vm3797
    %3799 = vst.msk [vmem:[#allocation3] sm:$0x1] %vm3798, %v3791
    %3800 = vst.msk [vmem:[#allocation3 + $0x2] sm:$0x1] %vm3798, %v3793
    %v3801 = vld [vmem:[#allocation2 + $0x9] sm:$0x1]
    %v3802 = vld [vmem:[#allocation2 + $0x21] sm:$0x1]
    %3805 = vrot.lane.b32.xlu0 %v3801, 93
    %v3806 = vpop.permute.xlu0 %3805
    %3807 = vrot.lane.b32.xlu0 %v3802, 93
    %v3808 = vpop.permute.xlu0 %3807
    %vm3811 = vcmp.ge.s32.totalorder %v3720, 96
    %vm3812 = vcmp.lt.s32.totalorder %v3720, 112
    %vm3813 = vmand %vm3811, %vm3812
    %3814 = vst.msk [vmem:[#allocation3] sm:$0x1] %vm3813, %v3806
    %3815 = vst.msk [vmem:[#allocation3 + $0x2] sm:$0x1] %vm3813, %v3808
    %v3816 = vld [vmem:[#allocation2 + $0xa] sm:$0x1]
    %v3817 = vld [vmem:[#allocation2 + $0x22] sm:$0x1]
    %3820 = vrot.lane.b32.xlu0 %v3816, 109
    %v3821 = vpop.permute.xlu0 %3820
    %3822 = vrot.lane.b32.xlu0 %v3817, 109
    %v3823 = vpop.permute.xlu0 %3822
    %vm3826 = vcmp.ge.s32.totalorder %v3720, 112
    %vm3827 = vcmp.lt.s32.totalorder %v3720, 128
    %vm3828 = vmand %vm3826, %vm3827
    %3829 = vst.msk [vmem:[#allocation3] sm:$0x1] %vm3828, %v3821
    %3830 = vst.msk [vmem:[#allocation3 + $0x2] sm:$0x1] %vm3828, %v3823
    %v3831 = vld [vmem:[#allocation2 + $0xb] sm:$0x1]
    %v3832 = vld [vmem:[#allocation2 + $0x23] sm:$0x1]
    %3835 = vrot.lane.b32.xlu0 %v3831, 125
    %v3836 = vpop.permute.xlu0 %3835
    %3837 = vrot.lane.b32.xlu0 %v3832, 125
    %v3838 = vpop.permute.xlu0 %3837
    %3841 = vst.msk [vmem:[#allocation3 + $0x1] sm:$0x1] %vm3723, %v3836
    %3842 = vst.msk [vmem:[#allocation3 + $0x3] sm:$0x1] %vm3723, %v3838
    %v3843 = vld [vmem:[#allocation2 + $0xc] sm:$0x1]
    %v3844 = vld [vmem:[#allocation2 + $0x24] sm:$0x1]
    %3847 = vrot.lane.b32.xlu0 %v3843, 13
    %v3848 = vpop.permute.xlu0 %3847
    %3849 = vrot.lane.b32.xlu0 %v3844, 13
    %v3850 = vpop.permute.xlu0 %3849
    %3853 = vst.msk [vmem:[#allocation3 + $0x1] sm:$0x1] %vm3738, %v3848
    %3854 = vst.msk [vmem:[#allocation3 + $0x3] sm:$0x1] %vm3738, %v3850
    %v3855 = vld [vmem:[#allocation2 + $0xd] sm:$0x1]
    %v3856 = vld [vmem:[#allocation2 + $0x25] sm:$0x1]
    %3859 = vrot.lane.b32.xlu0 %v3855, 29
    %v3860 = vpop.permute.xlu0 %3859
    %3861 = vrot.lane.b32.xlu0 %v3856, 29
    %v3862 = vpop.permute.xlu0 %3861
    %3865 = vst.msk [vmem:[#allocation3 + $0x1] sm:$0x1] %vm3753, %v3860
    %3866 = vst.msk [vmem:[#allocation3 + $0x3] sm:$0x1] %vm3753, %v3862
    %v3867 = vld [vmem:[#allocation2 + $0xe] sm:$0x1]
    %v3868 = vld [vmem:[#allocation2 + $0x26] sm:$0x1]
    %3871 = vrot.lane.b32.xlu0 %v3867, 45
    %v3872 = vpop.permute.xlu0 %3871
    %3873 = vrot.lane.b32.xlu0 %v3868, 45
    %v3874 = vpop.permute.xlu0 %3873
    %3877 = vst.msk [vmem:[#allocation3 + $0x1] sm:$0x1] %vm3768, %v3872
    %3878 = vst.msk [vmem:[#allocation3 + $0x3] sm:$0x1] %vm3768, %v3874
    %v3879 = vld [vmem:[#allocation2 + $0xf] sm:$0x1]
    %v3880 = vld [vmem:[#allocation2 + $0x27] sm:$0x1]
    %3883 = vrot.lane.b32.xlu0 %v3879, 61
    %v3884 = vpop.permute.xlu0 %3883
    %3885 = vrot.lane.b32.xlu0 %v3880, 61
    %v3886 = vpop.permute.xlu0 %3885
    %3889 = vst.msk [vmem:[#allocation3 + $0x1] sm:$0x1] %vm3783, %v3884
    %3890 = vst.msk [vmem:[#allocation3 + $0x3] sm:$0x1] %vm3783, %v3886
    %v3891 = vld [vmem:[#allocation2 + $0x10] sm:$0x1]
    %v3892 = vld [vmem:[#allocation2 + $0x28] sm:$0x1]
    %3895 = vrot.lane.b32.xlu0 %v3891, 77
    %v3896 = vpop.permute.xlu0 %3895
    %3897 = vrot.lane.b32.xlu0 %v3892, 77
    %v3898 = vpop.permute.xlu0 %3897
    %3901 = vst.msk [vmem:[#allocation3 + $0x1] sm:$0x1] %vm3798, %v3896
    %3902 = vst.msk [vmem:[#allocation3 + $0x3] sm:$0x1] %vm3798, %v3898
    %v3903 = vld [vmem:[#allocation2 + $0x11] sm:$0x1]
    %v3904 = vld [vmem:[#allocation2 + $0x29] sm:$0x1]
    %3907 = vrot.lane.b32.xlu0 %v3903, 93
    %v3908 = vpop.permute.xlu0 %3907
    %3909 = vrot.lane.b32.xlu0 %v3904, 93
    %v3910 = vpop.permute.xlu0 %3909
    %3913 = vst.msk [vmem:[#allocation3 + $0x1] sm:$0x1] %vm3813, %v3908
    %3914 = vst.msk [vmem:[#allocation3 + $0x3] sm:$0x1] %vm3813, %v3910
    %v3915 = vld [vmem:[#allocation2 + $0x12] sm:$0x1]
    %v3916 = vld [vmem:[#allocation2 + $0x2a] sm:$0x1]
    %3919 = vrot.lane.b32.xlu0 %v3915, 109
    %v3920 = vpop.permute.xlu0 %3919
    %3921 = vrot.lane.b32.xlu0 %v3916, 109
    %v3922 = vpop.permute.xlu0 %3921
    %3925 = vst.msk [vmem:[#allocation3 + $0x1] sm:$0x1] %vm3828, %v3920
    %3926 = vst.msk [vmem:[#allocation3 + $0x3] sm:$0x1] %vm3828, %v3922
    %v3927 = vld [vmem:[#allocation3] sm:$0x3]
    %v3928 = vld [vmem:[#allocation3 + $0x2] sm:$0x3]
    %v3929 = vxor.u32 %v3927, 2147483648
    %v3930 = vxor.u32 %v3928, 2147483648
    %v3931 = vmul.f32 %v3929, 1.442695
    %v3932 = vpow.pop %v3931
    %v3933 = vmul.f32 %v3930, 1.442695
    %v3934 = vpow.pop %v3933
    %v3935 = vadd.f32 %v3932, 1.0
    %v3936 = vadd.f32 %v3934, 1.0
    %v3937 = vrcp.pop %v3935
    %v3938 = vmul.f32 %v3935, %v3937
    %v3939 = vsub.f32 1.0, %v3938
    %v3940 = vmul.f32 %v3937, %v3939
    %v3941 = vadd.f32 %v3937, %v3940
    %vm3942 = vweird.f32 %v3935
    %vm3943 = vweird.f32 %v3937
    %vm3944 = vmor %vm3942, %vm3943
    %v3945 = vsel %vm3944, %v3937, %v3941
    %v3946 = vand.u32 2147483647, %v3935
    %vm3947 = vcmp.eq.f32.partialorder %v3946, 8.507059e+37
    %v3948 = vand.u32 %v3935, 2147483648
    %v3949 = vor.u32 1.1754944e-38, %v3948
    %v3950 = vsel %vm3947, %v3949, %v3945
    %v3951 = vmul.f32 1.0, %v3950
    %v3952 = vrcp.pop %v3936
    %v3953 = vmul.f32 %v3936, %v3952
    %v3954 = vsub.f32 1.0, %v3953
    %v3955 = vmul.f32 %v3952, %v3954
    %v3956 = vadd.f32 %v3952, %v3955
    %vm3957 = vweird.f32 %v3936
    %vm3958 = vweird.f32 %v3952
    %vm3959 = vmor %vm3957, %vm3958
    %v3960 = vsel %vm3959, %v3952, %v3956
    %v3961 = vand.u32 2147483647, %v3936
    %vm3962 = vcmp.eq.f32.partialorder %v3961, 8.507059e+37
    %v3963 = vand.u32 %v3936, 2147483648
    %v3964 = vor.u32 1.1754944e-38, %v3963
    %v3965 = vsel %vm3962, %v3964, %v3960
    %v3966 = vmul.f32 1.0, %v3965
    %v3969 = vperm.slane %v3951, 0
    %v3970 = vperm.slane %v3951, 1
    %v3971 = vperm.slane %v3966, 0
    %v3972 = vperm.slane %v3966, 1
    %v3977 = vmul.f32 %v921, %v3969
    %v3978 = vmul.f32 %v922, %v3970
    %v3979 = vmul.f32 %v923, %v3969
    %v3980 = vmul.f32 %v924, %v3970
    %v3981 = vmul.f32 %v925, %v3969
    %v3982 = vmul.f32 %v926, %v3970
    %v3983 = vmul.f32 %v927, %v3969
    %v3984 = vmul.f32 %v928, %v3970
    %v3985 = vmul.f32 %v929, %v3971
    %v3986 = vmul.f32 %v930, %v3972
    %v3987 = vmul.f32 %v931, %v3971
    %v3988 = vmul.f32 %v932, %v3972
    %v3989 = vmul.f32 %v933, %v3971
    %v3990 = vmul.f32 %v934, %v3972
    %v3991 = vmul.f32 %v935, %v3971
    %v3992 = vmul.f32 %v936, %v3972
    %3993 = vst [vmem:[#allocation9] sm:$0xff] %v3977
    %3994 = vst [vmem:[#allocation9 + $0x8] sm:$0xff] %v3978
    %3995 = vst [vmem:[#allocation9 + $0x10] sm:$0xff] %v3979
    %3996 = vst [vmem:[#allocation9 + $0x18] sm:$0xff] %v3980
    %3997 = vst [vmem:[#allocation9 + $0x20] sm:$0xff] %v3981
    %3998 = vst [vmem:[#allocation9 + $0x28] sm:$0xff] %v3982
    %3999 = vst [vmem:[#allocation9 + $0x30] sm:$0xff] %v3983
    %4000 = vst [vmem:[#allocation9 + $0x38] sm:$0xff] %v3984
    %4001 = vst [vmem:[#allocation9 + $0x40] sm:$0xff] %v3985
    %4002 = vst [vmem:[#allocation9 + $0x48] sm:$0xff] %v3986
    %4003 = vst [vmem:[#allocation9 + $0x50] sm:$0xff] %v3987
    %4004 = vst [vmem:[#allocation9 + $0x58] sm:$0xff] %v3988
    %4005 = vst [vmem:[#allocation9 + $0x60] sm:$0xff] %v3989
    %4006 = vst [vmem:[#allocation9 + $0x68] sm:$0xff] %v3990
    %4007 = vst [vmem:[#allocation9 + $0x70] sm:$0xff] %v3991
    %4008 = vst [vmem:[#allocation9 + $0x78] sm:$0xff] %v3992
    // Predicated region
    $region18: #{tpu_custom_call.1} parent=1 // pred_check
      _
    $region19: #{tpu_custom_call.1} parent=1 // pred_check_branch
      %4010 = sbr.rel (0) target = $region21
    $region20: #{tpu_custom_call.1} parent=1 // pred_region
      %4012 = vsyncadd [#allocation8], 0
      %s4013 = sshll.u32 [#allocation9], 4
      %s4014 = int_to_ptr.vmem [resolvable:$true] %s4013
      %s4015 = sshll.u32 %s4, 4
      %s4016 = int_to_ptr.hbm [resolvable:$true] %s4015
      %4021 = dma.vmem_to_hbm [thread:$0]  %s4014, 2048, %s4016, [#allocation8], 256, 256, 16
    $region21: #{tpu_custom_call.1} parent=1 // pred_fallthru
      _
    // Predicated region
    $region22: #{tpu_custom_call.1} parent=1 // pred_check
      _
    $region23: #{tpu_custom_call.1} parent=1 // pred_check_branch
      %4023 = sbr.rel (0) target = $region25
    $region24: #{tpu_custom_call.1} parent=1 // pred_region
      %4025 = dma.done [#allocation8], 2048
    $region25: #{tpu_custom_call.1} parent=1 // pred_fallthru
      _
    %4026 = vsyncpa [#allocation7], 1
    %4027 = vsyncpa [#allocation8], 1

</llo_original>
